<compile_context>
chip_gen: v7x
topology: tpu7x:2x2x1
jax: 0.10.0
libtpu: 0.0.40
codegen_flags: <defaults>
</compile_context>

<pallas_src>
import jax
import jax.numpy as jnp
from jax.experimental import pallas as pl
from jax.experimental.pallas import tpu as pltpu  # noqa: F401  (kept VMEM-resident via default specs)


# ------------------------------ fused forward kernel ------------------------------
def _build_fused_kernel(T, B, E, H, L, VOCAB, V_PAD):
    """Builds the fused kernel: one-hot embedding matmul -> L-layer LSTM (unrolled over T)
    -> last-step linear head (lane-dense padded vocab)."""

    def kernel(*refs):
        it = iter(refs)
        tok_ref = next(it)            # (T*B, 1) int32, time-major flat tokens
        emb_ref = next(it)            # (VOCAB, E)
        wih0_ref = next(it)           # (E, 4H)
        whh0_ref = next(it)           # (H, 4H)
        b0_ref = next(it)             # (1, 4H)
        wih_refs, whh_refs, bl_refs = [], [], []
        for _ in range(L - 1):
            wih_refs.append(next(it))   # (H, 4H)
            whh_refs.append(next(it))   # (H, 4H)
            bl_refs.append(next(it))    # (1, 4H)
        wout_ref = next(it)           # (H, V_PAD)
        bout_ref = next(it)           # (1, V_PAD)
        hinit_ref = next(it)          # (L, B, H)
        cinit_ref = next(it)          # (L, B, H)
        logits_ref = next(it)         # (B, V_PAD)   output
        hT_ref = next(it)             # (L, B, H)    output
        cT_ref = next(it)             # (L, B, H)    output

        f32 = jnp.float32

        # ---- embedding lookup as a one-hot matmul (keeps the gather on the MXU) ----
        tok = tok_ref[...]                                                   # (T*B, 1)
        vocab_ids = jax.lax.broadcasted_iota(jnp.int32, (T * B, VOCAB), 1)   # (T*B, VOCAB)
        onehot = (tok == vocab_ids).astype(f32)                              # (T*B, VOCAB)
        x_emb = jnp.dot(onehot, emb_ref[...], preferred_element_type=f32)    # (T*B, E)

        # ---- layer-0 input projection hoisted out of the recurrence ----
        gx0 = jnp.dot(x_emb, wih0_ref[...], preferred_element_type=f32) + b0_ref[...]  # (T*B, 4H)

        # ---- hoist weight/bias loads out of the unrolled time loop ----
        whh0 = whh0_ref[...]
        wihs = [r[...] for r in wih_refs]
        whhs = [r[...] for r in whh_refs]
        bls = [r[...] for r in bl_refs]

        hs = [hinit_ref[l] for l in range(L)]
        cs = [cinit_ref[l] for l in range(L)]

        def cell(gates, c_prev):
            # PyTorch nn.LSTM gate order: i, f, g, o
            i_g = jax.nn.sigmoid(gates[:, 0 * H:1 * H])
            f_g = jax.nn.sigmoid(gates[:, 1 * H:2 * H])
            g_g = jnp.tanh(gates[:, 2 * H:3 * H])
            o_g = jax.nn.sigmoid(gates[:, 3 * H:4 * H])
            c_new = f_g * c_prev + i_g * g_g
            h_new = o_g * jnp.tanh(c_new)
            return h_new, c_new

        # Fully unrolled time loop (T is small and static): straight-line code lets the
        # scheduler overlap upper layers of step t with layer 0 of step t+1.
        for t in range(T):
            g0 = gx0[t * B:(t + 1) * B, :] + jnp.dot(hs[0], whh0, preferred_element_type=f32)
            hs[0], cs[0] = cell(g0, cs[0])
            for l in range(1, L):
                gl = (jnp.dot(hs[l - 1], wihs[l - 1], preferred_element_type=f32)
                      + jnp.dot(hs[l], whhs[l - 1], preferred_element_type=f32)
                      + bls[l - 1])
                hs[l], cs[l] = cell(gl, cs[l])

        # ---- output head on the final timestep only (lane-dense, padded vocab) ----
        logits_ref[...] = (jnp.dot(hs[L - 1], wout_ref[...], preferred_element_type=f32)
                           + bout_ref[...])
        for l in range(L):
            hT_ref[l] = hs[l]
            cT_ref[l] = cs[l]

    return kernel


# ------------------------------------ wrapper --------------------------------------
@jax.jit
def lstm_text_generator_forward(params, x_tokens, state_h, state_c):
    """Equivalent of LSTMTextGenerator.forward(x, state_h, state_c) in eval mode.

    x_tokens: (B, T) int32; state_h/state_c: (L, B, H).
    Returns (logits (B, VOCAB), new_state_h (L, B, H), new_state_c (L, B, H)).
    """
    B, T = x_tokens.shape
    L, _, H = state_h.shape
    VOCAB, E = params["embedding"].shape
    V_PAD = params["w_out_pad"].shape[1]

    # Time-major flat tokens: row r = t*B + b (tiny int reshape; the float gather +
    # (B,T,E) transpose of the old version are gone — embedding happens in-kernel).
    tok_tm = x_tokens.T.reshape(T * B, 1).astype(jnp.int32)

    inputs = [tok_tm, params["embedding"],
              params["wih0_t"], params["whh0_t"], params["b0"]]
    for l in range(1, L):
        inputs += [params["wih_t"][l - 1], params["whh_t"][l - 1], params["b_upper"][l - 1]]
    inputs += [params["w_out_pad"], params["b_out_pad"], state_h, state_c]

    kernel = _build_fused_kernel(T, B, E, H, L, VOCAB, V_PAD)
    logits_pad, hT, cT = pl.pallas_call(
        kernel,
        out_shape=(jax.ShapeDtypeStruct((B, V_PAD), jnp.float32),
                   jax.ShapeDtypeStruct((L, B, H), jnp.float32),
                   jax.ShapeDtypeStruct((L, B, H), jnp.float32)),
    )(*inputs)
    return logits_pad[:, :VOCAB], hT, cT


# ------------------------------------- main -----------------------------------------
if __name__ == "__main__":
    VOCAB, E, H, L, B, T = 50, 32, 32, 2, 2, 8
    V_PAD = 128   # lane-dense padded vocab for the output head
    PAD_TOK = 0

    key = jax.random.PRNGKey(0)
    keys = jax.random.split(key, 4 * L + 4)

    # Deterministic parameter init (shapes match the PyTorch module).
    embedding = 0.1 * jax.random.normal(keys[0], (VOCAB, E), jnp.float32)
    embedding = embedding.at[PAD_TOK].set(0.0)          # padding_idx row zeroed

    scale = 1.0 / jnp.sqrt(H)
    raw_lstm = []
    for l in range(L):
        in_dim = E if l == 0 else H
        w_ih = jax.random.uniform(keys[1 + 4 * l], (4 * H, in_dim), jnp.float32, -scale, scale)
        w_hh = jax.random.uniform(keys[2 + 4 * l], (4 * H, H), jnp.float32, -scale, scale)
        b_ih = jax.random.uniform(keys[3 + 4 * l], (4 * H,), jnp.float32, -scale, scale)
        b_hh = jax.random.uniform(keys[4 + 4 * l], (4 * H,), jnp.float32, -scale, scale)
        raw_lstm.append((w_ih, w_hh, b_ih, b_hh))

    w_out = jax.random.uniform(keys[-3], (VOCAB, H), jnp.float32, -scale, scale)
    b_out = jax.random.uniform(keys[-2], (VOCAB,), jnp.float32, -scale, scale)

    # Kernel-layout parameters (transposed weights, fused biases, padded head).
    w_ih0, w_hh0, b_ih0, b_hh0 = raw_lstm[0]
    params = {
        "embedding": embedding,                                   # (VOCAB, E)
        "wih0_t": w_ih0.T,                                        # (E, 4H)
        "whh0_t": w_hh0.T,                                        # (H, 4H)
        "b0": (b_ih0 + b_hh0).reshape(1, 4 * H),                  # (1, 4H)
        "wih_t": [raw_lstm[l][0].T for l in range(1, L)],         # (H, 4H) each
        "whh_t": [raw_lstm[l][1].T for l in range(1, L)],         # (H, 4H) each
        "b_upper": [(raw_lstm[l][2] + raw_lstm[l][3]).reshape(1, 4 * H) for l in range(1, L)],
        "w_out_pad": jnp.zeros((H, V_PAD), jnp.float32).at[:, :VOCAB].set(w_out.T),
        "b_out_pad": jnp.zeros((1, V_PAD), jnp.float32).at[0, :VOCAB].set(b_out),
    }

    x_tokens = jax.random.randint(keys[-1], (B, T), 0, VOCAB, dtype=jnp.int32)
    state_h = jnp.zeros((L, B, H), jnp.float32)
    state_c = jnp.zeros((L, B, H), jnp.float32)

    logits, new_h, new_c = lstm_text_generator_forward(params, x_tokens, state_h, state_c)
    jax.block_until_ready((logits, new_h, new_c))

    # Pure-JAX reference (uses the raw, untransposed/unpadded weights).
    def reference_forward(embedding, raw_lstm, w_out, b_out, x_tokens, state_h, state_c):
        x = embedding[x_tokens]                                   # (B, T, E)
        hs, cs = [], []
        for l, (w_ih, w_hh, b_ih, b_hh) in enumerate(raw_lstm):
            h, c = state_h[l], state_c[l]
            outs = []
            for t in range(x.shape[1]):
                g = x[:, t, :] @ w_ih.T + h @ w_hh.T + (b_ih + b_hh)
                i = jax.nn.sigmoid(g[:, :H]); f = jax.nn.sigmoid(g[:, H:2 * H])
                gg = jnp.tanh(g[:, 2 * H:3 * H]); o = jax.nn.sigmoid(g[:, 3 * H:4 * H])
                c = f * c + i * gg
                h = o * jnp.tanh(c)
                outs.append(h)
            x = jnp.stack(outs, axis=1)
            hs.append(h); cs.append(c)
        logits = x[:, -1, :] @ w_out.T + b_out
        return logits, jnp.stack(hs), jnp.stack(cs)

    ref_logits, ref_h, ref_c = reference_forward(embedding, raw_lstm, w_out, b_out,
                                                 x_tokens, state_h, state_c)
    assert jnp.allclose(logits, ref_logits, atol=1e-4), "logits mismatch"
    assert jnp.allclose(new_h, ref_h, atol=1e-4), "state_h mismatch"
    assert jnp.allclose(new_c, ref_c, atol=1e-4), "state_c mismatch"

    assert logits.shape == (B, VOCAB)
    assert new_h.shape == (L, B, H) and new_c.shape == (L, B, H)
    print("KERNEL_OK")
</pallas_src>

<mosaic_0001>
module attributes {stable_mosaic.version = 11 : i64} {
  func.func @kernel(%arg0: memref<16x1xi32, #tpu.memory_space<vmem>>, %arg1: memref<50x32xf32, #tpu.memory_space<vmem>>, %arg2: memref<32x128xf32, #tpu.memory_space<vmem>>, %arg3: memref<32x128xf32, #tpu.memory_space<vmem>>, %arg4: memref<1x128xf32, #tpu.memory_space<vmem>>, %arg5: memref<32x128xf32, #tpu.memory_space<vmem>>, %arg6: memref<32x128xf32, #tpu.memory_space<vmem>>, %arg7: memref<1x128xf32, #tpu.memory_space<vmem>>, %arg8: memref<32x128xf32, #tpu.memory_space<vmem>>, %arg9: memref<1x128xf32, #tpu.memory_space<vmem>>, %arg10: memref<2x2x32xf32, #tpu.memory_space<vmem>>, %arg11: memref<2x2x32xf32, #tpu.memory_space<vmem>>, %arg12: memref<2x128xf32, #tpu.memory_space<vmem>>, %arg13: memref<2x2x32xf32, #tpu.memory_space<vmem>>, %arg14: memref<2x2x32xf32, #tpu.memory_space<vmem>>) attributes {dimension_semantics = [], scalar_prefetch = 0 : i64, scratch_operands = 0 : i64, tpu.core_type = #tpu.core_type<tc>} {
    %c0 = arith.constant 0 : index
    %c0_0 = arith.constant 0 : index
    %0 = vector.load %arg0[%c0, %c0_0] : memref<16x1xi32, #tpu.memory_space<vmem>>, vector<16x1xi32>
    %1 = tpu.iota {dimensions = array<i32: 1>} : vector<16x50xi32>
    %2 = vector.broadcast %0 : vector<16x1xi32> to vector<16x50xi32>
    %3 = arith.cmpi eq, %2, %1 : vector<16x50xi32>
    %4 = arith.extui %3 : vector<16x50xi1> to vector<16x50xi32>
    %5 = arith.sitofp %4 : vector<16x50xi32> to vector<16x50xf32>
    %c0_1 = arith.constant 0 : index
    %c0_2 = arith.constant 0 : index
    %6 = vector.load %arg1[%c0_1, %c0_2] : memref<50x32xf32, #tpu.memory_space<vmem>>, vector<50x32xf32>
    %cst = arith.constant dense<0.000000e+00> : vector<16x32xf32>
    %7 = tpu.matmul %5, %6, %cst {dimension_numbers = #tpu.dot_dimension_numbers<[1], [0], [0], [1], [0, 0, 1, 1], [], []>} : vector<16x50xf32>, vector<50x32xf32>, vector<16x32xf32> -> vector<16x32xf32>
    %c0_3 = arith.constant 0 : index
    %c0_4 = arith.constant 0 : index
    %8 = vector.load %arg2[%c0_3, %c0_4] : memref<32x128xf32, #tpu.memory_space<vmem>>, vector<32x128xf32>
    %cst_5 = arith.constant dense<0.000000e+00> : vector<16x128xf32>
    %9 = tpu.matmul %7, %8, %cst_5 {dimension_numbers = #tpu.dot_dimension_numbers<[1], [0], [0], [1], [0, 0, 1, 1], [], []>} : vector<16x32xf32>, vector<32x128xf32>, vector<16x128xf32> -> vector<16x128xf32>
    %c0_6 = arith.constant 0 : index
    %c0_7 = arith.constant 0 : index
    %10 = vector.load %arg4[%c0_6, %c0_7] : memref<1x128xf32, #tpu.memory_space<vmem>>, vector<1x128xf32>
    %11 = vector.broadcast %10 : vector<1x128xf32> to vector<16x128xf32>
    %12 = arith.addf %9, %11 : vector<16x128xf32>
    %c0_8 = arith.constant 0 : index
    %c0_9 = arith.constant 0 : index
    %13 = vector.load %arg3[%c0_8, %c0_9] : memref<32x128xf32, #tpu.memory_space<vmem>>, vector<32x128xf32>
    %c0_10 = arith.constant 0 : index
    %c0_11 = arith.constant 0 : index
    %14 = vector.load %arg5[%c0_10, %c0_11] : memref<32x128xf32, #tpu.memory_space<vmem>>, vector<32x128xf32>
    %c0_12 = arith.constant 0 : index
    %c0_13 = arith.constant 0 : index
    %15 = vector.load %arg6[%c0_12, %c0_13] : memref<32x128xf32, #tpu.memory_space<vmem>>, vector<32x128xf32>
    %c0_14 = arith.constant 0 : index
    %c0_15 = arith.constant 0 : index
    %16 = vector.load %arg7[%c0_14, %c0_15] : memref<1x128xf32, #tpu.memory_space<vmem>>, vector<1x128xf32>
    %c0_16 = arith.constant 0 : index
    %c0_17 = arith.constant 0 : index
    %c0_18 = arith.constant 0 : index
    %17 = vector.load %arg10[%c0_16, %c0_17, %c0_18] : memref<2x2x32xf32, #tpu.memory_space<vmem>>, vector<1x2x32xf32>
    %18 = vector.shape_cast %17 : vector<1x2x32xf32> to vector<2x32xf32>
    %c1 = arith.constant 1 : index
    %c0_19 = arith.constant 0 : index
    %c0_20 = arith.constant 0 : index
    %19 = vector.load %arg10[%c1, %c0_19, %c0_20] : memref<2x2x32xf32, #tpu.memory_space<vmem>>, vector<1x2x32xf32>
    %20 = vector.shape_cast %19 : vector<1x2x32xf32> to vector<2x32xf32>
    %c0_21 = arith.constant 0 : index
    %c0_22 = arith.constant 0 : index
    %c0_23 = arith.constant 0 : index
    %21 = vector.load %arg11[%c0_21, %c0_22, %c0_23] : memref<2x2x32xf32, #tpu.memory_space<vmem>>, vector<1x2x32xf32>
    %22 = vector.shape_cast %21 : vector<1x2x32xf32> to vector<2x32xf32>
    %c1_24 = arith.constant 1 : index
    %c0_25 = arith.constant 0 : index
    %c0_26 = arith.constant 0 : index
    %23 = vector.load %arg11[%c1_24, %c0_25, %c0_26] : memref<2x2x32xf32, #tpu.memory_space<vmem>>, vector<1x2x32xf32>
    %24 = vector.shape_cast %23 : vector<1x2x32xf32> to vector<2x32xf32>
    %25 = vector.extract_strided_slice %12 {offsets = [0, 0], sizes = [2, 128], strides = [1, 1]} : vector<16x128xf32> to vector<2x128xf32>
    %cst_27 = arith.constant dense<0.000000e+00> : vector<2x128xf32>
    %26 = tpu.matmul %18, %13, %cst_27 {dimension_numbers = #tpu.dot_dimension_numbers<[1], [0], [0], [1], [0, 0, 1, 1], [], []>} : vector<2x32xf32>, vector<32x128xf32>, vector<2x128xf32> -> vector<2x128xf32>
    %27 = arith.addf %25, %26 : vector<2x128xf32>
    %28 = vector.extract_strided_slice %27 {offsets = [0, 0], sizes = [2, 32], strides = [1, 1]} : vector<2x128xf32> to vector<2x32xf32>
    %29 = arith.negf %28 : vector<2x32xf32>
    %30 = math.exp %29 : vector<2x32xf32>
    %cst_28 = arith.constant 1.000000e+00 : f32
    %31 = vector.broadcast %cst_28 : f32 to vector<2x32xf32>
    %32 = arith.addf %31, %30 : vector<2x32xf32>
    %33 = arith.divf %31, %32 : vector<2x32xf32>
    %34 = vector.extract_strided_slice %27 {offsets = [0, 32], sizes = [2, 32], strides = [1, 1]} : vector<2x128xf32> to vector<2x32xf32>
    %35 = arith.negf %34 : vector<2x32xf32>
    %36 = math.exp %35 : vector<2x32xf32>
    %cst_29 = arith.constant 1.000000e+00 : f32
    %37 = vector.broadcast %cst_29 : f32 to vector<2x32xf32>
    %38 = arith.addf %37, %36 : vector<2x32xf32>
    %39 = arith.divf %37, %38 : vector<2x32xf32>
    %40 = vector.extract_strided_slice %27 {offsets = [0, 64], sizes = [2, 32], strides = [1, 1]} : vector<2x128xf32> to vector<2x32xf32>
    %41 = math.tanh %40 : vector<2x32xf32>
    %42 = vector.extract_strided_slice %27 {offsets = [0, 96], sizes = [2, 32], strides = [1, 1]} : vector<2x128xf32> to vector<2x32xf32>
    %43 = arith.negf %42 : vector<2x32xf32>
    %44 = math.exp %43 : vector<2x32xf32>
    %cst_30 = arith.constant 1.000000e+00 : f32
    %45 = vector.broadcast %cst_30 : f32 to vector<2x32xf32>
    %46 = arith.addf %45, %44 : vector<2x32xf32>
    %47 = arith.divf %45, %46 : vector<2x32xf32>
    %48 = arith.mulf %39, %22 : vector<2x32xf32>
    %49 = arith.mulf %33, %41 : vector<2x32xf32>
    %50 = arith.addf %48, %49 : vector<2x32xf32>
    %51 = math.tanh %50 : vector<2x32xf32>
    %52 = arith.mulf %47, %51 : vector<2x32xf32>
    %cst_31 = arith.constant dense<0.000000e+00> : vector<2x128xf32>
    %53 = tpu.matmul %52, %14, %cst_31 {dimension_numbers = #tpu.dot_dimension_numbers<[1], [0], [0], [1], [0, 0, 1, 1], [], []>} : vector<2x32xf32>, vector<32x128xf32>, vector<2x128xf32> -> vector<2x128xf32>
    %cst_32 = arith.constant dense<0.000000e+00> : vector<2x128xf32>
    %54 = tpu.matmul %20, %15, %cst_32 {dimension_numbers = #tpu.dot_dimension_numbers<[1], [0], [0], [1], [0, 0, 1, 1], [], []>} : vector<2x32xf32>, vector<32x128xf32>, vector<2x128xf32> -> vector<2x128xf32>
    %55 = arith.addf %53, %54 : vector<2x128xf32>
    %56 = vector.broadcast %16 : vector<1x128xf32> to vector<2x128xf32>
    %57 = arith.addf %55, %56 : vector<2x128xf32>
    %58 = vector.extract_strided_slice %57 {offsets = [0, 0], sizes = [2, 32], strides = [1, 1]} : vector<2x128xf32> to vector<2x32xf32>
    %59 = arith.negf %58 : vector<2x32xf32>
    %60 = math.exp %59 : vector<2x32xf32>
    %cst_33 = arith.constant 1.000000e+00 : f32
    %61 = vector.broadcast %cst_33 : f32 to vector<2x32xf32>
    %62 = arith.addf %61, %60 : vector<2x32xf32>
    %63 = arith.divf %61, %62 : vector<2x32xf32>
    %64 = vector.extract_strided_slice %57 {offsets = [0, 32], sizes = [2, 32], strides = [1, 1]} : vector<2x128xf32> to vector<2x32xf32>
    %65 = arith.negf %64 : vector<2x32xf32>
    %66 = math.exp %65 : vector<2x32xf32>
    %cst_34 = arith.constant 1.000000e+00 : f32
    %67 = vector.broadcast %cst_34 : f32 to vector<2x32xf32>
    %68 = arith.addf %67, %66 : vector<2x32xf32>
    %69 = arith.divf %67, %68 : vector<2x32xf32>
    %70 = vector.extract_strided_slice %57 {offsets = [0, 64], sizes = [2, 32], strides = [1, 1]} : vector<2x128xf32> to vector<2x32xf32>
    %71 = math.tanh %70 : vector<2x32xf32>
    %72 = vector.extract_strided_slice %57 {offsets = [0, 96], sizes = [2, 32], strides = [1, 1]} : vector<2x128xf32> to vector<2x32xf32>
    %73 = arith.negf %72 : vector<2x32xf32>
    %74 = math.exp %73 : vector<2x32xf32>
    %cst_35 = arith.constant 1.000000e+00 : f32
    %75 = vector.broadcast %cst_35 : f32 to vector<2x32xf32>
    %76 = arith.addf %75, %74 : vector<2x32xf32>
    %77 = arith.divf %75, %76 : vector<2x32xf32>
    %78 = arith.mulf %69, %24 : vector<2x32xf32>
    %79 = arith.mulf %63, %71 : vector<2x32xf32>
    %80 = arith.addf %78, %79 : vector<2x32xf32>
    %81 = math.tanh %80 : vector<2x32xf32>
    %82 = arith.mulf %77, %81 : vector<2x32xf32>
    %83 = vector.extract_strided_slice %12 {offsets = [2, 0], sizes = [2, 128], strides = [1, 1]} : vector<16x128xf32> to vector<2x128xf32>
    %cst_36 = arith.constant dense<0.000000e+00> : vector<2x128xf32>
    %84 = tpu.matmul %52, %13, %cst_36 {dimension_numbers = #tpu.dot_dimension_numbers<[1], [0], [0], [1], [0, 0, 1, 1], [], []>} : vector<2x32xf32>, vector<32x128xf32>, vector<2x128xf32> -> vector<2x128xf32>
    %85 = arith.addf %83, %84 : vector<2x128xf32>
    %86 = vector.extract_strided_slice %85 {offsets = [0, 0], sizes = [2, 32], strides = [1, 1]} : vector<2x128xf32> to vector<2x32xf32>
    %87 = arith.negf %86 : vector<2x32xf32>
    %88 = math.exp %87 : vector<2x32xf32>
    %cst_37 = arith.constant 1.000000e+00 : f32
    %89 = vector.broadcast %cst_37 : f32 to vector<2x32xf32>
    %90 = arith.addf %89, %88 : vector<2x32xf32>
    %91 = arith.divf %89, %90 : vector<2x32xf32>
    %92 = vector.extract_strided_slice %85 {offsets = [0, 32], sizes = [2, 32], strides = [1, 1]} : vector<2x128xf32> to vector<2x32xf32>
    %93 = arith.negf %92 : vector<2x32xf32>
    %94 = math.exp %93 : vector<2x32xf32>
    %cst_38 = arith.constant 1.000000e+00 : f32
    %95 = vector.broadcast %cst_38 : f32 to vector<2x32xf32>
    %96 = arith.addf %95, %94 : vector<2x32xf32>
    %97 = arith.divf %95, %96 : vector<2x32xf32>
    %98 = vector.extract_strided_slice %85 {offsets = [0, 64], sizes = [2, 32], strides = [1, 1]} : vector<2x128xf32> to vector<2x32xf32>
    %99 = math.tanh %98 : vector<2x32xf32>
    %100 = vector.extract_strided_slice %85 {offsets = [0, 96], sizes = [2, 32], strides = [1, 1]} : vector<2x128xf32> to vector<2x32xf32>
    %101 = arith.negf %100 : vector<2x32xf32>
    %102 = math.exp %101 : vector<2x32xf32>
    %cst_39 = arith.constant 1.000000e+00 : f32
    %103 = vector.broadcast %cst_39 : f32 to vector<2x32xf32>
    %104 = arith.addf %103, %102 : vector<2x32xf32>
    %105 = arith.divf %103, %104 : vector<2x32xf32>
    %106 = arith.mulf %97, %50 : vector<2x32xf32>
    %107 = arith.mulf %91, %99 : vector<2x32xf32>
    %108 = arith.addf %106, %107 : vector<2x32xf32>
    %109 = math.tanh %108 : vector<2x32xf32>
    %110 = arith.mulf %105, %109 : vector<2x32xf32>
    %cst_40 = arith.constant dense<0.000000e+00> : vector<2x128xf32>
    %111 = tpu.matmul %110, %14, %cst_40 {dimension_numbers = #tpu.dot_dimension_numbers<[1], [0], [0], [1], [0, 0, 1, 1], [], []>} : vector<2x32xf32>, vector<32x128xf32>, vector<2x128xf32> -> vector<2x128xf32>
    %cst_41 = arith.constant dense<0.000000e+00> : vector<2x128xf32>
    %112 = tpu.matmul %82, %15, %cst_41 {dimension_numbers = #tpu.dot_dimension_numbers<[1], [0], [0], [1], [0, 0, 1, 1], [], []>} : vector<2x32xf32>, vector<32x128xf32>, vector<2x128xf32> -> vector<2x128xf32>
    %113 = arith.addf %111, %112 : vector<2x128xf32>
    %114 = vector.broadcast %16 : vector<1x128xf32> to vector<2x128xf32>
    %115 = arith.addf %113, %114 : vector<2x128xf32>
    %116 = vector.extract_strided_slice %115 {offsets = [0, 0], sizes = [2, 32], strides = [1, 1]} : vector<2x128xf32> to vector<2x32xf32>
    %117 = arith.negf %116 : vector<2x32xf32>
    %118 = math.exp %117 : vector<2x32xf32>
    %cst_42 = arith.constant 1.000000e+00 : f32
    %119 = vector.broadcast %cst_42 : f32 to vector<2x32xf32>
    %120 = arith.addf %119, %118 : vector<2x32xf32>
    %121 = arith.divf %119, %120 : vector<2x32xf32>
    %122 = vector.extract_strided_slice %115 {offsets = [0, 32], sizes = [2, 32], strides = [1, 1]} : vector<2x128xf32> to vector<2x32xf32>
    %123 = arith.negf %122 : vector<2x32xf32>
    %124 = math.exp %123 : vector<2x32xf32>
    %cst_43 = arith.constant 1.000000e+00 : f32
    %125 = vector.broadcast %cst_43 : f32 to vector<2x32xf32>
    %126 = arith.addf %125, %124 : vector<2x32xf32>
    %127 = arith.divf %125, %126 : vector<2x32xf32>
    %128 = vector.extract_strided_slice %115 {offsets = [0, 64], sizes = [2, 32], strides = [1, 1]} : vector<2x128xf32> to vector<2x32xf32>
    %129 = math.tanh %128 : vector<2x32xf32>
    %130 = vector.extract_strided_slice %115 {offsets = [0, 96], sizes = [2, 32], strides = [1, 1]} : vector<2x128xf32> to vector<2x32xf32>
    %131 = arith.negf %130 : vector<2x32xf32>
    %132 = math.exp %131 : vector<2x32xf32>
    %cst_44 = arith.constant 1.000000e+00 : f32
    %133 = vector.broadcast %cst_44 : f32 to vector<2x32xf32>
    %134 = arith.addf %133, %132 : vector<2x32xf32>
    %135 = arith.divf %133, %134 : vector<2x32xf32>
    %136 = arith.mulf %127, %80 : vector<2x32xf32>
    %137 = arith.mulf %121, %129 : vector<2x32xf32>
    %138 = arith.addf %136, %137 : vector<2x32xf32>
    %139 = math.tanh %138 : vector<2x32xf32>
    %140 = arith.mulf %135, %139 : vector<2x32xf32>
    %141 = vector.extract_strided_slice %12 {offsets = [4, 0], sizes = [2, 128], strides = [1, 1]} : vector<16x128xf32> to vector<2x128xf32>
    %cst_45 = arith.constant dense<0.000000e+00> : vector<2x128xf32>
    %142 = tpu.matmul %110, %13, %cst_45 {dimension_numbers = #tpu.dot_dimension_numbers<[1], [0], [0], [1], [0, 0, 1, 1], [], []>} : vector<2x32xf32>, vector<32x128xf32>, vector<2x128xf32> -> vector<2x128xf32>
    %143 = arith.addf %141, %142 : vector<2x128xf32>
    %144 = vector.extract_strided_slice %143 {offsets = [0, 0], sizes = [2, 32], strides = [1, 1]} : vector<2x128xf32> to vector<2x32xf32>
    %145 = arith.negf %144 : vector<2x32xf32>
    %146 = math.exp %145 : vector<2x32xf32>
    %cst_46 = arith.constant 1.000000e+00 : f32
    %147 = vector.broadcast %cst_46 : f32 to vector<2x32xf32>
    %148 = arith.addf %147, %146 : vector<2x32xf32>
    %149 = arith.divf %147, %148 : vector<2x32xf32>
    %150 = vector.extract_strided_slice %143 {offsets = [0, 32], sizes = [2, 32], strides = [1, 1]} : vector<2x128xf32> to vector<2x32xf32>
    %151 = arith.negf %150 : vector<2x32xf32>
    %152 = math.exp %151 : vector<2x32xf32>
    %cst_47 = arith.constant 1.000000e+00 : f32
    %153 = vector.broadcast %cst_47 : f32 to vector<2x32xf32>
    %154 = arith.addf %153, %152 : vector<2x32xf32>
    %155 = arith.divf %153, %154 : vector<2x32xf32>
    %156 = vector.extract_strided_slice %143 {offsets = [0, 64], sizes = [2, 32], strides = [1, 1]} : vector<2x128xf32> to vector<2x32xf32>
    %157 = math.tanh %156 : vector<2x32xf32>
    %158 = vector.extract_strided_slice %143 {offsets = [0, 96], sizes = [2, 32], strides = [1, 1]} : vector<2x128xf32> to vector<2x32xf32>
    %159 = arith.negf %158 : vector<2x32xf32>
    %160 = math.exp %159 : vector<2x32xf32>
    %cst_48 = arith.constant 1.000000e+00 : f32
    %161 = vector.broadcast %cst_48 : f32 to vector<2x32xf32>
    %162 = arith.addf %161, %160 : vector<2x32xf32>
    %163 = arith.divf %161, %162 : vector<2x32xf32>
    %164 = arith.mulf %155, %108 : vector<2x32xf32>
    %165 = arith.mulf %149, %157 : vector<2x32xf32>
    %166 = arith.addf %164, %165 : vector<2x32xf32>
    %167 = math.tanh %166 : vector<2x32xf32>
    %168 = arith.mulf %163, %167 : vector<2x32xf32>
    %cst_49 = arith.constant dense<0.000000e+00> : vector<2x128xf32>
    %169 = tpu.matmul %168, %14, %cst_49 {dimension_numbers = #tpu.dot_dimension_numbers<[1], [0], [0], [1], [0, 0, 1, 1], [], []>} : vector<2x32xf32>, vector<32x128xf32>, vector<2x128xf32> -> vector<2x128xf32>
    %cst_50 = arith.constant dense<0.000000e+00> : vector<2x128xf32>
    %170 = tpu.matmul %140, %15, %cst_50 {dimension_numbers = #tpu.dot_dimension_numbers<[1], [0], [0], [1], [0, 0, 1, 1], [], []>} : vector<2x32xf32>, vector<32x128xf32>, vector<2x128xf32> -> vector<2x128xf32>
    %171 = arith.addf %169, %170 : vector<2x128xf32>
    %172 = vector.broadcast %16 : vector<1x128xf32> to vector<2x128xf32>
    %173 = arith.addf %171, %172 : vector<2x128xf32>
    %174 = vector.extract_strided_slice %173 {offsets = [0, 0], sizes = [2, 32], strides = [1, 1]} : vector<2x128xf32> to vector<2x32xf32>
    %175 = arith.negf %174 : vector<2x32xf32>
    %176 = math.exp %175 : vector<2x32xf32>
    %cst_51 = arith.constant 1.000000e+00 : f32
    %177 = vector.broadcast %cst_51 : f32 to vector<2x32xf32>
    %178 = arith.addf %177, %176 : vector<2x32xf32>
    %179 = arith.divf %177, %178 : vector<2x32xf32>
    %180 = vector.extract_strided_slice %173 {offsets = [0, 32], sizes = [2, 32], strides = [1, 1]} : vector<2x128xf32> to vector<2x32xf32>
    %181 = arith.negf %180 : vector<2x32xf32>
    %182 = math.exp %181 : vector<2x32xf32>
    %cst_52 = arith.constant 1.000000e+00 : f32
    %183 = vector.broadcast %cst_52 : f32 to vector<2x32xf32>
    %184 = arith.addf %183, %182 : vector<2x32xf32>
    %185 = arith.divf %183, %184 : vector<2x32xf32>
    %186 = vector.extract_strided_slice %173 {offsets = [0, 64], sizes = [2, 32], strides = [1, 1]} : vector<2x128xf32> to vector<2x32xf32>
    %187 = math.tanh %186 : vector<2x32xf32>
    %188 = vector.extract_strided_slice %173 {offsets = [0, 96], sizes = [2, 32], strides = [1, 1]} : vector<2x128xf32> to vector<2x32xf32>
    %189 = arith.negf %188 : vector<2x32xf32>
    %190 = math.exp %189 : vector<2x32xf32>
    %cst_53 = arith.constant 1.000000e+00 : f32
    %191 = vector.broadcast %cst_53 : f32 to vector<2x32xf32>
    %192 = arith.addf %191, %190 : vector<2x32xf32>
    %193 = arith.divf %191, %192 : vector<2x32xf32>
    %194 = arith.mulf %185, %138 : vector<2x32xf32>
    %195 = arith.mulf %179, %187 : vector<2x32xf32>
    %196 = arith.addf %194, %195 : vector<2x32xf32>
    %197 = math.tanh %196 : vector<2x32xf32>
    %198 = arith.mulf %193, %197 : vector<2x32xf32>
    %199 = vector.extract_strided_slice %12 {offsets = [6, 0], sizes = [2, 128], strides = [1, 1]} : vector<16x128xf32> to vector<2x128xf32>
    %cst_54 = arith.constant dense<0.000000e+00> : vector<2x128xf32>
    %200 = tpu.matmul %168, %13, %cst_54 {dimension_numbers = #tpu.dot_dimension_numbers<[1], [0], [0], [1], [0, 0, 1, 1], [], []>} : vector<2x32xf32>, vector<32x128xf32>, vector<2x128xf32> -> vector<2x128xf32>
    %201 = arith.addf %199, %200 : vector<2x128xf32>
    %202 = vector.extract_strided_slice %201 {offsets = [0, 0], sizes = [2, 32], strides = [1, 1]} : vector<2x128xf32> to vector<2x32xf32>
    %203 = arith.negf %202 : vector<2x32xf32>
    %204 = math.exp %203 : vector<2x32xf32>
    %cst_55 = arith.constant 1.000000e+00 : f32
    %205 = vector.broadcast %cst_55 : f32 to vector<2x32xf32>
    %206 = arith.addf %205, %204 : vector<2x32xf32>
    %207 = arith.divf %205, %206 : vector<2x32xf32>
    %208 = vector.extract_strided_slice %201 {offsets = [0, 32], sizes = [2, 32], strides = [1, 1]} : vector<2x128xf32> to vector<2x32xf32>
    %209 = arith.negf %208 : vector<2x32xf32>
    %210 = math.exp %209 : vector<2x32xf32>
    %cst_56 = arith.constant 1.000000e+00 : f32
    %211 = vector.broadcast %cst_56 : f32 to vector<2x32xf32>
    %212 = arith.addf %211, %210 : vector<2x32xf32>
    %213 = arith.divf %211, %212 : vector<2x32xf32>
    %214 = vector.extract_strided_slice %201 {offsets = [0, 64], sizes = [2, 32], strides = [1, 1]} : vector<2x128xf32> to vector<2x32xf32>
    %215 = math.tanh %214 : vector<2x32xf32>
    %216 = vector.extract_strided_slice %201 {offsets = [0, 96], sizes = [2, 32], strides = [1, 1]} : vector<2x128xf32> to vector<2x32xf32>
    %217 = arith.negf %216 : vector<2x32xf32>
    %218 = math.exp %217 : vector<2x32xf32>
    %cst_57 = arith.constant 1.000000e+00 : f32
    %219 = vector.broadcast %cst_57 : f32 to vector<2x32xf32>
    %220 = arith.addf %219, %218 : vector<2x32xf32>
    %221 = arith.divf %219, %220 : vector<2x32xf32>
    %222 = arith.mulf %213, %166 : vector<2x32xf32>
    %223 = arith.mulf %207, %215 : vector<2x32xf32>
    %224 = arith.addf %222, %223 : vector<2x32xf32>
    %225 = math.tanh %224 : vector<2x32xf32>
    %226 = arith.mulf %221, %225 : vector<2x32xf32>
    %cst_58 = arith.constant dense<0.000000e+00> : vector<2x128xf32>
    %227 = tpu.matmul %226, %14, %cst_58 {dimension_numbers = #tpu.dot_dimension_numbers<[1], [0], [0], [1], [0, 0, 1, 1], [], []>} : vector<2x32xf32>, vector<32x128xf32>, vector<2x128xf32> -> vector<2x128xf32>
    %cst_59 = arith.constant dense<0.000000e+00> : vector<2x128xf32>
    %228 = tpu.matmul %198, %15, %cst_59 {dimension_numbers = #tpu.dot_dimension_numbers<[1], [0], [0], [1], [0, 0, 1, 1], [], []>} : vector<2x32xf32>, vector<32x128xf32>, vector<2x128xf32> -> vector<2x128xf32>
    %229 = arith.addf %227, %228 : vector<2x128xf32>
    %230 = vector.broadcast %16 : vector<1x128xf32> to vector<2x128xf32>
    %231 = arith.addf %229, %230 : vector<2x128xf32>
    %232 = vector.extract_strided_slice %231 {offsets = [0, 0], sizes = [2, 32], strides = [1, 1]} : vector<2x128xf32> to vector<2x32xf32>
    %233 = arith.negf %232 : vector<2x32xf32>
    %234 = math.exp %233 : vector<2x32xf32>
    %cst_60 = arith.constant 1.000000e+00 : f32
    %235 = vector.broadcast %cst_60 : f32 to vector<2x32xf32>
    %236 = arith.addf %235, %234 : vector<2x32xf32>
    %237 = arith.divf %235, %236 : vector<2x32xf32>
    %238 = vector.extract_strided_slice %231 {offsets = [0, 32], sizes = [2, 32], strides = [1, 1]} : vector<2x128xf32> to vector<2x32xf32>
    %239 = arith.negf %238 : vector<2x32xf32>
    %240 = math.exp %239 : vector<2x32xf32>
    %cst_61 = arith.constant 1.000000e+00 : f32
    %241 = vector.broadcast %cst_61 : f32 to vector<2x32xf32>
    %242 = arith.addf %241, %240 : vector<2x32xf32>
    %243 = arith.divf %241, %242 : vector<2x32xf32>
    %244 = vector.extract_strided_slice %231 {offsets = [0, 64], sizes = [2, 32], strides = [1, 1]} : vector<2x128xf32> to vector<2x32xf32>
    %245 = math.tanh %244 : vector<2x32xf32>
    %246 = vector.extract_strided_slice %231 {offsets = [0, 96], sizes = [2, 32], strides = [1, 1]} : vector<2x128xf32> to vector<2x32xf32>
    %247 = arith.negf %246 : vector<2x32xf32>
    %248 = math.exp %247 : vector<2x32xf32>
    %cst_62 = arith.constant 1.000000e+00 : f32
    %249 = vector.broadcast %cst_62 : f32 to vector<2x32xf32>
    %250 = arith.addf %249, %248 : vector<2x32xf32>
    %251 = arith.divf %249, %250 : vector<2x32xf32>
    %252 = arith.mulf %243, %196 : vector<2x32xf32>
    %253 = arith.mulf %237, %245 : vector<2x32xf32>
    %254 = arith.addf %252, %253 : vector<2x32xf32>
    %255 = math.tanh %254 : vector<2x32xf32>
    %256 = arith.mulf %251, %255 : vector<2x32xf32>
    %257 = vector.extract_strided_slice %12 {offsets = [8, 0], sizes = [2, 128], strides = [1, 1]} : vector<16x128xf32> to vector<2x128xf32>
    %cst_63 = arith.constant dense<0.000000e+00> : vector<2x128xf32>
    %258 = tpu.matmul %226, %13, %cst_63 {dimension_numbers = #tpu.dot_dimension_numbers<[1], [0], [0], [1], [0, 0, 1, 1], [], []>} : vector<2x32xf32>, vector<32x128xf32>, vector<2x128xf32> -> vector<2x128xf32>
    %259 = arith.addf %257, %258 : vector<2x128xf32>
    %260 = vector.extract_strided_slice %259 {offsets = [0, 0], sizes = [2, 32], strides = [1, 1]} : vector<2x128xf32> to vector<2x32xf32>
    %261 = arith.negf %260 : vector<2x32xf32>
    %262 = math.exp %261 : vector<2x32xf32>
    %cst_64 = arith.constant 1.000000e+00 : f32
    %263 = vector.broadcast %cst_64 : f32 to vector<2x32xf32>
    %264 = arith.addf %263, %262 : vector<2x32xf32>
    %265 = arith.divf %263, %264 : vector<2x32xf32>
    %266 = vector.extract_strided_slice %259 {offsets = [0, 32], sizes = [2, 32], strides = [1, 1]} : vector<2x128xf32> to vector<2x32xf32>
    %267 = arith.negf %266 : vector<2x32xf32>
    %268 = math.exp %267 : vector<2x32xf32>
    %cst_65 = arith.constant 1.000000e+00 : f32
    %269 = vector.broadcast %cst_65 : f32 to vector<2x32xf32>
    %270 = arith.addf %269, %268 : vector<2x32xf32>
    %271 = arith.divf %269, %270 : vector<2x32xf32>
    %272 = vector.extract_strided_slice %259 {offsets = [0, 64], sizes = [2, 32], strides = [1, 1]} : vector<2x128xf32> to vector<2x32xf32>
    %273 = math.tanh %272 : vector<2x32xf32>
    %274 = vector.extract_strided_slice %259 {offsets = [0, 96], sizes = [2, 32], strides = [1, 1]} : vector<2x128xf32> to vector<2x32xf32>
    %275 = arith.negf %274 : vector<2x32xf32>
    %276 = math.exp %275 : vector<2x32xf32>
    %cst_66 = arith.constant 1.000000e+00 : f32
    %277 = vector.broadcast %cst_66 : f32 to vector<2x32xf32>
    %278 = arith.addf %277, %276 : vector<2x32xf32>
    %279 = arith.divf %277, %278 : vector<2x32xf32>
    %280 = arith.mulf %271, %224 : vector<2x32xf32>
    %281 = arith.mulf %265, %273 : vector<2x32xf32>
    %282 = arith.addf %280, %281 : vector<2x32xf32>
    %283 = math.tanh %282 : vector<2x32xf32>
    %284 = arith.mulf %279, %283 : vector<2x32xf32>
    %cst_67 = arith.constant dense<0.000000e+00> : vector<2x128xf32>
    %285 = tpu.matmul %284, %14, %cst_67 {dimension_numbers = #tpu.dot_dimension_numbers<[1], [0], [0], [1], [0, 0, 1, 1], [], []>} : vector<2x32xf32>, vector<32x128xf32>, vector<2x128xf32> -> vector<2x128xf32>
    %cst_68 = arith.constant dense<0.000000e+00> : vector<2x128xf32>
    %286 = tpu.matmul %256, %15, %cst_68 {dimension_numbers = #tpu.dot_dimension_numbers<[1], [0], [0], [1], [0, 0, 1, 1], [], []>} : vector<2x32xf32>, vector<32x128xf32>, vector<2x128xf32> -> vector<2x128xf32>
    %287 = arith.addf %285, %286 : vector<2x128xf32>
    %288 = vector.broadcast %16 : vector<1x128xf32> to vector<2x128xf32>
    %289 = arith.addf %287, %288 : vector<2x128xf32>
    %290 = vector.extract_strided_slice %289 {offsets = [0, 0], sizes = [2, 32], strides = [1, 1]} : vector<2x128xf32> to vector<2x32xf32>
    %291 = arith.negf %290 : vector<2x32xf32>
    %292 = math.exp %291 : vector<2x32xf32>
    %cst_69 = arith.constant 1.000000e+00 : f32
    %293 = vector.broadcast %cst_69 : f32 to vector<2x32xf32>
    %294 = arith.addf %293, %292 : vector<2x32xf32>
    %295 = arith.divf %293, %294 : vector<2x32xf32>
    %296 = vector.extract_strided_slice %289 {offsets = [0, 32], sizes = [2, 32], strides = [1, 1]} : vector<2x128xf32> to vector<2x32xf32>
    %297 = arith.negf %296 : vector<2x32xf32>
    %298 = math.exp %297 : vector<2x32xf32>
    %cst_70 = arith.constant 1.000000e+00 : f32
    %299 = vector.broadcast %cst_70 : f32 to vector<2x32xf32>
    %300 = arith.addf %299, %298 : vector<2x32xf32>
    %301 = arith.divf %299, %300 : vector<2x32xf32>
    %302 = vector.extract_strided_slice %289 {offsets = [0, 64], sizes = [2, 32], strides = [1, 1]} : vector<2x128xf32> to vector<2x32xf32>
    %303 = math.tanh %302 : vector<2x32xf32>
    %304 = vector.extract_strided_slice %289 {offsets = [0, 96], sizes = [2, 32], strides = [1, 1]} : vector<2x128xf32> to vector<2x32xf32>
    %305 = arith.negf %304 : vector<2x32xf32>
    %306 = math.exp %305 : vector<2x32xf32>
    %cst_71 = arith.constant 1.000000e+00 : f32
    %307 = vector.broadcast %cst_71 : f32 to vector<2x32xf32>
    %308 = arith.addf %307, %306 : vector<2x32xf32>
    %309 = arith.divf %307, %308 : vector<2x32xf32>
    %310 = arith.mulf %301, %254 : vector<2x32xf32>
    %311 = arith.mulf %295, %303 : vector<2x32xf32>
    %312 = arith.addf %310, %311 : vector<2x32xf32>
    %313 = math.tanh %312 : vector<2x32xf32>
    %314 = arith.mulf %309, %313 : vector<2x32xf32>
    %315 = vector.extract_strided_slice %12 {offsets = [10, 0], sizes = [2, 128], strides = [1, 1]} : vector<16x128xf32> to vector<2x128xf32>
    %cst_72 = arith.constant dense<0.000000e+00> : vector<2x128xf32>
    %316 = tpu.matmul %284, %13, %cst_72 {dimension_numbers = #tpu.dot_dimension_numbers<[1], [0], [0], [1], [0, 0, 1, 1], [], []>} : vector<2x32xf32>, vector<32x128xf32>, vector<2x128xf32> -> vector<2x128xf32>
    %317 = arith.addf %315, %316 : vector<2x128xf32>
    %318 = vector.extract_strided_slice %317 {offsets = [0, 0], sizes = [2, 32], strides = [1, 1]} : vector<2x128xf32> to vector<2x32xf32>
    %319 = arith.negf %318 : vector<2x32xf32>
    %320 = math.exp %319 : vector<2x32xf32>
    %cst_73 = arith.constant 1.000000e+00 : f32
    %321 = vector.broadcast %cst_73 : f32 to vector<2x32xf32>
    %322 = arith.addf %321, %320 : vector<2x32xf32>
    %323 = arith.divf %321, %322 : vector<2x32xf32>
    %324 = vector.extract_strided_slice %317 {offsets = [0, 32], sizes = [2, 32], strides = [1, 1]} : vector<2x128xf32> to vector<2x32xf32>
    %325 = arith.negf %324 : vector<2x32xf32>
    %326 = math.exp %325 : vector<2x32xf32>
    %cst_74 = arith.constant 1.000000e+00 : f32
    %327 = vector.broadcast %cst_74 : f32 to vector<2x32xf32>
    %328 = arith.addf %327, %326 : vector<2x32xf32>
    %329 = arith.divf %327, %328 : vector<2x32xf32>
    %330 = vector.extract_strided_slice %317 {offsets = [0, 64], sizes = [2, 32], strides = [1, 1]} : vector<2x128xf32> to vector<2x32xf32>
    %331 = math.tanh %330 : vector<2x32xf32>
    %332 = vector.extract_strided_slice %317 {offsets = [0, 96], sizes = [2, 32], strides = [1, 1]} : vector<2x128xf32> to vector<2x32xf32>
    %333 = arith.negf %332 : vector<2x32xf32>
    %334 = math.exp %333 : vector<2x32xf32>
    %cst_75 = arith.constant 1.000000e+00 : f32
    %335 = vector.broadcast %cst_75 : f32 to vector<2x32xf32>
    %336 = arith.addf %335, %334 : vector<2x32xf32>
    %337 = arith.divf %335, %336 : vector<2x32xf32>
    %338 = arith.mulf %329, %282 : vector<2x32xf32>
    %339 = arith.mulf %323, %331 : vector<2x32xf32>
    %340 = arith.addf %338, %339 : vector<2x32xf32>
    %341 = math.tanh %340 : vector<2x32xf32>
    %342 = arith.mulf %337, %341 : vector<2x32xf32>
    %cst_76 = arith.constant dense<0.000000e+00> : vector<2x128xf32>
    %343 = tpu.matmul %342, %14, %cst_76 {dimension_numbers = #tpu.dot_dimension_numbers<[1], [0], [0], [1], [0, 0, 1, 1], [], []>} : vector<2x32xf32>, vector<32x128xf32>, vector<2x128xf32> -> vector<2x128xf32>
    %cst_77 = arith.constant dense<0.000000e+00> : vector<2x128xf32>
    %344 = tpu.matmul %314, %15, %cst_77 {dimension_numbers = #tpu.dot_dimension_numbers<[1], [0], [0], [1], [0, 0, 1, 1], [], []>} : vector<2x32xf32>, vector<32x128xf32>, vector<2x128xf32> -> vector<2x128xf32>
    %345 = arith.addf %343, %344 : vector<2x128xf32>
    %346 = vector.broadcast %16 : vector<1x128xf32> to vector<2x128xf32>
    %347 = arith.addf %345, %346 : vector<2x128xf32>
    %348 = vector.extract_strided_slice %347 {offsets = [0, 0], sizes = [2, 32], strides = [1, 1]} : vector<2x128xf32> to vector<2x32xf32>
    %349 = arith.negf %348 : vector<2x32xf32>
    %350 = math.exp %349 : vector<2x32xf32>
    %cst_78 = arith.constant 1.000000e+00 : f32
    %351 = vector.broadcast %cst_78 : f32 to vector<2x32xf32>
    %352 = arith.addf %351, %350 : vector<2x32xf32>
    %353 = arith.divf %351, %352 : vector<2x32xf32>
    %354 = vector.extract_strided_slice %347 {offsets = [0, 32], sizes = [2, 32], strides = [1, 1]} : vector<2x128xf32> to vector<2x32xf32>
    %355 = arith.negf %354 : vector<2x32xf32>
    %356 = math.exp %355 : vector<2x32xf32>
    %cst_79 = arith.constant 1.000000e+00 : f32
    %357 = vector.broadcast %cst_79 : f32 to vector<2x32xf32>
    %358 = arith.addf %357, %356 : vector<2x32xf32>
    %359 = arith.divf %357, %358 : vector<2x32xf32>
    %360 = vector.extract_strided_slice %347 {offsets = [0, 64], sizes = [2, 32], strides = [1, 1]} : vector<2x128xf32> to vector<2x32xf32>
    %361 = math.tanh %360 : vector<2x32xf32>
    %362 = vector.extract_strided_slice %347 {offsets = [0, 96], sizes = [2, 32], strides = [1, 1]} : vector<2x128xf32> to vector<2x32xf32>
    %363 = arith.negf %362 : vector<2x32xf32>
    %364 = math.exp %363 : vector<2x32xf32>
    %cst_80 = arith.constant 1.000000e+00 : f32
    %365 = vector.broadcast %cst_80 : f32 to vector<2x32xf32>
    %366 = arith.addf %365, %364 : vector<2x32xf32>
    %367 = arith.divf %365, %366 : vector<2x32xf32>
    %368 = arith.mulf %359, %312 : vector<2x32xf32>
    %369 = arith.mulf %353, %361 : vector<2x32xf32>
    %370 = arith.addf %368, %369 : vector<2x32xf32>
    %371 = math.tanh %370 : vector<2x32xf32>
    %372 = arith.mulf %367, %371 : vector<2x32xf32>
    %373 = vector.extract_strided_slice %12 {offsets = [12, 0], sizes = [2, 128], strides = [1, 1]} : vector<16x128xf32> to vector<2x128xf32>
    %cst_81 = arith.constant dense<0.000000e+00> : vector<2x128xf32>
    %374 = tpu.matmul %342, %13, %cst_81 {dimension_numbers = #tpu.dot_dimension_numbers<[1], [0], [0], [1], [0, 0, 1, 1], [], []>} : vector<2x32xf32>, vector<32x128xf32>, vector<2x128xf32> -> vector<2x128xf32>
    %375 = arith.addf %373, %374 : vector<2x128xf32>
    %376 = vector.extract_strided_slice %375 {offsets = [0, 0], sizes = [2, 32], strides = [1, 1]} : vector<2x128xf32> to vector<2x32xf32>
    %377 = arith.negf %376 : vector<2x32xf32>
    %378 = math.exp %377 : vector<2x32xf32>
    %cst_82 = arith.constant 1.000000e+00 : f32
    %379 = vector.broadcast %cst_82 : f32 to vector<2x32xf32>
    %380 = arith.addf %379, %378 : vector<2x32xf32>
    %381 = arith.divf %379, %380 : vector<2x32xf32>
    %382 = vector.extract_strided_slice %375 {offsets = [0, 32], sizes = [2, 32], strides = [1, 1]} : vector<2x128xf32> to vector<2x32xf32>
    %383 = arith.negf %382 : vector<2x32xf32>
    %384 = math.exp %383 : vector<2x32xf32>
    %cst_83 = arith.constant 1.000000e+00 : f32
    %385 = vector.broadcast %cst_83 : f32 to vector<2x32xf32>
    %386 = arith.addf %385, %384 : vector<2x32xf32>
    %387 = arith.divf %385, %386 : vector<2x32xf32>
    %388 = vector.extract_strided_slice %375 {offsets = [0, 64], sizes = [2, 32], strides = [1, 1]} : vector<2x128xf32> to vector<2x32xf32>
    %389 = math.tanh %388 : vector<2x32xf32>
    %390 = vector.extract_strided_slice %375 {offsets = [0, 96], sizes = [2, 32], strides = [1, 1]} : vector<2x128xf32> to vector<2x32xf32>
    %391 = arith.negf %390 : vector<2x32xf32>
    %392 = math.exp %391 : vector<2x32xf32>
    %cst_84 = arith.constant 1.000000e+00 : f32
    %393 = vector.broadcast %cst_84 : f32 to vector<2x32xf32>
    %394 = arith.addf %393, %392 : vector<2x32xf32>
    %395 = arith.divf %393, %394 : vector<2x32xf32>
    %396 = arith.mulf %387, %340 : vector<2x32xf32>
    %397 = arith.mulf %381, %389 : vector<2x32xf32>
    %398 = arith.addf %396, %397 : vector<2x32xf32>
    %399 = math.tanh %398 : vector<2x32xf32>
    %400 = arith.mulf %395, %399 : vector<2x32xf32>
    %cst_85 = arith.constant dense<0.000000e+00> : vector<2x128xf32>
    %401 = tpu.matmul %400, %14, %cst_85 {dimension_numbers = #tpu.dot_dimension_numbers<[1], [0], [0], [1], [0, 0, 1, 1], [], []>} : vector<2x32xf32>, vector<32x128xf32>, vector<2x128xf32> -> vector<2x128xf32>
    %cst_86 = arith.constant dense<0.000000e+00> : vector<2x128xf32>
    %402 = tpu.matmul %372, %15, %cst_86 {dimension_numbers = #tpu.dot_dimension_numbers<[1], [0], [0], [1], [0, 0, 1, 1], [], []>} : vector<2x32xf32>, vector<32x128xf32>, vector<2x128xf32> -> vector<2x128xf32>
    %403 = arith.addf %401, %402 : vector<2x128xf32>
    %404 = vector.broadcast %16 : vector<1x128xf32> to vector<2x128xf32>
    %405 = arith.addf %403, %404 : vector<2x128xf32>
    %406 = vector.extract_strided_slice %405 {offsets = [0, 0], sizes = [2, 32], strides = [1, 1]} : vector<2x128xf32> to vector<2x32xf32>
    %407 = arith.negf %406 : vector<2x32xf32>
    %408 = math.exp %407 : vector<2x32xf32>
    %cst_87 = arith.constant 1.000000e+00 : f32
    %409 = vector.broadcast %cst_87 : f32 to vector<2x32xf32>
    %410 = arith.addf %409, %408 : vector<2x32xf32>
    %411 = arith.divf %409, %410 : vector<2x32xf32>
    %412 = vector.extract_strided_slice %405 {offsets = [0, 32], sizes = [2, 32], strides = [1, 1]} : vector<2x128xf32> to vector<2x32xf32>
    %413 = arith.negf %412 : vector<2x32xf32>
    %414 = math.exp %413 : vector<2x32xf32>
    %cst_88 = arith.constant 1.000000e+00 : f32
    %415 = vector.broadcast %cst_88 : f32 to vector<2x32xf32>
    %416 = arith.addf %415, %414 : vector<2x32xf32>
    %417 = arith.divf %415, %416 : vector<2x32xf32>
    %418 = vector.extract_strided_slice %405 {offsets = [0, 64], sizes = [2, 32], strides = [1, 1]} : vector<2x128xf32> to vector<2x32xf32>
    %419 = math.tanh %418 : vector<2x32xf32>
    %420 = vector.extract_strided_slice %405 {offsets = [0, 96], sizes = [2, 32], strides = [1, 1]} : vector<2x128xf32> to vector<2x32xf32>
    %421 = arith.negf %420 : vector<2x32xf32>
    %422 = math.exp %421 : vector<2x32xf32>
    %cst_89 = arith.constant 1.000000e+00 : f32
    %423 = vector.broadcast %cst_89 : f32 to vector<2x32xf32>
    %424 = arith.addf %423, %422 : vector<2x32xf32>
    %425 = arith.divf %423, %424 : vector<2x32xf32>
    %426 = arith.mulf %417, %370 : vector<2x32xf32>
    %427 = arith.mulf %411, %419 : vector<2x32xf32>
    %428 = arith.addf %426, %427 : vector<2x32xf32>
    %429 = math.tanh %428 : vector<2x32xf32>
    %430 = arith.mulf %425, %429 : vector<2x32xf32>
    %431 = vector.extract_strided_slice %12 {offsets = [14, 0], sizes = [2, 128], strides = [1, 1]} : vector<16x128xf32> to vector<2x128xf32>
    %cst_90 = arith.constant dense<0.000000e+00> : vector<2x128xf32>
    %432 = tpu.matmul %400, %13, %cst_90 {dimension_numbers = #tpu.dot_dimension_numbers<[1], [0], [0], [1], [0, 0, 1, 1], [], []>} : vector<2x32xf32>, vector<32x128xf32>, vector<2x128xf32> -> vector<2x128xf32>
    %433 = arith.addf %431, %432 : vector<2x128xf32>
    %434 = vector.extract_strided_slice %433 {offsets = [0, 0], sizes = [2, 32], strides = [1, 1]} : vector<2x128xf32> to vector<2x32xf32>
    %435 = arith.negf %434 : vector<2x32xf32>
    %436 = math.exp %435 : vector<2x32xf32>
    %cst_91 = arith.constant 1.000000e+00 : f32
    %437 = vector.broadcast %cst_91 : f32 to vector<2x32xf32>
    %438 = arith.addf %437, %436 : vector<2x32xf32>
    %439 = arith.divf %437, %438 : vector<2x32xf32>
    %440 = vector.extract_strided_slice %433 {offsets = [0, 32], sizes = [2, 32], strides = [1, 1]} : vector<2x128xf32> to vector<2x32xf32>
    %441 = arith.negf %440 : vector<2x32xf32>
    %442 = math.exp %441 : vector<2x32xf32>
    %cst_92 = arith.constant 1.000000e+00 : f32
    %443 = vector.broadcast %cst_92 : f32 to vector<2x32xf32>
    %444 = arith.addf %443, %442 : vector<2x32xf32>
    %445 = arith.divf %443, %444 : vector<2x32xf32>
    %446 = vector.extract_strided_slice %433 {offsets = [0, 64], sizes = [2, 32], strides = [1, 1]} : vector<2x128xf32> to vector<2x32xf32>
    %447 = math.tanh %446 : vector<2x32xf32>
    %448 = vector.extract_strided_slice %433 {offsets = [0, 96], sizes = [2, 32], strides = [1, 1]} : vector<2x128xf32> to vector<2x32xf32>
    %449 = arith.negf %448 : vector<2x32xf32>
    %450 = math.exp %449 : vector<2x32xf32>
    %cst_93 = arith.constant 1.000000e+00 : f32
    %451 = vector.broadcast %cst_93 : f32 to vector<2x32xf32>
    %452 = arith.addf %451, %450 : vector<2x32xf32>
    %453 = arith.divf %451, %452 : vector<2x32xf32>
    %454 = arith.mulf %445, %398 : vector<2x32xf32>
    %455 = arith.mulf %439, %447 : vector<2x32xf32>
    %456 = arith.addf %454, %455 : vector<2x32xf32>
    %457 = math.tanh %456 : vector<2x32xf32>
    %458 = arith.mulf %453, %457 : vector<2x32xf32>
    %cst_94 = arith.constant dense<0.000000e+00> : vector<2x128xf32>
    %459 = tpu.matmul %458, %14, %cst_94 {dimension_numbers = #tpu.dot_dimension_numbers<[1], [0], [0], [1], [0, 0, 1, 1], [], []>} : vector<2x32xf32>, vector<32x128xf32>, vector<2x128xf32> -> vector<2x128xf32>
    %cst_95 = arith.constant dense<0.000000e+00> : vector<2x128xf32>
    %460 = tpu.matmul %430, %15, %cst_95 {dimension_numbers = #tpu.dot_dimension_numbers<[1], [0], [0], [1], [0, 0, 1, 1], [], []>} : vector<2x32xf32>, vector<32x128xf32>, vector<2x128xf32> -> vector<2x128xf32>
    %461 = arith.addf %459, %460 : vector<2x128xf32>
    %462 = vector.broadcast %16 : vector<1x128xf32> to vector<2x128xf32>
    %463 = arith.addf %461, %462 : vector<2x128xf32>
    %464 = vector.extract_strided_slice %463 {offsets = [0, 0], sizes = [2, 32], strides = [1, 1]} : vector<2x128xf32> to vector<2x32xf32>
    %465 = arith.negf %464 : vector<2x32xf32>
    %466 = math.exp %465 : vector<2x32xf32>
    %cst_96 = arith.constant 1.000000e+00 : f32
    %467 = vector.broadcast %cst_96 : f32 to vector<2x32xf32>
    %468 = arith.addf %467, %466 : vector<2x32xf32>
    %469 = arith.divf %467, %468 : vector<2x32xf32>
    %470 = vector.extract_strided_slice %463 {offsets = [0, 32], sizes = [2, 32], strides = [1, 1]} : vector<2x128xf32> to vector<2x32xf32>
    %471 = arith.negf %470 : vector<2x32xf32>
    %472 = math.exp %471 : vector<2x32xf32>
    %cst_97 = arith.constant 1.000000e+00 : f32
    %473 = vector.broadcast %cst_97 : f32 to vector<2x32xf32>
    %474 = arith.addf %473, %472 : vector<2x32xf32>
    %475 = arith.divf %473, %474 : vector<2x32xf32>
    %476 = vector.extract_strided_slice %463 {offsets = [0, 64], sizes = [2, 32], strides = [1, 1]} : vector<2x128xf32> to vector<2x32xf32>
    %477 = math.tanh %476 : vector<2x32xf32>
    %478 = vector.extract_strided_slice %463 {offsets = [0, 96], sizes = [2, 32], strides = [1, 1]} : vector<2x128xf32> to vector<2x32xf32>
    %479 = arith.negf %478 : vector<2x32xf32>
    %480 = math.exp %479 : vector<2x32xf32>
    %cst_98 = arith.constant 1.000000e+00 : f32
    %481 = vector.broadcast %cst_98 : f32 to vector<2x32xf32>
    %482 = arith.addf %481, %480 : vector<2x32xf32>
    %483 = arith.divf %481, %482 : vector<2x32xf32>
    %484 = arith.mulf %475, %428 : vector<2x32xf32>
    %485 = arith.mulf %469, %477 : vector<2x32xf32>
    %486 = arith.addf %484, %485 : vector<2x32xf32>
    %487 = math.tanh %486 : vector<2x32xf32>
    %488 = arith.mulf %483, %487 : vector<2x32xf32>
    %c0_99 = arith.constant 0 : index
    %c0_100 = arith.constant 0 : index
    %489 = vector.load %arg8[%c0_99, %c0_100] : memref<32x128xf32, #tpu.memory_space<vmem>>, vector<32x128xf32>
    %cst_101 = arith.constant dense<0.000000e+00> : vector<2x128xf32>
    %490 = tpu.matmul %488, %489, %cst_101 {dimension_numbers = #tpu.dot_dimension_numbers<[1], [0], [0], [1], [0, 0, 1, 1], [], []>} : vector<2x32xf32>, vector<32x128xf32>, vector<2x128xf32> -> vector<2x128xf32>
    %c0_102 = arith.constant 0 : index
    %c0_103 = arith.constant 0 : index
    %491 = vector.load %arg9[%c0_102, %c0_103] : memref<1x128xf32, #tpu.memory_space<vmem>>, vector<1x128xf32>
    %492 = vector.broadcast %491 : vector<1x128xf32> to vector<2x128xf32>
    %493 = arith.addf %490, %492 : vector<2x128xf32>
    %c0_104 = arith.constant 0 : index
    %c0_105 = arith.constant 0 : index
    %494 = vector.load %arg12[%c0_104, %c0_105] : memref<2x128xf32, #tpu.memory_space<vmem>>, vector<2x128xf32>
    tpu.vector_store %arg12[%c0_104, %c0_105], %493 {strides = array<i32>} : memref<2x128xf32, #tpu.memory_space<vmem>>, vector<2x128xf32>,
    %c0_106 = arith.constant 0 : index
    %c0_107 = arith.constant 0 : index
    %c0_108 = arith.constant 0 : index
    %495 = vector.load %arg13[%c0_106, %c0_107, %c0_108] : memref<2x2x32xf32, #tpu.memory_space<vmem>>, vector<1x2x32xf32>
    %496 = vector.shape_cast %495 : vector<1x2x32xf32> to vector<2x32xf32>
    %497 = vector.shape_cast %458 : vector<2x32xf32> to vector<1x2x32xf32>
    tpu.vector_store %arg13[%c0_106, %c0_107, %c0_108], %497 {strides = array<i32>} : memref<2x2x32xf32, #tpu.memory_space<vmem>>, vector<1x2x32xf32>,
    %c0_109 = arith.constant 0 : index
    %c0_110 = arith.constant 0 : index
    %c0_111 = arith.constant 0 : index
    %498 = vector.load %arg14[%c0_109, %c0_110, %c0_111] : memref<2x2x32xf32, #tpu.memory_space<vmem>>, vector<1x2x32xf32>
    %499 = vector.shape_cast %498 : vector<1x2x32xf32> to vector<2x32xf32>
    %500 = vector.shape_cast %456 : vector<2x32xf32> to vector<1x2x32xf32>
    tpu.vector_store %arg14[%c0_109, %c0_110, %c0_111], %500 {strides = array<i32>} : memref<2x2x32xf32, #tpu.memory_space<vmem>>, vector<1x2x32xf32>,
    %c1_112 = arith.constant 1 : index
    %c0_113 = arith.constant 0 : index
    %c0_114 = arith.constant 0 : index
    %501 = vector.load %arg13[%c1_112, %c0_113, %c0_114] : memref<2x2x32xf32, #tpu.memory_space<vmem>>, vector<1x2x32xf32>
    %502 = vector.shape_cast %501 : vector<1x2x32xf32> to vector<2x32xf32>
    %503 = vector.shape_cast %488 : vector<2x32xf32> to vector<1x2x32xf32>
    tpu.vector_store %arg13[%c1_112, %c0_113, %c0_114], %503 {strides = array<i32>} : memref<2x2x32xf32, #tpu.memory_space<vmem>>, vector<1x2x32xf32>,
    %c1_115 = arith.constant 1 : index
    %c0_116 = arith.constant 0 : index
    %c0_117 = arith.constant 0 : index
    %504 = vector.load %arg14[%c1_115, %c0_116, %c0_117] : memref<2x2x32xf32, #tpu.memory_space<vmem>>, vector<1x2x32xf32>
    %505 = vector.shape_cast %504 : vector<1x2x32xf32> to vector<2x32xf32>
    %506 = vector.shape_cast %486 : vector<2x32xf32> to vector<1x2x32xf32>
    tpu.vector_store %arg14[%c1_115, %c0_116, %c0_117], %506 {strides = array<i32>} : memref<2x2x32xf32, #tpu.memory_space<vmem>>, vector<1x2x32xf32>,
    return
  }
}

</mosaic_0001>

<llo_original>
// kernel: lstm_text_generator_forward.1
$region0: #{lstm_text_generator_forward.1}
  #allocation0 [shape = 'u32[]', space=smem, size = 0x4, offset = 0x4, fixed_abs, tag = 'smem constant byte address 0x4 - core index']
  #allocation1 [shape = 'u32[144,128]{1,0:T(1,128)}', space=vmem, size = 0x12000, scoped, tag = 'internal scratch']
  %s0 = inlined_call_operand.vmem [shape: s32[16,1], index: 0, kind: input, shape index: {}]
  %s1 = inlined_call_operand.vmem [shape: f32[50,32], index: 1, kind: input, shape index: {}]
  %s2 = inlined_call_operand.vmem [shape: f32[32,128], index: 2, kind: input, shape index: {}]
  %s3 = inlined_call_operand.vmem [shape: f32[32,128], index: 3, kind: input, shape index: {}]
  %s4 = inlined_call_operand.vmem [shape: f32[1,128], index: 4, kind: input, shape index: {}]
  %s5 = inlined_call_operand.vmem [shape: f32[32,128], index: 5, kind: input, shape index: {}]
  %s6 = inlined_call_operand.vmem [shape: f32[32,128], index: 6, kind: input, shape index: {}]
  %s7 = inlined_call_operand.hbm [shape: f32[1,128], index: 7, kind: input, shape index: {}]
  %s8 = inlined_call_operand.hbm [shape: f32[32,128], index: 8, kind: input, shape index: {}]
  %s9 = inlined_call_operand.hbm [shape: f32[1,128], index: 9, kind: input, shape index: {}]
  %s10 = inlined_call_operand.vmem [shape: f32[2,2,32], index: 10, kind: input, shape index: {}]
  %s11 = inlined_call_operand.vmem [shape: f32[2,2,32], index: 11, kind: input, shape index: {}]
  %s12 = inlined_call_operand.hbm [shape: f32[2,128], index: 12, kind: output, shape index: {0}]
  %s13 = inlined_call_operand.hbm [shape: f32[2,2,32], index: 13, kind: output, shape index: {1}]
  %s14 = inlined_call_operand.hbm [shape: f32[2,2,32], index: 14, kind: output, shape index: {2}]
  %15 = xla_tuple %s12, %s13, %s14
  %s16 = sld [smem:[#allocation0]]
  $region86: #{lstm_text_generator_forward.1} parent=0
    _
  %s18 = ssub.s32 1, %s16
  %s19 = scalar_select 0, %s18, %s16
  $region1: #{lstm_text_generator_forward.1} parent=0
    #allocation2 [shape = 'u8[512]{0}', space=vmem, size = 0x400, scoped, tag = 'input window, operand 7, single buffered']
    #allocation3 [shape = 's32[1]{0}', space=sflag, size = 0x4, scoped, tag = 'scoped memory for lstm_text_generator_forward.1']
    #allocation4 [shape = 's32[1]{0}', space=sflag, size = 0x4, scoped, tag = 'scoped memory for lstm_text_generator_forward.1']
    #allocation5 [shape = 'u8[16384]{0}', space=vmem, size = 0x4000, scoped, tag = 'input window, operand 8, single buffered']
    #allocation6 [shape = 's32[1]{0}', space=sflag, size = 0x4, scoped, tag = 'scoped memory for lstm_text_generator_forward.1']
    #allocation7 [shape = 'u8[512]{0}', space=vmem, size = 0x400, scoped, tag = 'input window, operand 9, single buffered']
    #allocation8 [shape = 'u8[1024]{0}', space=vmem, size = 0x400, scoped, tag = 'output window, operand 0, single buffered']
    #allocation9 [shape = 'u8[2048]{0}', space=vmem, size = 0x800, scoped, tag = 'output window, operand 1, single buffered']
    #allocation10 [shape = 's32[1]{0}', space=sflag, size = 0x4, scoped, tag = 'scoped memory for lstm_text_generator_forward.1']
    #allocation11 [shape = 'u8[2048]{0}', space=vmem, size = 0x800, scoped, tag = 'output window, operand 2, single buffered']
    %20 = vsyncpa [#allocation3], 0
    %21 = vsyncpa [#allocation6], 0
    %22 = vsyncpa [#allocation4], 0
    %23 = vsyncpa [#allocation10], 0
    // Predicated region
    $region2: #{lstm_text_generator_forward.1} parent=1 // pred_check
      _
    $region3: #{lstm_text_generator_forward.1} parent=1 // pred_check_branch
      %25 = sbr.rel (0) target = $region5
    $region4: #{lstm_text_generator_forward.1} parent=1 // pred_region
      _
    $region5: #{lstm_text_generator_forward.1} parent=1 // pred_fallthru
      _
    // Predicated region
    $region6: #{lstm_text_generator_forward.1} parent=1 // pred_check
      _
    $region7: #{lstm_text_generator_forward.1} parent=1 // pred_check_branch
      %27 = sbr.rel (0) target = $region9
    $region8: #{lstm_text_generator_forward.1} parent=1 // pred_region
      _
    $region9: #{lstm_text_generator_forward.1} parent=1 // pred_fallthru
      _
    // Predicated region
    $region10: #{lstm_text_generator_forward.1} parent=1 // pred_check
      _
    $region11: #{lstm_text_generator_forward.1} parent=1 // pred_check_branch
      %29 = sbr.rel (0) target = $region13
    $region12: #{lstm_text_generator_forward.1} parent=1 // pred_region
      _
    $region13: #{lstm_text_generator_forward.1} parent=1 // pred_fallthru
      _
    // Predicated region
    $region14: #{lstm_text_generator_forward.1} parent=1 // pred_check
      _
    $region15: #{lstm_text_generator_forward.1} parent=1 // pred_check_branch
      %31 = sbr.rel (0) target = $region17
    $region16: #{lstm_text_generator_forward.1} parent=1 // pred_region
      _
    $region17: #{lstm_text_generator_forward.1} parent=1 // pred_fallthru
      _
    // Predicated region
    $region18: #{lstm_text_generator_forward.1} parent=1 // pred_check
      _
    $region19: #{lstm_text_generator_forward.1} parent=1 // pred_check_branch
      %33 = sbr.rel (0) target = $region21
    $region20: #{lstm_text_generator_forward.1} parent=1 // pred_region
      _
    $region21: #{lstm_text_generator_forward.1} parent=1 // pred_fallthru
      _
    // Predicated region
    $region22: #{lstm_text_generator_forward.1} parent=1 // pred_check
      _
    $region23: #{lstm_text_generator_forward.1} parent=1 // pred_check_branch
      %35 = sbr.rel (0) target = $region25
    $region24: #{lstm_text_generator_forward.1} parent=1 // pred_region
      _
    $region25: #{lstm_text_generator_forward.1} parent=1 // pred_fallthru
      _
    // Predicated region
    $region26: #{lstm_text_generator_forward.1} parent=1 // pred_check
      _
    $region27: #{lstm_text_generator_forward.1} parent=1 // pred_check_branch
      %37 = sbr.rel (0) target = $region29
    $region28: #{lstm_text_generator_forward.1} parent=1 // pred_region
      _
    $region29: #{lstm_text_generator_forward.1} parent=1 // pred_fallthru
      _
    // Predicated region
    $region30: #{lstm_text_generator_forward.1} parent=1 // pred_check
      _
    $region31: #{lstm_text_generator_forward.1} parent=1 // pred_check_branch
      %39 = sbr.rel (0) target = $region33
    $region32: #{lstm_text_generator_forward.1} parent=1 // pred_region
      %s41 = ssub.s32 16, 16
      %42 = vsyncadd [#allocation3], %s41
      %s44 = sshll.u32 [#allocation2], 4
      %s45 = int_to_ptr.vmem [resolvable:$true] %s44
      %47 = dma.hbm_to_vmem [thread:$0]  %s7, 16, %s45, [#allocation3]
    $region33: #{lstm_text_generator_forward.1} parent=1 // pred_fallthru
      _
    // Predicated region
    $region34: #{lstm_text_generator_forward.1} parent=1 // pred_check
      _
    $region35: #{lstm_text_generator_forward.1} parent=1 // pred_check_branch
      %49 = sbr.rel (0) target = $region37
    $region36: #{lstm_text_generator_forward.1} parent=1 // pred_region
      %s51 = ssub.s32 512, 512
      %52 = vsyncadd [#allocation6], %s51
      %s53 = sshll.u32 [#allocation5], 4
      %s54 = int_to_ptr.vmem [resolvable:$true] %s53
      %59 = dma.hbm_to_vmem [thread:$0]  %s8, 512, %s54, [#allocation6], 128, 128, 8
    $region37: #{lstm_text_generator_forward.1} parent=1 // pred_fallthru
      _
    // Predicated region
    $region38: #{lstm_text_generator_forward.1} parent=1 // pred_check
      _
    $region39: #{lstm_text_generator_forward.1} parent=1 // pred_check_branch
      %61 = sbr.rel (0) target = $region41
    $region40: #{lstm_text_generator_forward.1} parent=1 // pred_region
      %s63 = ssub.s32 16, 16
      %64 = vsyncadd [#allocation6], %s63
      %s66 = sshll.u32 [#allocation7], 4
      %s67 = int_to_ptr.vmem [resolvable:$true] %s66
      %69 = dma.hbm_to_vmem [thread:$0]  %s9, 16, %s67, [#allocation6]
    $region41: #{lstm_text_generator_forward.1} parent=1 // pred_fallthru
      _
    // Predicated region
    $region42: #{lstm_text_generator_forward.1} parent=1 // pred_check
      _
    $region43: #{lstm_text_generator_forward.1} parent=1 // pred_check_branch
      %71 = sbr.rel (0) target = $region45
    $region44: #{lstm_text_generator_forward.1} parent=1 // pred_region
      _
    $region45: #{lstm_text_generator_forward.1} parent=1 // pred_fallthru
      _
    // Predicated region
    $region46: #{lstm_text_generator_forward.1} parent=1 // pred_check
      _
    $region47: #{lstm_text_generator_forward.1} parent=1 // pred_check_branch
      %73 = sbr.rel (0) target = $region49
    $region48: #{lstm_text_generator_forward.1} parent=1 // pred_region
      _
    $region49: #{lstm_text_generator_forward.1} parent=1 // pred_fallthru
      _
    // Predicated region
    $region50: #{lstm_text_generator_forward.1} parent=1 // pred_check
      _
    $region51: #{lstm_text_generator_forward.1} parent=1 // pred_check_branch
      %75 = sbr.rel (0) target = $region53
    $region52: #{lstm_text_generator_forward.1} parent=1 // pred_region
      %76 = dma.done [#allocation3], 16
    $region53: #{lstm_text_generator_forward.1} parent=1 // pred_fallthru
      _
    // Predicated region
    $region54: #{lstm_text_generator_forward.1} parent=1 // pred_check
      _
    $region55: #{lstm_text_generator_forward.1} parent=1 // pred_check_branch
      %78 = sbr.rel (0) target = $region57
    $region56: #{lstm_text_generator_forward.1} parent=1 // pred_region
      %79 = dma.done [#allocation6], 512
    $region57: #{lstm_text_generator_forward.1} parent=1 // pred_fallthru
      _
    // Predicated region
    $region58: #{lstm_text_generator_forward.1} parent=1 // pred_check
      _
    $region59: #{lstm_text_generator_forward.1} parent=1 // pred_check_branch
      %81 = sbr.rel (0) target = $region61
    $region60: #{lstm_text_generator_forward.1} parent=1 // pred_region
      %82 = dma.done [#allocation6], 16
    $region61: #{lstm_text_generator_forward.1} parent=1 // pred_fallthru
      _
    %v83 = vld [vmem:[%s0] sm:$0xff]
    %v84 = vld [vmem:[%s0 + $0x8] sm:$0xff]
    %v85 = vlaneseq
    %v86 = vand.u32 %v85, 127
    %87 = vset.pattern.permute.xlu0 0
    %88 = vperm.xlu0 %87, %v83
    %v89 = vpop.permute.xlu0 %88
    %90 = vset.pattern.permute.xlu0 0
    %91 = vperm.xlu0 %90, %v84
    %v92 = vpop.permute.xlu0 %91
    %vm93 = vcmp.eq.s32.totalorder %v89, %v86
    %vm94 = vcmp.eq.s32.totalorder %v92, %v86
    %v95 = vsel %vm93, 1, 0
    %v96 = vsel %vm94, 1, 0
    %v97 = vcvt.s32.f32 %v95
    %v98 = vcvt.s32.f32 %v96
    %v99 = vld [vmem:[%s1] sm:$0xff]
    %v100 = vld [vmem:[%s1 + $0x8] sm:$0xff]
    %v101 = vld [vmem:[%s1 + $0x10] sm:$0xff]
    %v102 = vld [vmem:[%s1 + $0x18] sm:$0xff]
    %v103 = vld [vmem:[%s1 + $0x20] sm:$0xff]
    %v104 = vld [vmem:[%s1 + $0x28] sm:$0xff]
    %v105 = vld [vmem:[%s1 + $0x30] sm:$0x3]
    %vm106 = vcmask 408576
    %v108 = vsel %vm106, %v97, 0
    %v111 = vsel %vm106, %v98, 0
    %vm113 = vcmask 1041408
    %v115 = vsel %vm113, %v105, 0
    %117 = vmatprep.subr.mxu0 0.0
    %118 = vmatpush1.msra.mxu0 %v99
    %119 = vmatprep.subr.mxu0 0.0
    %120 = vmatpush1.msra.mxu0 %v100
    %121 = vmatprep.subr.mxu0 0.0
    %122 = vmatpush1.msra.mxu0 %v101
    %123 = vmatprep.subr.mxu0 0.0
    %124 = vmatpush1.msra.mxu0 %v102
    %125 = vmatprep.subr.mxu0 0.0
    %126 = vmatpush1.msra.mxu0 %v103
    %127 = vmatprep.subr.mxu0 0.0
    %128 = vmatpush1.msra.mxu0 %v104
    %129 = vmatprep.subr.mxu0 0.0
    %130 = vmatpush1.msra.mxu0 %v115
    %131 = vmatprep.subr.mxu0 0.0
    %132 = vmatpush1.msra.mxu0 0.0
    %133 = vmatprep.subr.mxu0 0.0
    %134 = vmatpush1.msra.mxu0 0.0
    %135 = vmatprep.subr.mxu0 0.0
    %136 = vmatpush1.msra.mxu0 0.0
    %137 = vmatprep.subr.mxu0 0.0
    %138 = vmatpush1.msra.mxu0 0.0
    %139 = vmatprep.subr.mxu0 0.0
    %140 = vmatpush1.msra.mxu0 0.0
    %141 = vmatprep.subr.mxu0 0.0
    %142 = vmatpush1.msra.mxu0 0.0
    %143 = vmatprep.subr.mxu0 0.0
    %144 = vmatpush1.msra.mxu0 0.0
    %145 = vmatprep.subr.mxu0 0.0
    %146 = vmatpush1.msra.mxu0 0.0
    %147 = vmatprep.subr.mxu0 0.0
    %148 = vmatpush1.msra.mxu0 0.0
    %149 = vmatprep.subr.mxu0 0.0
    %150 = vmatpush1.msra.mxu0 0.0
    %151 = vmatprep.subr.mxu0 0.0
    %152 = vmatpush1.msra.mxu0 0.0
    %153 = vmatprep.subr.mxu0 0.0
    %154 = vmatpush1.msra.mxu0 0.0
    %155 = vmatprep.subr.mxu0 0.0
    %156 = vmatpush1.msra.mxu0 0.0
    %157 = vmatprep.subr.mxu0 0.0
    %158 = vmatpush1.msra.mxu0 0.0
    %159 = vmatprep.subr.mxu0 0.0
    %160 = vmatpush1.msra.mxu0 0.0
    %161 = vmatprep.subr.mxu0 0.0
    %162 = vmatpush1.msra.mxu0 0.0
    %163 = vmatprep.subr.mxu0 0.0
    %164 = vmatpush1.msra.mxu0 0.0
    %165 = vmatprep.subr.mxu0 0.0
    %166 = vmatpush1.msra.mxu0 0.0
    %167 = vmatprep.subr.mxu0 0.0
    %168 = vmatpush1.msra.mxu0 0.0
    %169 = vmatprep.subr.mxu0 0.0
    %170 = vmatpush1.msra.mxu0 0.0
    %171 = vmatprep.subr.mxu0 0.0
    %172 = vmatpush1.msra.mxu0 0.0
    %173 = vmatprep.subr.mxu0 0.0
    %174 = vmatpush1.msra.mxu0 0.0
    %175 = vmatprep.subr.mxu0 0.0
    %176 = vmatpush1.msra.mxu0 0.0
    %177 = vmatprep.subr.mxu0 0.0
    %178 = vmatpush1.msra.mxu0 0.0
    %179 = vmatprep.subr.mxu0 0.0
    %180 = vmatpush1.msra.mxu0 0.0
    %181 = vmatprep.mubr.f32.mxu0 0.0
    %182 = vmatmul.mubr.f32.gmra.mrb[0].mxu0 %v108
    %v183 = vpop.f32.mrb[0].mxu0
    %v184 = vadd.f32 0.0, %v183
    %v185 = vpop.f32.mrb[0].mxu0
    %186 = vmatprep.mubr.f32.mxu0 0.0
    %187 = vmatmul.mubr.f32.gmra.mrb[0].mxu0 %v111
    %v188 = vpop.f32.mrb[0].mxu0
    %v189 = vadd.f32 0.0, %v188
    %v190 = vpop.f32.mrb[0].mxu0
    %191 = vdwg.mxu0
    %v192 = vld [vmem:[%s2] sm:$0xff]
    %v193 = vld [vmem:[%s2 + $0x8] sm:$0xff]
    %v194 = vld [vmem:[%s2 + $0x10] sm:$0xff]
    %v195 = vld [vmem:[%s2 + $0x18] sm:$0xff]
    %v196 = vld [vmem:[%s4] sm:$0x1]
    %v198 = vlaneseq
    %v199 = vshrl.u32 %v198, 7
    %v200 = vsub.s32 0, %v199
    %v201 = vrot.slane %v196, %v200
    %vm203 = vcmask 261120
    %v205 = vsel %vm203, %v184, 0
    %v208 = vsel %vm203, %v189, 0
    %210 = vmatprep.subr.mxu0 0.0
    %211 = vmatpush1.msra.mxu0 %v192
    %212 = vmatprep.subr.mxu0 0.0
    %213 = vmatpush1.msra.mxu0 %v193
    %214 = vmatprep.subr.mxu0 0.0
    %215 = vmatpush1.msra.mxu0 %v194
    %216 = vmatprep.subr.mxu0 0.0
    %217 = vmatpush1.msra.mxu0 %v195
    %218 = vmatprep.subr.mxu0 0.0
    %219 = vmatpush1.msra.mxu0 0.0
    %220 = vmatprep.subr.mxu0 0.0
    %221 = vmatpush1.msra.mxu0 0.0
    %222 = vmatprep.subr.mxu0 0.0
    %223 = vmatpush1.msra.mxu0 0.0
    %224 = vmatprep.subr.mxu0 0.0
    %225 = vmatpush1.msra.mxu0 0.0
    %226 = vmatprep.subr.mxu0 0.0
    %227 = vmatpush1.msra.mxu0 0.0
    %228 = vmatprep.subr.mxu0 0.0
    %229 = vmatpush1.msra.mxu0 0.0
    %230 = vmatprep.subr.mxu0 0.0
    %231 = vmatpush1.msra.mxu0 0.0
    %232 = vmatprep.subr.mxu0 0.0
    %233 = vmatpush1.msra.mxu0 0.0
    %234 = vmatprep.subr.mxu0 0.0
    %235 = vmatpush1.msra.mxu0 0.0
    %236 = vmatprep.subr.mxu0 0.0
    %237 = vmatpush1.msra.mxu0 0.0
    %238 = vmatprep.subr.mxu0 0.0
    %239 = vmatpush1.msra.mxu0 0.0
    %240 = vmatprep.subr.mxu0 0.0
    %241 = vmatpush1.msra.mxu0 0.0
    %242 = vmatprep.subr.mxu0 0.0
    %243 = vmatpush1.msra.mxu0 0.0
    %244 = vmatprep.subr.mxu0 0.0
    %245 = vmatpush1.msra.mxu0 0.0
    %246 = vmatprep.subr.mxu0 0.0
    %247 = vmatpush1.msra.mxu0 0.0
    %248 = vmatprep.subr.mxu0 0.0
    %249 = vmatpush1.msra.mxu0 0.0
    %250 = vmatprep.subr.mxu0 0.0
    %251 = vmatpush1.msra.mxu0 0.0
    %252 = vmatprep.subr.mxu0 0.0
    %253 = vmatpush1.msra.mxu0 0.0
    %254 = vmatprep.subr.mxu0 0.0
    %255 = vmatpush1.msra.mxu0 0.0
    %256 = vmatprep.subr.mxu0 0.0
    %257 = vmatpush1.msra.mxu0 0.0
    %258 = vmatprep.subr.mxu0 0.0
    %259 = vmatpush1.msra.mxu0 0.0
    %260 = vmatprep.subr.mxu0 0.0
    %261 = vmatpush1.msra.mxu0 0.0
    %262 = vmatprep.subr.mxu0 0.0
    %263 = vmatpush1.msra.mxu0 0.0
    %264 = vmatprep.subr.mxu0 0.0
    %265 = vmatpush1.msra.mxu0 0.0
    %266 = vmatprep.subr.mxu0 0.0
    %267 = vmatpush1.msra.mxu0 0.0
    %268 = vmatprep.subr.mxu0 0.0
    %269 = vmatpush1.msra.mxu0 0.0
    %270 = vmatprep.subr.mxu0 0.0
    %271 = vmatpush1.msra.mxu0 0.0
    %272 = vmatprep.subr.mxu0 0.0
    %273 = vmatpush1.msra.mxu0 0.0
    %274 = vmatprep.mubr.f32.mxu0 0.0
    %275 = vmatmul.mubr.f32.gmra.mrb[0].mxu0 %v205
    %v276 = vpop.f32.mrb[0].mxu0
    %v277 = vadd.f32 %v201, %v276
    %v278 = vpop.f32.mrb[0].mxu0
    %279 = vmatprep.mubr.f32.mxu0 0.0
    %280 = vmatmul.mubr.f32.gmra.mrb[0].mxu0 %v208
    %v281 = vpop.f32.mrb[0].mxu0
    %v282 = vadd.f32 %v201, %v281
    %v283 = vpop.f32.mrb[0].mxu0
    %284 = vdwg.mxu0
    %v285 = vld [vmem:[%s3] sm:$0xff]
    %v286 = vld [vmem:[%s3 + $0x8] sm:$0xff]
    %v287 = vld [vmem:[%s3 + $0x10] sm:$0xff]
    %v288 = vld [vmem:[%s3 + $0x18] sm:$0xff]
    %v289 = vld [vmem:[%s5] sm:$0xff]
    %v290 = vld [vmem:[%s5 + $0x8] sm:$0xff]
    %v291 = vld [vmem:[%s5 + $0x10] sm:$0xff]
    %v292 = vld [vmem:[%s5 + $0x18] sm:$0xff]
    %v293 = vld [vmem:[%s6] sm:$0xff]
    %v294 = vld [vmem:[%s6 + $0x8] sm:$0xff]
    %v295 = vld [vmem:[%s6 + $0x10] sm:$0xff]
    %v296 = vld [vmem:[%s6 + $0x18] sm:$0xff]
    %v297 = vld [vmem:[#allocation2] sm:$0x1]
    %v298 = vld [vmem:[%s10] sm:$0x3]
    %s299 = scalar_lea.vmem %s10, 2
    %v300 = vld [vmem:[%s299] sm:$0x3]
    %v301 = vld [vmem:[%s11] sm:$0x3]
    %s302 = scalar_lea.vmem %s11, 2
    %v303 = vld [vmem:[%s302] sm:$0x3]
    %v305 = vsel %vm203, %v298, 0
    %307 = vmatprep.subr.mxu0 0.0
    %308 = vmatpush1.msra.mxu0 %v285
    %309 = vmatprep.subr.mxu0 0.0
    %310 = vmatpush1.msra.mxu0 %v286
    %311 = vmatprep.subr.mxu0 0.0
    %312 = vmatpush1.msra.mxu0 %v287
    %313 = vmatprep.subr.mxu0 0.0
    %314 = vmatpush1.msra.mxu0 %v288
    %315 = vmatprep.subr.mxu0 0.0
    %316 = vmatpush1.msra.mxu0 0.0
    %317 = vmatprep.subr.mxu0 0.0
    %318 = vmatpush1.msra.mxu0 0.0
    %319 = vmatprep.subr.mxu0 0.0
    %320 = vmatpush1.msra.mxu0 0.0
    %321 = vmatprep.subr.mxu0 0.0
    %322 = vmatpush1.msra.mxu0 0.0
    %323 = vmatprep.subr.mxu0 0.0
    %324 = vmatpush1.msra.mxu0 0.0
    %325 = vmatprep.subr.mxu0 0.0
    %326 = vmatpush1.msra.mxu0 0.0
    %327 = vmatprep.subr.mxu0 0.0
    %328 = vmatpush1.msra.mxu0 0.0
    %329 = vmatprep.subr.mxu0 0.0
    %330 = vmatpush1.msra.mxu0 0.0
    %331 = vmatprep.subr.mxu0 0.0
    %332 = vmatpush1.msra.mxu0 0.0
    %333 = vmatprep.subr.mxu0 0.0
    %334 = vmatpush1.msra.mxu0 0.0
    %335 = vmatprep.subr.mxu0 0.0
    %336 = vmatpush1.msra.mxu0 0.0
    %337 = vmatprep.subr.mxu0 0.0
    %338 = vmatpush1.msra.mxu0 0.0
    %339 = vmatprep.subr.mxu0 0.0
    %340 = vmatpush1.msra.mxu0 0.0
    %341 = vmatprep.subr.mxu0 0.0
    %342 = vmatpush1.msra.mxu0 0.0
    %343 = vmatprep.subr.mxu0 0.0
    %344 = vmatpush1.msra.mxu0 0.0
    %345 = vmatprep.subr.mxu0 0.0
    %346 = vmatpush1.msra.mxu0 0.0
    %347 = vmatprep.subr.mxu0 0.0
    %348 = vmatpush1.msra.mxu0 0.0
    %349 = vmatprep.subr.mxu0 0.0
    %350 = vmatpush1.msra.mxu0 0.0
    %351 = vmatprep.subr.mxu0 0.0
    %352 = vmatpush1.msra.mxu0 0.0
    %353 = vmatprep.subr.mxu0 0.0
    %354 = vmatpush1.msra.mxu0 0.0
    %355 = vmatprep.subr.mxu0 0.0
    %356 = vmatpush1.msra.mxu0 0.0
    %357 = vmatprep.subr.mxu0 0.0
    %358 = vmatpush1.msra.mxu0 0.0
    %359 = vmatprep.subr.mxu0 0.0
    %360 = vmatpush1.msra.mxu0 0.0
    %361 = vmatprep.subr.mxu0 0.0
    %362 = vmatpush1.msra.mxu0 0.0
    %363 = vmatprep.subr.mxu0 0.0
    %364 = vmatpush1.msra.mxu0 0.0
    %365 = vmatprep.subr.mxu0 0.0
    %366 = vmatpush1.msra.mxu0 0.0
    %367 = vmatprep.subr.mxu0 0.0
    %368 = vmatpush1.msra.mxu0 0.0
    %369 = vmatprep.subr.mxu0 0.0
    %370 = vmatpush1.msra.mxu0 0.0
    %371 = vmatprep.mubr.f32.mxu0 0.0
    %372 = vmatmul.mubr.f32.gmra.mrb[0].mxu0 %v305
    %v373 = vpop.f32.mrb[0].mxu0
    %v374 = vadd.f32 0.0, %v373
    %v375 = vpop.f32.mrb[0].mxu0
    %376 = vdwg.mxu0
    %v377 = vadd.f32 %v277, %v374
    %v378 = vxor.u32 %v377, 2147483648
    %v379 = vmul.f32 %v378, 1.442695
    %v380 = vpow.pop %v379
    %v381 = vadd.f32 %v380, 1.0
    %v382 = vrcp.pop %v381
    %v383 = vmul.f32 1.0, %v382
    %v384 = vtanh.pop %v377
    %386 = vrot.lane.b32.xlu0 %v301, 32
    %v387 = vpop.permute.xlu0 %386
    %v389 = vmul.f32 %v383, %v387
    %391 = vrot.lane.b32.xlu0 %v384, 64
    %v392 = vpop.permute.xlu0 %391
    %v394 = vmul.f32 %v383, %v392
    %396 = vrot.lane.b32.xlu0 %v394, 32
    %v397 = vpop.permute.xlu0 %396
    %v399 = vadd.f32 %v389, %v397
    %v400 = vtanh.pop %v399
    %402 = vrot.lane.b32.xlu0 %v400, 64
    %v403 = vpop.permute.xlu0 %402
    %v405 = vmul.f32 %v383, %v403
    %v407 = vsel %vm203, %v300, 0
    %409 = vmatprep.subr.mxu0 0.0
    %410 = vmatpush1.msra.mxu0 %v293
    %411 = vmatprep.subr.mxu0 0.0
    %412 = vmatpush1.msra.mxu0 %v294
    %413 = vmatprep.subr.mxu0 0.0
    %414 = vmatpush1.msra.mxu0 %v295
    %415 = vmatprep.subr.mxu0 0.0
    %416 = vmatpush1.msra.mxu0 %v296
    %417 = vmatprep.subr.mxu0 0.0
    %418 = vmatpush1.msra.mxu0 0.0
    %419 = vmatprep.subr.mxu0 0.0
    %420 = vmatpush1.msra.mxu0 0.0
    %421 = vmatprep.subr.mxu0 0.0
    %422 = vmatpush1.msra.mxu0 0.0
    %423 = vmatprep.subr.mxu0 0.0
    %424 = vmatpush1.msra.mxu0 0.0
    %425 = vmatprep.subr.mxu0 0.0
    %426 = vmatpush1.msra.mxu0 0.0
    %427 = vmatprep.subr.mxu0 0.0
    %428 = vmatpush1.msra.mxu0 0.0
    %429 = vmatprep.subr.mxu0 0.0
    %430 = vmatpush1.msra.mxu0 0.0
    %431 = vmatprep.subr.mxu0 0.0
    %432 = vmatpush1.msra.mxu0 0.0
    %433 = vmatprep.subr.mxu0 0.0
    %434 = vmatpush1.msra.mxu0 0.0
    %435 = vmatprep.subr.mxu0 0.0
    %436 = vmatpush1.msra.mxu0 0.0
    %437 = vmatprep.subr.mxu0 0.0
    %438 = vmatpush1.msra.mxu0 0.0
    %439 = vmatprep.subr.mxu0 0.0
    %440 = vmatpush1.msra.mxu0 0.0
    %441 = vmatprep.subr.mxu0 0.0
    %442 = vmatpush1.msra.mxu0 0.0
    %443 = vmatprep.subr.mxu0 0.0
    %444 = vmatpush1.msra.mxu0 0.0
    %445 = vmatprep.subr.mxu0 0.0
    %446 = vmatpush1.msra.mxu0 0.0
    %447 = vmatprep.subr.mxu0 0.0
    %448 = vmatpush1.msra.mxu0 0.0
    %449 = vmatprep.subr.mxu0 0.0
    %450 = vmatpush1.msra.mxu0 0.0
    %451 = vmatprep.subr.mxu0 0.0
    %452 = vmatpush1.msra.mxu0 0.0
    %453 = vmatprep.subr.mxu0 0.0
    %454 = vmatpush1.msra.mxu0 0.0
    %455 = vmatprep.subr.mxu0 0.0
    %456 = vmatpush1.msra.mxu0 0.0
    %457 = vmatprep.subr.mxu0 0.0
    %458 = vmatpush1.msra.mxu0 0.0
    %459 = vmatprep.subr.mxu0 0.0
    %460 = vmatpush1.msra.mxu0 0.0
    %461 = vmatprep.subr.mxu0 0.0
    %462 = vmatpush1.msra.mxu0 0.0
    %463 = vmatprep.subr.mxu0 0.0
    %464 = vmatpush1.msra.mxu0 0.0
    %465 = vmatprep.subr.mxu0 0.0
    %466 = vmatpush1.msra.mxu0 0.0
    %467 = vmatprep.subr.mxu0 0.0
    %468 = vmatpush1.msra.mxu0 0.0
    %469 = vmatprep.subr.mxu0 0.0
    %470 = vmatpush1.msra.mxu0 0.0
    %471 = vmatprep.subr.mxu0 0.0
    %472 = vmatpush1.msra.mxu0 0.0
    %473 = vmatprep.mubr.f32.mxu0 0.0
    %474 = vmatmul.mubr.f32.gmra.mrb[0].mxu0 %v407
    %v475 = vpop.f32.mrb[0].mxu0
    %v476 = vadd.f32 0.0, %v475
    %v477 = vpop.f32.mrb[0].mxu0
    %478 = vdwg.mxu0
    %480 = vrot.lane.b32.xlu0 %v405, 32
    %v481 = vpop.permute.xlu0 %480
    %v482 = vsel %vm203, %v481, 0
    %484 = vmatprep.subr.mxu0 0.0
    %485 = vmatpush1.msra.mxu0 %v289
    %486 = vmatprep.subr.mxu0 0.0
    %487 = vmatpush1.msra.mxu0 %v290
    %488 = vmatprep.subr.mxu0 0.0
    %489 = vmatpush1.msra.mxu0 %v291
    %490 = vmatprep.subr.mxu0 0.0
    %491 = vmatpush1.msra.mxu0 %v292
    %492 = vmatprep.subr.mxu0 0.0
    %493 = vmatpush1.msra.mxu0 0.0
    %494 = vmatprep.subr.mxu0 0.0
    %495 = vmatpush1.msra.mxu0 0.0
    %496 = vmatprep.subr.mxu0 0.0
    %497 = vmatpush1.msra.mxu0 0.0
    %498 = vmatprep.subr.mxu0 0.0
    %499 = vmatpush1.msra.mxu0 0.0
    %500 = vmatprep.subr.mxu0 0.0
    %501 = vmatpush1.msra.mxu0 0.0
    %502 = vmatprep.subr.mxu0 0.0
    %503 = vmatpush1.msra.mxu0 0.0
    %504 = vmatprep.subr.mxu0 0.0
    %505 = vmatpush1.msra.mxu0 0.0
    %506 = vmatprep.subr.mxu0 0.0
    %507 = vmatpush1.msra.mxu0 0.0
    %508 = vmatprep.subr.mxu0 0.0
    %509 = vmatpush1.msra.mxu0 0.0
    %510 = vmatprep.subr.mxu0 0.0
    %511 = vmatpush1.msra.mxu0 0.0
    %512 = vmatprep.subr.mxu0 0.0
    %513 = vmatpush1.msra.mxu0 0.0
    %514 = vmatprep.subr.mxu0 0.0
    %515 = vmatpush1.msra.mxu0 0.0
    %516 = vmatprep.subr.mxu0 0.0
    %517 = vmatpush1.msra.mxu0 0.0
    %518 = vmatprep.subr.mxu0 0.0
    %519 = vmatpush1.msra.mxu0 0.0
    %520 = vmatprep.subr.mxu0 0.0
    %521 = vmatpush1.msra.mxu0 0.0
    %522 = vmatprep.subr.mxu0 0.0
    %523 = vmatpush1.msra.mxu0 0.0
    %524 = vmatprep.subr.mxu0 0.0
    %525 = vmatpush1.msra.mxu0 0.0
    %526 = vmatprep.subr.mxu0 0.0
    %527 = vmatpush1.msra.mxu0 0.0
    %528 = vmatprep.subr.mxu0 0.0
    %529 = vmatpush1.msra.mxu0 0.0
    %530 = vmatprep.subr.mxu0 0.0
    %531 = vmatpush1.msra.mxu0 0.0
    %532 = vmatprep.subr.mxu0 0.0
    %533 = vmatpush1.msra.mxu0 0.0
    %534 = vmatprep.subr.mxu0 0.0
    %535 = vmatpush1.msra.mxu0 0.0
    %536 = vmatprep.subr.mxu0 0.0
    %537 = vmatpush1.msra.mxu0 0.0
    %538 = vmatprep.subr.mxu0 0.0
    %539 = vmatpush1.msra.mxu0 0.0
    %540 = vmatprep.subr.mxu0 0.0
    %541 = vmatpush1.msra.mxu0 0.0
    %542 = vmatprep.subr.mxu0 0.0
    %543 = vmatpush1.msra.mxu0 0.0
    %544 = vmatprep.subr.mxu0 0.0
    %545 = vmatpush1.msra.mxu0 0.0
    %546 = vmatprep.subr.mxu0 0.0
    %547 = vmatpush1.msra.mxu0 0.0
    %548 = vmatprep.mubr.f32.mxu0 0.0
    %549 = vmatmul.mubr.f32.gmra.mrb[0].mxu0 %v482
    %v550 = vpop.f32.mrb[0].mxu0
    %v551 = vadd.f32 %v476, %v550
    %v552 = vpop.f32.mrb[0].mxu0
    %553 = vdwg.mxu0
    %v555 = vlaneseq
    %v556 = vshrl.u32 %v555, 7
    %v557 = vsub.s32 0, %v556
    %v558 = vrot.slane %v297, %v557
    %v560 = vadd.f32 %v551, %v558
    %v561 = vxor.u32 %v560, 2147483648
    %v562 = vmul.f32 %v561, 1.442695
    %v563 = vpow.pop %v562
    %v564 = vadd.f32 %v563, 1.0
    %v565 = vrcp.pop %v564
    %v566 = vmul.f32 1.0, %v565
    %v567 = vtanh.pop %v560
    %569 = vrot.lane.b32.xlu0 %v303, 32
    %v570 = vpop.permute.xlu0 %569
    %v572 = vmul.f32 %v566, %v570
    %574 = vrot.lane.b32.xlu0 %v567, 64
    %v575 = vpop.permute.xlu0 %574
    %v577 = vmul.f32 %v566, %v575
    %579 = vrot.lane.b32.xlu0 %v577, 32
    %v580 = vpop.permute.xlu0 %579
    %v582 = vadd.f32 %v572, %v580
    %v583 = vtanh.pop %v582
    %585 = vrot.lane.b32.xlu0 %v583, 64
    %v586 = vpop.permute.xlu0 %585
    %v588 = vmul.f32 %v566, %v586
    %589 = vmatprep.subr.mxu0 0.0
    %590 = vmatpush1.msra.mxu0 %v285
    %591 = vmatprep.subr.mxu0 0.0
    %592 = vmatpush1.msra.mxu0 %v286
    %593 = vmatprep.subr.mxu0 0.0
    %594 = vmatpush1.msra.mxu0 %v287
    %595 = vmatprep.subr.mxu0 0.0
    %596 = vmatpush1.msra.mxu0 %v288
    %597 = vmatprep.subr.mxu0 0.0
    %598 = vmatpush1.msra.mxu0 0.0
    %599 = vmatprep.subr.mxu0 0.0
    %600 = vmatpush1.msra.mxu0 0.0
    %601 = vmatprep.subr.mxu0 0.0
    %602 = vmatpush1.msra.mxu0 0.0
    %603 = vmatprep.subr.mxu0 0.0
    %604 = vmatpush1.msra.mxu0 0.0
    %605 = vmatprep.subr.mxu0 0.0
    %606 = vmatpush1.msra.mxu0 0.0
    %607 = vmatprep.subr.mxu0 0.0
    %608 = vmatpush1.msra.mxu0 0.0
    %609 = vmatprep.subr.mxu0 0.0
    %610 = vmatpush1.msra.mxu0 0.0
    %611 = vmatprep.subr.mxu0 0.0
    %612 = vmatpush1.msra.mxu0 0.0
    %613 = vmatprep.subr.mxu0 0.0
    %614 = vmatpush1.msra.mxu0 0.0
    %615 = vmatprep.subr.mxu0 0.0
    %616 = vmatpush1.msra.mxu0 0.0
    %617 = vmatprep.subr.mxu0 0.0
    %618 = vmatpush1.msra.mxu0 0.0
    %619 = vmatprep.subr.mxu0 0.0
    %620 = vmatpush1.msra.mxu0 0.0
    %621 = vmatprep.subr.mxu0 0.0
    %622 = vmatpush1.msra.mxu0 0.0
    %623 = vmatprep.subr.mxu0 0.0
    %624 = vmatpush1.msra.mxu0 0.0
    %625 = vmatprep.subr.mxu0 0.0
    %626 = vmatpush1.msra.mxu0 0.0
    %627 = vmatprep.subr.mxu0 0.0
    %628 = vmatpush1.msra.mxu0 0.0
    %629 = vmatprep.subr.mxu0 0.0
    %630 = vmatpush1.msra.mxu0 0.0
    %631 = vmatprep.subr.mxu0 0.0
    %632 = vmatpush1.msra.mxu0 0.0
    %633 = vmatprep.subr.mxu0 0.0
    %634 = vmatpush1.msra.mxu0 0.0
    %635 = vmatprep.subr.mxu0 0.0
    %636 = vmatpush1.msra.mxu0 0.0
    %637 = vmatprep.subr.mxu0 0.0
    %638 = vmatpush1.msra.mxu0 0.0
    %639 = vmatprep.subr.mxu0 0.0
    %640 = vmatpush1.msra.mxu0 0.0
    %641 = vmatprep.subr.mxu0 0.0
    %642 = vmatpush1.msra.mxu0 0.0
    %643 = vmatprep.subr.mxu0 0.0
    %644 = vmatpush1.msra.mxu0 0.0
    %645 = vmatprep.subr.mxu0 0.0
    %646 = vmatpush1.msra.mxu0 0.0
    %647 = vmatprep.subr.mxu0 0.0
    %648 = vmatpush1.msra.mxu0 0.0
    %649 = vmatprep.subr.mxu0 0.0
    %650 = vmatpush1.msra.mxu0 0.0
    %651 = vmatprep.subr.mxu0 0.0
    %652 = vmatpush1.msra.mxu0 0.0
    %653 = vmatprep.mubr.f32.mxu0 0.0
    %654 = vmatmul.mubr.f32.gmra.mrb[0].mxu0 %v482
    %v655 = vpop.f32.mrb[0].mxu0
    %v656 = vadd.f32 0.0, %v655
    %v657 = vpop.f32.mrb[0].mxu0
    %658 = vdwg.mxu0
    %v660 = vrot.slane %v656, 6
    %v662 = vadd.f32 %v277, %v660
    %v663 = vxor.u32 %v662, 2147483648
    %v664 = vmul.f32 %v663, 1.442695
    %v665 = vpow.pop %v664
    %v666 = vadd.f32 %v665, 1.0
    %v667 = vrcp.pop %v666
    %v668 = vmul.f32 1.0, %v667
    %v669 = vtanh.pop %v662
    %v671 = vrot.slane %v399, 6
    %v673 = vmul.f32 %v668, %v671
    %675 = vrot.lane.b32.xlu0 %v669, 64
    %v676 = vpop.permute.xlu0 %675
    %v678 = vmul.f32 %v668, %v676
    %680 = vrot.lane.b32.xlu0 %v678, 32
    %v681 = vpop.permute.xlu0 %680
    %v683 = vadd.f32 %v673, %v681
    %v684 = vtanh.pop %v683
    %686 = vrot.lane.b32.xlu0 %v684, 64
    %v687 = vpop.permute.xlu0 %686
    %v689 = vmul.f32 %v668, %v687
    %691 = vrot.lane.b32.xlu0 %v588, 32
    %v692 = vpop.permute.xlu0 %691
    %v693 = vsel %vm203, %v692, 0
    %695 = vmatprep.subr.mxu0 0.0
    %696 = vmatpush1.msra.mxu0 %v293
    %697 = vmatprep.subr.mxu0 0.0
    %698 = vmatpush1.msra.mxu0 %v294
    %699 = vmatprep.subr.mxu0 0.0
    %700 = vmatpush1.msra.mxu0 %v295
    %701 = vmatprep.subr.mxu0 0.0
    %702 = vmatpush1.msra.mxu0 %v296
    %703 = vmatprep.subr.mxu0 0.0
    %704 = vmatpush1.msra.mxu0 0.0
    %705 = vmatprep.subr.mxu0 0.0
    %706 = vmatpush1.msra.mxu0 0.0
    %707 = vmatprep.subr.mxu0 0.0
    %708 = vmatpush1.msra.mxu0 0.0
    %709 = vmatprep.subr.mxu0 0.0
    %710 = vmatpush1.msra.mxu0 0.0
    %711 = vmatprep.subr.mxu0 0.0
    %712 = vmatpush1.msra.mxu0 0.0
    %713 = vmatprep.subr.mxu0 0.0
    %714 = vmatpush1.msra.mxu0 0.0
    %715 = vmatprep.subr.mxu0 0.0
    %716 = vmatpush1.msra.mxu0 0.0
    %717 = vmatprep.subr.mxu0 0.0
    %718 = vmatpush1.msra.mxu0 0.0
    %719 = vmatprep.subr.mxu0 0.0
    %720 = vmatpush1.msra.mxu0 0.0
    %721 = vmatprep.subr.mxu0 0.0
    %722 = vmatpush1.msra.mxu0 0.0
    %723 = vmatprep.subr.mxu0 0.0
    %724 = vmatpush1.msra.mxu0 0.0
    %725 = vmatprep.subr.mxu0 0.0
    %726 = vmatpush1.msra.mxu0 0.0
    %727 = vmatprep.subr.mxu0 0.0
    %728 = vmatpush1.msra.mxu0 0.0
    %729 = vmatprep.subr.mxu0 0.0
    %730 = vmatpush1.msra.mxu0 0.0
    %731 = vmatprep.subr.mxu0 0.0
    %732 = vmatpush1.msra.mxu0 0.0
    %733 = vmatprep.subr.mxu0 0.0
    %734 = vmatpush1.msra.mxu0 0.0
    %735 = vmatprep.subr.mxu0 0.0
    %736 = vmatpush1.msra.mxu0 0.0
    %737 = vmatprep.subr.mxu0 0.0
    %738 = vmatpush1.msra.mxu0 0.0
    %739 = vmatprep.subr.mxu0 0.0
    %740 = vmatpush1.msra.mxu0 0.0
    %741 = vmatprep.subr.mxu0 0.0
    %742 = vmatpush1.msra.mxu0 0.0
    %743 = vmatprep.subr.mxu0 0.0
    %744 = vmatpush1.msra.mxu0 0.0
    %745 = vmatprep.subr.mxu0 0.0
    %746 = vmatpush1.msra.mxu0 0.0
    %747 = vmatprep.subr.mxu0 0.0
    %748 = vmatpush1.msra.mxu0 0.0
    %749 = vmatprep.subr.mxu0 0.0
    %750 = vmatpush1.msra.mxu0 0.0
    %751 = vmatprep.subr.mxu0 0.0
    %752 = vmatpush1.msra.mxu0 0.0
    %753 = vmatprep.subr.mxu0 0.0
    %754 = vmatpush1.msra.mxu0 0.0
    %755 = vmatprep.subr.mxu0 0.0
    %756 = vmatpush1.msra.mxu0 0.0
    %757 = vmatprep.subr.mxu0 0.0
    %758 = vmatpush1.msra.mxu0 0.0
    %759 = vmatprep.mubr.f32.mxu0 0.0
    %760 = vmatmul.mubr.f32.gmra.mrb[0].mxu0 %v693
    %v761 = vpop.f32.mrb[0].mxu0
    %v762 = vadd.f32 0.0, %v761
    %v763 = vpop.f32.mrb[0].mxu0
    %764 = vdwg.mxu0
    %v766 = vrot.slane %v689, 2
    %767 = vrot.lane.b32.xlu0 %v766, 32
    %v768 = vpop.permute.xlu0 %767
    %v769 = vsel %vm203, %v768, 0
    %771 = vmatprep.subr.mxu0 0.0
    %772 = vmatpush1.msra.mxu0 %v289
    %773 = vmatprep.subr.mxu0 0.0
    %774 = vmatpush1.msra.mxu0 %v290
    %775 = vmatprep.subr.mxu0 0.0
    %776 = vmatpush1.msra.mxu0 %v291
    %777 = vmatprep.subr.mxu0 0.0
    %778 = vmatpush1.msra.mxu0 %v292
    %779 = vmatprep.subr.mxu0 0.0
    %780 = vmatpush1.msra.mxu0 0.0
    %781 = vmatprep.subr.mxu0 0.0
    %782 = vmatpush1.msra.mxu0 0.0
    %783 = vmatprep.subr.mxu0 0.0
    %784 = vmatpush1.msra.mxu0 0.0
    %785 = vmatprep.subr.mxu0 0.0
    %786 = vmatpush1.msra.mxu0 0.0
    %787 = vmatprep.subr.mxu0 0.0
    %788 = vmatpush1.msra.mxu0 0.0
    %789 = vmatprep.subr.mxu0 0.0
    %790 = vmatpush1.msra.mxu0 0.0
    %791 = vmatprep.subr.mxu0 0.0
    %792 = vmatpush1.msra.mxu0 0.0
    %793 = vmatprep.subr.mxu0 0.0
    %794 = vmatpush1.msra.mxu0 0.0
    %795 = vmatprep.subr.mxu0 0.0
    %796 = vmatpush1.msra.mxu0 0.0
    %797 = vmatprep.subr.mxu0 0.0
    %798 = vmatpush1.msra.mxu0 0.0
    %799 = vmatprep.subr.mxu0 0.0
    %800 = vmatpush1.msra.mxu0 0.0
    %801 = vmatprep.subr.mxu0 0.0
    %802 = vmatpush1.msra.mxu0 0.0
    %803 = vmatprep.subr.mxu0 0.0
    %804 = vmatpush1.msra.mxu0 0.0
    %805 = vmatprep.subr.mxu0 0.0
    %806 = vmatpush1.msra.mxu0 0.0
    %807 = vmatprep.subr.mxu0 0.0
    %808 = vmatpush1.msra.mxu0 0.0
    %809 = vmatprep.subr.mxu0 0.0
    %810 = vmatpush1.msra.mxu0 0.0
    %811 = vmatprep.subr.mxu0 0.0
    %812 = vmatpush1.msra.mxu0 0.0
    %813 = vmatprep.subr.mxu0 0.0
    %814 = vmatpush1.msra.mxu0 0.0
    %815 = vmatprep.subr.mxu0 0.0
    %816 = vmatpush1.msra.mxu0 0.0
    %817 = vmatprep.subr.mxu0 0.0
    %818 = vmatpush1.msra.mxu0 0.0
    %819 = vmatprep.subr.mxu0 0.0
    %820 = vmatpush1.msra.mxu0 0.0
    %821 = vmatprep.subr.mxu0 0.0
    %822 = vmatpush1.msra.mxu0 0.0
    %823 = vmatprep.subr.mxu0 0.0
    %824 = vmatpush1.msra.mxu0 0.0
    %825 = vmatprep.subr.mxu0 0.0
    %826 = vmatpush1.msra.mxu0 0.0
    %827 = vmatprep.subr.mxu0 0.0
    %828 = vmatpush1.msra.mxu0 0.0
    %829 = vmatprep.subr.mxu0 0.0
    %830 = vmatpush1.msra.mxu0 0.0
    %831 = vmatprep.subr.mxu0 0.0
    %832 = vmatpush1.msra.mxu0 0.0
    %833 = vmatprep.subr.mxu0 0.0
    %834 = vmatpush1.msra.mxu0 0.0
    %835 = vmatprep.mubr.f32.mxu0 0.0
    %836 = vmatmul.mubr.f32.gmra.mrb[0].mxu0 %v769
    %v837 = vpop.f32.mrb[0].mxu0
    %v838 = vadd.f32 %v762, %v837
    %v839 = vpop.f32.mrb[0].mxu0
    %840 = vdwg.mxu0
    %v841 = vadd.f32 %v838, %v558
    %v842 = vxor.u32 %v841, 2147483648
    %v843 = vmul.f32 %v842, 1.442695
    %v844 = vpow.pop %v843
    %v845 = vadd.f32 %v844, 1.0
    %v846 = vrcp.pop %v845
    %v847 = vmul.f32 1.0, %v846
    %v848 = vtanh.pop %v841
    %v849 = vmul.f32 %v847, %v582
    %851 = vrot.lane.b32.xlu0 %v848, 64
    %v852 = vpop.permute.xlu0 %851
    %v854 = vmul.f32 %v847, %v852
    %856 = vrot.lane.b32.xlu0 %v854, 32
    %v857 = vpop.permute.xlu0 %856
    %v859 = vadd.f32 %v849, %v857
    %v860 = vtanh.pop %v859
    %862 = vrot.lane.b32.xlu0 %v860, 64
    %v863 = vpop.permute.xlu0 %862
    %v865 = vmul.f32 %v847, %v863
    %866 = vmatprep.subr.mxu0 0.0
    %867 = vmatpush1.msra.mxu0 %v285
    %868 = vmatprep.subr.mxu0 0.0
    %869 = vmatpush1.msra.mxu0 %v286
    %870 = vmatprep.subr.mxu0 0.0
    %871 = vmatpush1.msra.mxu0 %v287
    %872 = vmatprep.subr.mxu0 0.0
    %873 = vmatpush1.msra.mxu0 %v288
    %874 = vmatprep.subr.mxu0 0.0
    %875 = vmatpush1.msra.mxu0 0.0
    %876 = vmatprep.subr.mxu0 0.0
    %877 = vmatpush1.msra.mxu0 0.0
    %878 = vmatprep.subr.mxu0 0.0
    %879 = vmatpush1.msra.mxu0 0.0
    %880 = vmatprep.subr.mxu0 0.0
    %881 = vmatpush1.msra.mxu0 0.0
    %882 = vmatprep.subr.mxu0 0.0
    %883 = vmatpush1.msra.mxu0 0.0
    %884 = vmatprep.subr.mxu0 0.0
    %885 = vmatpush1.msra.mxu0 0.0
    %886 = vmatprep.subr.mxu0 0.0
    %887 = vmatpush1.msra.mxu0 0.0
    %888 = vmatprep.subr.mxu0 0.0
    %889 = vmatpush1.msra.mxu0 0.0
    %890 = vmatprep.subr.mxu0 0.0
    %891 = vmatpush1.msra.mxu0 0.0
    %892 = vmatprep.subr.mxu0 0.0
    %893 = vmatpush1.msra.mxu0 0.0
    %894 = vmatprep.subr.mxu0 0.0
    %895 = vmatpush1.msra.mxu0 0.0
    %896 = vmatprep.subr.mxu0 0.0
    %897 = vmatpush1.msra.mxu0 0.0
    %898 = vmatprep.subr.mxu0 0.0
    %899 = vmatpush1.msra.mxu0 0.0
    %900 = vmatprep.subr.mxu0 0.0
    %901 = vmatpush1.msra.mxu0 0.0
    %902 = vmatprep.subr.mxu0 0.0
    %903 = vmatpush1.msra.mxu0 0.0
    %904 = vmatprep.subr.mxu0 0.0
    %905 = vmatpush1.msra.mxu0 0.0
    %906 = vmatprep.subr.mxu0 0.0
    %907 = vmatpush1.msra.mxu0 0.0
    %908 = vmatprep.subr.mxu0 0.0
    %909 = vmatpush1.msra.mxu0 0.0
    %910 = vmatprep.subr.mxu0 0.0
    %911 = vmatpush1.msra.mxu0 0.0
    %912 = vmatprep.subr.mxu0 0.0
    %913 = vmatpush1.msra.mxu0 0.0
    %914 = vmatprep.subr.mxu0 0.0
    %915 = vmatpush1.msra.mxu0 0.0
    %916 = vmatprep.subr.mxu0 0.0
    %917 = vmatpush1.msra.mxu0 0.0
    %918 = vmatprep.subr.mxu0 0.0
    %919 = vmatpush1.msra.mxu0 0.0
    %920 = vmatprep.subr.mxu0 0.0
    %921 = vmatpush1.msra.mxu0 0.0
    %922 = vmatprep.subr.mxu0 0.0
    %923 = vmatpush1.msra.mxu0 0.0
    %924 = vmatprep.subr.mxu0 0.0
    %925 = vmatpush1.msra.mxu0 0.0
    %926 = vmatprep.subr.mxu0 0.0
    %927 = vmatpush1.msra.mxu0 0.0
    %928 = vmatprep.subr.mxu0 0.0
    %929 = vmatpush1.msra.mxu0 0.0
    %930 = vmatprep.mubr.f32.mxu0 0.0
    %931 = vmatmul.mubr.f32.gmra.mrb[0].mxu0 %v769
    %v932 = vpop.f32.mrb[0].mxu0
    %v933 = vadd.f32 0.0, %v932
    %v934 = vpop.f32.mrb[0].mxu0
    %935 = vdwg.mxu0
    %v937 = vrot.slane %v933, 4
    %v939 = vadd.f32 %v277, %v937
    %v940 = vxor.u32 %v939, 2147483648
    %v941 = vmul.f32 %v940, 1.442695
    %v942 = vpow.pop %v941
    %v943 = vadd.f32 %v942, 1.0
    %v944 = vrcp.pop %v943
    %v945 = vmul.f32 1.0, %v944
    %v946 = vtanh.pop %v939
    %v948 = vrot.slane %v683, 6
    %v950 = vmul.f32 %v945, %v948
    %952 = vrot.lane.b32.xlu0 %v946, 64
    %v953 = vpop.permute.xlu0 %952
    %v955 = vmul.f32 %v945, %v953
    %957 = vrot.lane.b32.xlu0 %v955, 32
    %v958 = vpop.permute.xlu0 %957
    %v960 = vadd.f32 %v950, %v958
    %v961 = vtanh.pop %v960
    %963 = vrot.lane.b32.xlu0 %v961, 64
    %v964 = vpop.permute.xlu0 %963
    %v966 = vmul.f32 %v945, %v964
    %968 = vrot.lane.b32.xlu0 %v865, 32
    %v969 = vpop.permute.xlu0 %968
    %v970 = vsel %vm203, %v969, 0
    %972 = vmatprep.subr.mxu0 0.0
    %973 = vmatpush1.msra.mxu0 %v293
    %974 = vmatprep.subr.mxu0 0.0
    %975 = vmatpush1.msra.mxu0 %v294
    %976 = vmatprep.subr.mxu0 0.0
    %977 = vmatpush1.msra.mxu0 %v295
    %978 = vmatprep.subr.mxu0 0.0
    %979 = vmatpush1.msra.mxu0 %v296
    %980 = vmatprep.subr.mxu0 0.0
    %981 = vmatpush1.msra.mxu0 0.0
    %982 = vmatprep.subr.mxu0 0.0
    %983 = vmatpush1.msra.mxu0 0.0
    %984 = vmatprep.subr.mxu0 0.0
    %985 = vmatpush1.msra.mxu0 0.0
    %986 = vmatprep.subr.mxu0 0.0
    %987 = vmatpush1.msra.mxu0 0.0
    %988 = vmatprep.subr.mxu0 0.0
    %989 = vmatpush1.msra.mxu0 0.0
    %990 = vmatprep.subr.mxu0 0.0
    %991 = vmatpush1.msra.mxu0 0.0
    %992 = vmatprep.subr.mxu0 0.0
    %993 = vmatpush1.msra.mxu0 0.0
    %994 = vmatprep.subr.mxu0 0.0
    %995 = vmatpush1.msra.mxu0 0.0
    %996 = vmatprep.subr.mxu0 0.0
    %997 = vmatpush1.msra.mxu0 0.0
    %998 = vmatprep.subr.mxu0 0.0
    %999 = vmatpush1.msra.mxu0 0.0
    %1000 = vmatprep.subr.mxu0 0.0
    %1001 = vmatpush1.msra.mxu0 0.0
    %1002 = vmatprep.subr.mxu0 0.0
    %1003 = vmatpush1.msra.mxu0 0.0
    %1004 = vmatprep.subr.mxu0 0.0
    %1005 = vmatpush1.msra.mxu0 0.0
    %1006 = vmatprep.subr.mxu0 0.0
    %1007 = vmatpush1.msra.mxu0 0.0
    %1008 = vmatprep.subr.mxu0 0.0
    %1009 = vmatpush1.msra.mxu0 0.0
    %1010 = vmatprep.subr.mxu0 0.0
    %1011 = vmatpush1.msra.mxu0 0.0
    %1012 = vmatprep.subr.mxu0 0.0
    %1013 = vmatpush1.msra.mxu0 0.0
    %1014 = vmatprep.subr.mxu0 0.0
    %1015 = vmatpush1.msra.mxu0 0.0
    %1016 = vmatprep.subr.mxu0 0.0
    %1017 = vmatpush1.msra.mxu0 0.0
    %1018 = vmatprep.subr.mxu0 0.0
    %1019 = vmatpush1.msra.mxu0 0.0
    %1020 = vmatprep.subr.mxu0 0.0
    %1021 = vmatpush1.msra.mxu0 0.0
    %1022 = vmatprep.subr.mxu0 0.0
    %1023 = vmatpush1.msra.mxu0 0.0
    %1024 = vmatprep.subr.mxu0 0.0
    %1025 = vmatpush1.msra.mxu0 0.0
    %1026 = vmatprep.subr.mxu0 0.0
    %1027 = vmatpush1.msra.mxu0 0.0
    %1028 = vmatprep.subr.mxu0 0.0
    %1029 = vmatpush1.msra.mxu0 0.0
    %1030 = vmatprep.subr.mxu0 0.0
    %1031 = vmatpush1.msra.mxu0 0.0
    %1032 = vmatprep.subr.mxu0 0.0
    %1033 = vmatpush1.msra.mxu0 0.0
    %1034 = vmatprep.subr.mxu0 0.0
    %1035 = vmatpush1.msra.mxu0 0.0
    %1036 = vmatprep.mubr.f32.mxu0 0.0
    %1037 = vmatmul.mubr.f32.gmra.mrb[0].mxu0 %v970
    %v1038 = vpop.f32.mrb[0].mxu0
    %v1039 = vadd.f32 0.0, %v1038
    %v1040 = vpop.f32.mrb[0].mxu0
    %1041 = vdwg.mxu0
    %v1043 = vrot.slane %v966, 4
    %1044 = vrot.lane.b32.xlu0 %v1043, 32
    %v1045 = vpop.permute.xlu0 %1044
    %v1046 = vsel %vm203, %v1045, 0
    %1048 = vmatprep.subr.mxu0 0.0
    %1049 = vmatpush1.msra.mxu0 %v289
    %1050 = vmatprep.subr.mxu0 0.0
    %1051 = vmatpush1.msra.mxu0 %v290
    %1052 = vmatprep.subr.mxu0 0.0
    %1053 = vmatpush1.msra.mxu0 %v291
    %1054 = vmatprep.subr.mxu0 0.0
    %1055 = vmatpush1.msra.mxu0 %v292
    %1056 = vmatprep.subr.mxu0 0.0
    %1057 = vmatpush1.msra.mxu0 0.0
    %1058 = vmatprep.subr.mxu0 0.0
    %1059 = vmatpush1.msra.mxu0 0.0
    %1060 = vmatprep.subr.mxu0 0.0
    %1061 = vmatpush1.msra.mxu0 0.0
    %1062 = vmatprep.subr.mxu0 0.0
    %1063 = vmatpush1.msra.mxu0 0.0
    %1064 = vmatprep.subr.mxu0 0.0
    %1065 = vmatpush1.msra.mxu0 0.0
    %1066 = vmatprep.subr.mxu0 0.0
    %1067 = vmatpush1.msra.mxu0 0.0
    %1068 = vmatprep.subr.mxu0 0.0
    %1069 = vmatpush1.msra.mxu0 0.0
    %1070 = vmatprep.subr.mxu0 0.0
    %1071 = vmatpush1.msra.mxu0 0.0
    %1072 = vmatprep.subr.mxu0 0.0
    %1073 = vmatpush1.msra.mxu0 0.0
    %1074 = vmatprep.subr.mxu0 0.0
    %1075 = vmatpush1.msra.mxu0 0.0
    %1076 = vmatprep.subr.mxu0 0.0
    %1077 = vmatpush1.msra.mxu0 0.0
    %1078 = vmatprep.subr.mxu0 0.0
    %1079 = vmatpush1.msra.mxu0 0.0
    %1080 = vmatprep.subr.mxu0 0.0
    %1081 = vmatpush1.msra.mxu0 0.0
    %1082 = vmatprep.subr.mxu0 0.0
    %1083 = vmatpush1.msra.mxu0 0.0
    %1084 = vmatprep.subr.mxu0 0.0
    %1085 = vmatpush1.msra.mxu0 0.0
    %1086 = vmatprep.subr.mxu0 0.0
    %1087 = vmatpush1.msra.mxu0 0.0
    %1088 = vmatprep.subr.mxu0 0.0
    %1089 = vmatpush1.msra.mxu0 0.0
    %1090 = vmatprep.subr.mxu0 0.0
    %1091 = vmatpush1.msra.mxu0 0.0
    %1092 = vmatprep.subr.mxu0 0.0
    %1093 = vmatpush1.msra.mxu0 0.0
    %1094 = vmatprep.subr.mxu0 0.0
    %1095 = vmatpush1.msra.mxu0 0.0
    %1096 = vmatprep.subr.mxu0 0.0
    %1097 = vmatpush1.msra.mxu0 0.0
    %1098 = vmatprep.subr.mxu0 0.0
    %1099 = vmatpush1.msra.mxu0 0.0
    %1100 = vmatprep.subr.mxu0 0.0
    %1101 = vmatpush1.msra.mxu0 0.0
    %1102 = vmatprep.subr.mxu0 0.0
    %1103 = vmatpush1.msra.mxu0 0.0
    %1104 = vmatprep.subr.mxu0 0.0
    %1105 = vmatpush1.msra.mxu0 0.0
    %1106 = vmatprep.subr.mxu0 0.0
    %1107 = vmatpush1.msra.mxu0 0.0
    %1108 = vmatprep.subr.mxu0 0.0
    %1109 = vmatpush1.msra.mxu0 0.0
    %1110 = vmatprep.subr.mxu0 0.0
    %1111 = vmatpush1.msra.mxu0 0.0
    %1112 = vmatprep.mubr.f32.mxu0 0.0
    %1113 = vmatmul.mubr.f32.gmra.mrb[0].mxu0 %v1046
    %v1114 = vpop.f32.mrb[0].mxu0
    %v1115 = vadd.f32 %v1039, %v1114
    %v1116 = vpop.f32.mrb[0].mxu0
    %1117 = vdwg.mxu0
    %v1118 = vadd.f32 %v1115, %v558
    %v1119 = vxor.u32 %v1118, 2147483648
    %v1120 = vmul.f32 %v1119, 1.442695
    %v1121 = vpow.pop %v1120
    %v1122 = vadd.f32 %v1121, 1.0
    %v1123 = vrcp.pop %v1122
    %v1124 = vmul.f32 1.0, %v1123
    %v1125 = vtanh.pop %v1118
    %v1126 = vmul.f32 %v1124, %v859
    %1128 = vrot.lane.b32.xlu0 %v1125, 64
    %v1129 = vpop.permute.xlu0 %1128
    %v1131 = vmul.f32 %v1124, %v1129
    %1133 = vrot.lane.b32.xlu0 %v1131, 32
    %v1134 = vpop.permute.xlu0 %1133
    %v1136 = vadd.f32 %v1126, %v1134
    %v1137 = vtanh.pop %v1136
    %1139 = vrot.lane.b32.xlu0 %v1137, 64
    %v1140 = vpop.permute.xlu0 %1139
    %v1142 = vmul.f32 %v1124, %v1140
    %1143 = vmatprep.subr.mxu0 0.0
    %1144 = vmatpush1.msra.mxu0 %v285
    %1145 = vmatprep.subr.mxu0 0.0
    %1146 = vmatpush1.msra.mxu0 %v286
    %1147 = vmatprep.subr.mxu0 0.0
    %1148 = vmatpush1.msra.mxu0 %v287
    %1149 = vmatprep.subr.mxu0 0.0
    %1150 = vmatpush1.msra.mxu0 %v288
    %1151 = vmatprep.subr.mxu0 0.0
    %1152 = vmatpush1.msra.mxu0 0.0
    %1153 = vmatprep.subr.mxu0 0.0
    %1154 = vmatpush1.msra.mxu0 0.0
    %1155 = vmatprep.subr.mxu0 0.0
    %1156 = vmatpush1.msra.mxu0 0.0
    %1157 = vmatprep.subr.mxu0 0.0
    %1158 = vmatpush1.msra.mxu0 0.0
    %1159 = vmatprep.subr.mxu0 0.0
    %1160 = vmatpush1.msra.mxu0 0.0
    %1161 = vmatprep.subr.mxu0 0.0
    %1162 = vmatpush1.msra.mxu0 0.0
    %1163 = vmatprep.subr.mxu0 0.0
    %1164 = vmatpush1.msra.mxu0 0.0
    %1165 = vmatprep.subr.mxu0 0.0
    %1166 = vmatpush1.msra.mxu0 0.0
    %1167 = vmatprep.subr.mxu0 0.0
    %1168 = vmatpush1.msra.mxu0 0.0
    %1169 = vmatprep.subr.mxu0 0.0
    %1170 = vmatpush1.msra.mxu0 0.0
    %1171 = vmatprep.subr.mxu0 0.0
    %1172 = vmatpush1.msra.mxu0 0.0
    %1173 = vmatprep.subr.mxu0 0.0
    %1174 = vmatpush1.msra.mxu0 0.0
    %1175 = vmatprep.subr.mxu0 0.0
    %1176 = vmatpush1.msra.mxu0 0.0
    %1177 = vmatprep.subr.mxu0 0.0
    %1178 = vmatpush1.msra.mxu0 0.0
    %1179 = vmatprep.subr.mxu0 0.0
    %1180 = vmatpush1.msra.mxu0 0.0
    %1181 = vmatprep.subr.mxu0 0.0
    %1182 = vmatpush1.msra.mxu0 0.0
    %1183 = vmatprep.subr.mxu0 0.0
    %1184 = vmatpush1.msra.mxu0 0.0
    %1185 = vmatprep.subr.mxu0 0.0
    %1186 = vmatpush1.msra.mxu0 0.0
    %1187 = vmatprep.subr.mxu0 0.0
    %1188 = vmatpush1.msra.mxu0 0.0
    %1189 = vmatprep.subr.mxu0 0.0
    %1190 = vmatpush1.msra.mxu0 0.0
    %1191 = vmatprep.subr.mxu0 0.0
    %1192 = vmatpush1.msra.mxu0 0.0
    %1193 = vmatprep.subr.mxu0 0.0
    %1194 = vmatpush1.msra.mxu0 0.0
    %1195 = vmatprep.subr.mxu0 0.0
    %1196 = vmatpush1.msra.mxu0 0.0
    %1197 = vmatprep.subr.mxu0 0.0
    %1198 = vmatpush1.msra.mxu0 0.0
    %1199 = vmatprep.subr.mxu0 0.0
    %1200 = vmatpush1.msra.mxu0 0.0
    %1201 = vmatprep.subr.mxu0 0.0
    %1202 = vmatpush1.msra.mxu0 0.0
    %1203 = vmatprep.subr.mxu0 0.0
    %1204 = vmatpush1.msra.mxu0 0.0
    %1205 = vmatprep.subr.mxu0 0.0
    %1206 = vmatpush1.msra.mxu0 0.0
    %1207 = vmatprep.mubr.f32.mxu0 0.0
    %1208 = vmatmul.mubr.f32.gmra.mrb[0].mxu0 %v1046
    %v1209 = vpop.f32.mrb[0].mxu0
    %v1210 = vadd.f32 0.0, %v1209
    %v1211 = vpop.f32.mrb[0].mxu0
    %1212 = vdwg.mxu0
    %v1214 = vrot.slane %v1210, 2
    %v1216 = vadd.f32 %v277, %v1214
    %v1217 = vxor.u32 %v1216, 2147483648
    %v1218 = vmul.f32 %v1217, 1.442695
    %v1219 = vpow.pop %v1218
    %v1220 = vadd.f32 %v1219, 1.0
    %v1221 = vrcp.pop %v1220
    %v1222 = vmul.f32 1.0, %v1221
    %v1223 = vtanh.pop %v1216
    %v1225 = vrot.slane %v960, 6
    %v1227 = vmul.f32 %v1222, %v1225
    %1229 = vrot.lane.b32.xlu0 %v1223, 64
    %v1230 = vpop.permute.xlu0 %1229
    %v1232 = vmul.f32 %v1222, %v1230
    %1234 = vrot.lane.b32.xlu0 %v1232, 32
    %v1235 = vpop.permute.xlu0 %1234
    %v1237 = vadd.f32 %v1227, %v1235
    %v1238 = vtanh.pop %v1237
    %1240 = vrot.lane.b32.xlu0 %v1238, 64
    %v1241 = vpop.permute.xlu0 %1240
    %v1243 = vmul.f32 %v1222, %v1241
    %1245 = vrot.lane.b32.xlu0 %v1142, 32
    %v1246 = vpop.permute.xlu0 %1245
    %v1247 = vsel %vm203, %v1246, 0
    %1249 = vmatprep.subr.mxu0 0.0
    %1250 = vmatpush1.msra.mxu0 %v293
    %1251 = vmatprep.subr.mxu0 0.0
    %1252 = vmatpush1.msra.mxu0 %v294
    %1253 = vmatprep.subr.mxu0 0.0
    %1254 = vmatpush1.msra.mxu0 %v295
    %1255 = vmatprep.subr.mxu0 0.0
    %1256 = vmatpush1.msra.mxu0 %v296
    %1257 = vmatprep.subr.mxu0 0.0
    %1258 = vmatpush1.msra.mxu0 0.0
    %1259 = vmatprep.subr.mxu0 0.0
    %1260 = vmatpush1.msra.mxu0 0.0
    %1261 = vmatprep.subr.mxu0 0.0
    %1262 = vmatpush1.msra.mxu0 0.0
    %1263 = vmatprep.subr.mxu0 0.0
    %1264 = vmatpush1.msra.mxu0 0.0
    %1265 = vmatprep.subr.mxu0 0.0
    %1266 = vmatpush1.msra.mxu0 0.0
    %1267 = vmatprep.subr.mxu0 0.0
    %1268 = vmatpush1.msra.mxu0 0.0
    %1269 = vmatprep.subr.mxu0 0.0
    %1270 = vmatpush1.msra.mxu0 0.0
    %1271 = vmatprep.subr.mxu0 0.0
    %1272 = vmatpush1.msra.mxu0 0.0
    %1273 = vmatprep.subr.mxu0 0.0
    %1274 = vmatpush1.msra.mxu0 0.0
    %1275 = vmatprep.subr.mxu0 0.0
    %1276 = vmatpush1.msra.mxu0 0.0
    %1277 = vmatprep.subr.mxu0 0.0
    %1278 = vmatpush1.msra.mxu0 0.0
    %1279 = vmatprep.subr.mxu0 0.0
    %1280 = vmatpush1.msra.mxu0 0.0
    %1281 = vmatprep.subr.mxu0 0.0
    %1282 = vmatpush1.msra.mxu0 0.0
    %1283 = vmatprep.subr.mxu0 0.0
    %1284 = vmatpush1.msra.mxu0 0.0
    %1285 = vmatprep.subr.mxu0 0.0
    %1286 = vmatpush1.msra.mxu0 0.0
    %1287 = vmatprep.subr.mxu0 0.0
    %1288 = vmatpush1.msra.mxu0 0.0
    %1289 = vmatprep.subr.mxu0 0.0
    %1290 = vmatpush1.msra.mxu0 0.0
    %1291 = vmatprep.subr.mxu0 0.0
    %1292 = vmatpush1.msra.mxu0 0.0
    %1293 = vmatprep.subr.mxu0 0.0
    %1294 = vmatpush1.msra.mxu0 0.0
    %1295 = vmatprep.subr.mxu0 0.0
    %1296 = vmatpush1.msra.mxu0 0.0
    %1297 = vmatprep.subr.mxu0 0.0
    %1298 = vmatpush1.msra.mxu0 0.0
    %1299 = vmatprep.subr.mxu0 0.0
    %1300 = vmatpush1.msra.mxu0 0.0
    %1301 = vmatprep.subr.mxu0 0.0
    %1302 = vmatpush1.msra.mxu0 0.0
    %1303 = vmatprep.subr.mxu0 0.0
    %1304 = vmatpush1.msra.mxu0 0.0
    %1305 = vmatprep.subr.mxu0 0.0
    %1306 = vmatpush1.msra.mxu0 0.0
    %1307 = vmatprep.subr.mxu0 0.0
    %1308 = vmatpush1.msra.mxu0 0.0
    %1309 = vmatprep.subr.mxu0 0.0
    %1310 = vmatpush1.msra.mxu0 0.0
    %1311 = vmatprep.subr.mxu0 0.0
    %1312 = vmatpush1.msra.mxu0 0.0
    %1313 = vmatprep.mubr.f32.mxu0 0.0
    %1314 = vmatmul.mubr.f32.gmra.mrb[0].mxu0 %v1247
    %v1315 = vpop.f32.mrb[0].mxu0
    %v1316 = vadd.f32 0.0, %v1315
    %v1317 = vpop.f32.mrb[0].mxu0
    %1318 = vdwg.mxu0
    %v1320 = vrot.slane %v1243, 6
    %1321 = vrot.lane.b32.xlu0 %v1320, 32
    %v1322 = vpop.permute.xlu0 %1321
    %v1323 = vsel %vm203, %v1322, 0
    %1325 = vmatprep.subr.mxu0 0.0
    %1326 = vmatpush1.msra.mxu0 %v289
    %1327 = vmatprep.subr.mxu0 0.0
    %1328 = vmatpush1.msra.mxu0 %v290
    %1329 = vmatprep.subr.mxu0 0.0
    %1330 = vmatpush1.msra.mxu0 %v291
    %1331 = vmatprep.subr.mxu0 0.0
    %1332 = vmatpush1.msra.mxu0 %v292
    %1333 = vmatprep.subr.mxu0 0.0
    %1334 = vmatpush1.msra.mxu0 0.0
    %1335 = vmatprep.subr.mxu0 0.0
    %1336 = vmatpush1.msra.mxu0 0.0
    %1337 = vmatprep.subr.mxu0 0.0
    %1338 = vmatpush1.msra.mxu0 0.0
    %1339 = vmatprep.subr.mxu0 0.0
    %1340 = vmatpush1.msra.mxu0 0.0
    %1341 = vmatprep.subr.mxu0 0.0
    %1342 = vmatpush1.msra.mxu0 0.0
    %1343 = vmatprep.subr.mxu0 0.0
    %1344 = vmatpush1.msra.mxu0 0.0
    %1345 = vmatprep.subr.mxu0 0.0
    %1346 = vmatpush1.msra.mxu0 0.0
    %1347 = vmatprep.subr.mxu0 0.0
    %1348 = vmatpush1.msra.mxu0 0.0
    %1349 = vmatprep.subr.mxu0 0.0
    %1350 = vmatpush1.msra.mxu0 0.0
    %1351 = vmatprep.subr.mxu0 0.0
    %1352 = vmatpush1.msra.mxu0 0.0
    %1353 = vmatprep.subr.mxu0 0.0
    %1354 = vmatpush1.msra.mxu0 0.0
    %1355 = vmatprep.subr.mxu0 0.0
    %1356 = vmatpush1.msra.mxu0 0.0
    %1357 = vmatprep.subr.mxu0 0.0
    %1358 = vmatpush1.msra.mxu0 0.0
    %1359 = vmatprep.subr.mxu0 0.0
    %1360 = vmatpush1.msra.mxu0 0.0
    %1361 = vmatprep.subr.mxu0 0.0
    %1362 = vmatpush1.msra.mxu0 0.0
    %1363 = vmatprep.subr.mxu0 0.0
    %1364 = vmatpush1.msra.mxu0 0.0
    %1365 = vmatprep.subr.mxu0 0.0
    %1366 = vmatpush1.msra.mxu0 0.0
    %1367 = vmatprep.subr.mxu0 0.0
    %1368 = vmatpush1.msra.mxu0 0.0
    %1369 = vmatprep.subr.mxu0 0.0
    %1370 = vmatpush1.msra.mxu0 0.0
    %1371 = vmatprep.subr.mxu0 0.0
    %1372 = vmatpush1.msra.mxu0 0.0
    %1373 = vmatprep.subr.mxu0 0.0
    %1374 = vmatpush1.msra.mxu0 0.0
    %1375 = vmatprep.subr.mxu0 0.0
    %1376 = vmatpush1.msra.mxu0 0.0
    %1377 = vmatprep.subr.mxu0 0.0
    %1378 = vmatpush1.msra.mxu0 0.0
    %1379 = vmatprep.subr.mxu0 0.0
    %1380 = vmatpush1.msra.mxu0 0.0
    %1381 = vmatprep.subr.mxu0 0.0
    %1382 = vmatpush1.msra.mxu0 0.0
    %1383 = vmatprep.subr.mxu0 0.0
    %1384 = vmatpush1.msra.mxu0 0.0
    %1385 = vmatprep.subr.mxu0 0.0
    %1386 = vmatpush1.msra.mxu0 0.0
    %1387 = vmatprep.subr.mxu0 0.0
    %1388 = vmatpush1.msra.mxu0 0.0
    %1389 = vmatprep.mubr.f32.mxu0 0.0
    %1390 = vmatmul.mubr.f32.gmra.mrb[0].mxu0 %v1323
    %v1391 = vpop.f32.mrb[0].mxu0
    %v1392 = vadd.f32 %v1316, %v1391
    %v1393 = vpop.f32.mrb[0].mxu0
    %1394 = vdwg.mxu0
    %v1395 = vadd.f32 %v1392, %v558
    %v1396 = vxor.u32 %v1395, 2147483648
    %v1397 = vmul.f32 %v1396, 1.442695
    %v1398 = vpow.pop %v1397
    %v1399 = vadd.f32 %v1398, 1.0
    %v1400 = vrcp.pop %v1399
    %v1401 = vmul.f32 1.0, %v1400
    %v1402 = vtanh.pop %v1395
    %v1403 = vmul.f32 %v1401, %v1136
    %1405 = vrot.lane.b32.xlu0 %v1402, 64
    %v1406 = vpop.permute.xlu0 %1405
    %v1408 = vmul.f32 %v1401, %v1406
    %1410 = vrot.lane.b32.xlu0 %v1408, 32
    %v1411 = vpop.permute.xlu0 %1410
    %v1413 = vadd.f32 %v1403, %v1411
    %v1414 = vtanh.pop %v1413
    %1416 = vrot.lane.b32.xlu0 %v1414, 64
    %v1417 = vpop.permute.xlu0 %1416
    %v1419 = vmul.f32 %v1401, %v1417
    %1420 = vmatprep.subr.mxu0 0.0
    %1421 = vmatpush1.msra.mxu0 %v285
    %1422 = vmatprep.subr.mxu0 0.0
    %1423 = vmatpush1.msra.mxu0 %v286
    %1424 = vmatprep.subr.mxu0 0.0
    %1425 = vmatpush1.msra.mxu0 %v287
    %1426 = vmatprep.subr.mxu0 0.0
    %1427 = vmatpush1.msra.mxu0 %v288
    %1428 = vmatprep.subr.mxu0 0.0
    %1429 = vmatpush1.msra.mxu0 0.0
    %1430 = vmatprep.subr.mxu0 0.0
    %1431 = vmatpush1.msra.mxu0 0.0
    %1432 = vmatprep.subr.mxu0 0.0
    %1433 = vmatpush1.msra.mxu0 0.0
    %1434 = vmatprep.subr.mxu0 0.0
    %1435 = vmatpush1.msra.mxu0 0.0
    %1436 = vmatprep.subr.mxu0 0.0
    %1437 = vmatpush1.msra.mxu0 0.0
    %1438 = vmatprep.subr.mxu0 0.0
    %1439 = vmatpush1.msra.mxu0 0.0
    %1440 = vmatprep.subr.mxu0 0.0
    %1441 = vmatpush1.msra.mxu0 0.0
    %1442 = vmatprep.subr.mxu0 0.0
    %1443 = vmatpush1.msra.mxu0 0.0
    %1444 = vmatprep.subr.mxu0 0.0
    %1445 = vmatpush1.msra.mxu0 0.0
    %1446 = vmatprep.subr.mxu0 0.0
    %1447 = vmatpush1.msra.mxu0 0.0
    %1448 = vmatprep.subr.mxu0 0.0
    %1449 = vmatpush1.msra.mxu0 0.0
    %1450 = vmatprep.subr.mxu0 0.0
    %1451 = vmatpush1.msra.mxu0 0.0
    %1452 = vmatprep.subr.mxu0 0.0
    %1453 = vmatpush1.msra.mxu0 0.0
    %1454 = vmatprep.subr.mxu0 0.0
    %1455 = vmatpush1.msra.mxu0 0.0
    %1456 = vmatprep.subr.mxu0 0.0
    %1457 = vmatpush1.msra.mxu0 0.0
    %1458 = vmatprep.subr.mxu0 0.0
    %1459 = vmatpush1.msra.mxu0 0.0
    %1460 = vmatprep.subr.mxu0 0.0
    %1461 = vmatpush1.msra.mxu0 0.0
    %1462 = vmatprep.subr.mxu0 0.0
    %1463 = vmatpush1.msra.mxu0 0.0
    %1464 = vmatprep.subr.mxu0 0.0
    %1465 = vmatpush1.msra.mxu0 0.0
    %1466 = vmatprep.subr.mxu0 0.0
    %1467 = vmatpush1.msra.mxu0 0.0
    %1468 = vmatprep.subr.mxu0 0.0
    %1469 = vmatpush1.msra.mxu0 0.0
    %1470 = vmatprep.subr.mxu0 0.0
    %1471 = vmatpush1.msra.mxu0 0.0
    %1472 = vmatprep.subr.mxu0 0.0
    %1473 = vmatpush1.msra.mxu0 0.0
    %1474 = vmatprep.subr.mxu0 0.0
    %1475 = vmatpush1.msra.mxu0 0.0
    %1476 = vmatprep.subr.mxu0 0.0
    %1477 = vmatpush1.msra.mxu0 0.0
    %1478 = vmatprep.subr.mxu0 0.0
    %1479 = vmatpush1.msra.mxu0 0.0
    %1480 = vmatprep.subr.mxu0 0.0
    %1481 = vmatpush1.msra.mxu0 0.0
    %1482 = vmatprep.subr.mxu0 0.0
    %1483 = vmatpush1.msra.mxu0 0.0
    %1484 = vmatprep.mubr.f32.mxu0 0.0
    %1485 = vmatmul.mubr.f32.gmra.mrb[0].mxu0 %v1323
    %v1486 = vpop.f32.mrb[0].mxu0
    %v1487 = vadd.f32 0.0, %v1486
    %v1488 = vpop.f32.mrb[0].mxu0
    %1489 = vdwg.mxu0
    %v1490 = vadd.f32 %v282, %v1487
    %v1491 = vxor.u32 %v1490, 2147483648
    %v1492 = vmul.f32 %v1491, 1.442695
    %v1493 = vpow.pop %v1492
    %v1494 = vadd.f32 %v1493, 1.0
    %v1495 = vrcp.pop %v1494
    %v1496 = vmul.f32 1.0, %v1495
    %v1497 = vtanh.pop %v1490
    %v1499 = vrot.slane %v1237, 6
    %v1501 = vmul.f32 %v1496, %v1499
    %1503 = vrot.lane.b32.xlu0 %v1497, 64
    %v1504 = vpop.permute.xlu0 %1503
    %v1506 = vmul.f32 %v1496, %v1504
    %1508 = vrot.lane.b32.xlu0 %v1506, 32
    %v1509 = vpop.permute.xlu0 %1508
    %v1511 = vadd.f32 %v1501, %v1509
    %v1512 = vtanh.pop %v1511
    %1514 = vrot.lane.b32.xlu0 %v1512, 64
    %v1515 = vpop.permute.xlu0 %1514
    %v1517 = vmul.f32 %v1496, %v1515
    %1519 = vrot.lane.b32.xlu0 %v1419, 32
    %v1520 = vpop.permute.xlu0 %1519
    %v1521 = vsel %vm203, %v1520, 0
    %1523 = vmatprep.subr.mxu0 0.0
    %1524 = vmatpush1.msra.mxu0 %v293
    %1525 = vmatprep.subr.mxu0 0.0
    %1526 = vmatpush1.msra.mxu0 %v294
    %1527 = vmatprep.subr.mxu0 0.0
    %1528 = vmatpush1.msra.mxu0 %v295
    %1529 = vmatprep.subr.mxu0 0.0
    %1530 = vmatpush1.msra.mxu0 %v296
    %1531 = vmatprep.subr.mxu0 0.0
    %1532 = vmatpush1.msra.mxu0 0.0
    %1533 = vmatprep.subr.mxu0 0.0
    %1534 = vmatpush1.msra.mxu0 0.0
    %1535 = vmatprep.subr.mxu0 0.0
    %1536 = vmatpush1.msra.mxu0 0.0
    %1537 = vmatprep.subr.mxu0 0.0
    %1538 = vmatpush1.msra.mxu0 0.0
    %1539 = vmatprep.subr.mxu0 0.0
    %1540 = vmatpush1.msra.mxu0 0.0
    %1541 = vmatprep.subr.mxu0 0.0
    %1542 = vmatpush1.msra.mxu0 0.0
    %1543 = vmatprep.subr.mxu0 0.0
    %1544 = vmatpush1.msra.mxu0 0.0
    %1545 = vmatprep.subr.mxu0 0.0
    %1546 = vmatpush1.msra.mxu0 0.0
    %1547 = vmatprep.subr.mxu0 0.0
    %1548 = vmatpush1.msra.mxu0 0.0
    %1549 = vmatprep.subr.mxu0 0.0
    %1550 = vmatpush1.msra.mxu0 0.0
    %1551 = vmatprep.subr.mxu0 0.0
    %1552 = vmatpush1.msra.mxu0 0.0
    %1553 = vmatprep.subr.mxu0 0.0
    %1554 = vmatpush1.msra.mxu0 0.0
    %1555 = vmatprep.subr.mxu0 0.0
    %1556 = vmatpush1.msra.mxu0 0.0
    %1557 = vmatprep.subr.mxu0 0.0
    %1558 = vmatpush1.msra.mxu0 0.0
    %1559 = vmatprep.subr.mxu0 0.0
    %1560 = vmatpush1.msra.mxu0 0.0
    %1561 = vmatprep.subr.mxu0 0.0
    %1562 = vmatpush1.msra.mxu0 0.0
    %1563 = vmatprep.subr.mxu0 0.0
    %1564 = vmatpush1.msra.mxu0 0.0
    %1565 = vmatprep.subr.mxu0 0.0
    %1566 = vmatpush1.msra.mxu0 0.0
    %1567 = vmatprep.subr.mxu0 0.0
    %1568 = vmatpush1.msra.mxu0 0.0
    %1569 = vmatprep.subr.mxu0 0.0
    %1570 = vmatpush1.msra.mxu0 0.0
    %1571 = vmatprep.subr.mxu0 0.0
    %1572 = vmatpush1.msra.mxu0 0.0
    %1573 = vmatprep.subr.mxu0 0.0
    %1574 = vmatpush1.msra.mxu0 0.0
    %1575 = vmatprep.subr.mxu0 0.0
    %1576 = vmatpush1.msra.mxu0 0.0
    %1577 = vmatprep.subr.mxu0 0.0
    %1578 = vmatpush1.msra.mxu0 0.0
    %1579 = vmatprep.subr.mxu0 0.0
    %1580 = vmatpush1.msra.mxu0 0.0
    %1581 = vmatprep.subr.mxu0 0.0
    %1582 = vmatpush1.msra.mxu0 0.0
    %1583 = vmatprep.subr.mxu0 0.0
    %1584 = vmatpush1.msra.mxu0 0.0
    %1585 = vmatprep.subr.mxu0 0.0
    %1586 = vmatpush1.msra.mxu0 0.0
    %1587 = vmatprep.mubr.f32.mxu0 0.0
    %1588 = vmatmul.mubr.f32.gmra.mrb[0].mxu0 %v1521
    %v1589 = vpop.f32.mrb[0].mxu0
    %v1590 = vadd.f32 0.0, %v1589
    %v1591 = vpop.f32.mrb[0].mxu0
    %1592 = vdwg.mxu0
    %1594 = vrot.lane.b32.xlu0 %v1517, 32
    %v1595 = vpop.permute.xlu0 %1594
    %v1596 = vsel %vm203, %v1595, 0
    %1598 = vmatprep.subr.mxu0 0.0
    %1599 = vmatpush1.msra.mxu0 %v289
    %1600 = vmatprep.subr.mxu0 0.0
    %1601 = vmatpush1.msra.mxu0 %v290
    %1602 = vmatprep.subr.mxu0 0.0
    %1603 = vmatpush1.msra.mxu0 %v291
    %1604 = vmatprep.subr.mxu0 0.0
    %1605 = vmatpush1.msra.mxu0 %v292
    %1606 = vmatprep.subr.mxu0 0.0
    %1607 = vmatpush1.msra.mxu0 0.0
    %1608 = vmatprep.subr.mxu0 0.0
    %1609 = vmatpush1.msra.mxu0 0.0
    %1610 = vmatprep.subr.mxu0 0.0
    %1611 = vmatpush1.msra.mxu0 0.0
    %1612 = vmatprep.subr.mxu0 0.0
    %1613 = vmatpush1.msra.mxu0 0.0
    %1614 = vmatprep.subr.mxu0 0.0
    %1615 = vmatpush1.msra.mxu0 0.0
    %1616 = vmatprep.subr.mxu0 0.0
    %1617 = vmatpush1.msra.mxu0 0.0
    %1618 = vmatprep.subr.mxu0 0.0
    %1619 = vmatpush1.msra.mxu0 0.0
    %1620 = vmatprep.subr.mxu0 0.0
    %1621 = vmatpush1.msra.mxu0 0.0
    %1622 = vmatprep.subr.mxu0 0.0
    %1623 = vmatpush1.msra.mxu0 0.0
    %1624 = vmatprep.subr.mxu0 0.0
    %1625 = vmatpush1.msra.mxu0 0.0
    %1626 = vmatprep.subr.mxu0 0.0
    %1627 = vmatpush1.msra.mxu0 0.0
    %1628 = vmatprep.subr.mxu0 0.0
    %1629 = vmatpush1.msra.mxu0 0.0
    %1630 = vmatprep.subr.mxu0 0.0
    %1631 = vmatpush1.msra.mxu0 0.0
    %1632 = vmatprep.subr.mxu0 0.0
    %1633 = vmatpush1.msra.mxu0 0.0
    %1634 = vmatprep.subr.mxu0 0.0
    %1635 = vmatpush1.msra.mxu0 0.0
    %1636 = vmatprep.subr.mxu0 0.0
    %1637 = vmatpush1.msra.mxu0 0.0
    %1638 = vmatprep.subr.mxu0 0.0
    %1639 = vmatpush1.msra.mxu0 0.0
    %1640 = vmatprep.subr.mxu0 0.0
    %1641 = vmatpush1.msra.mxu0 0.0
    %1642 = vmatprep.subr.mxu0 0.0
    %1643 = vmatpush1.msra.mxu0 0.0
    %1644 = vmatprep.subr.mxu0 0.0
    %1645 = vmatpush1.msra.mxu0 0.0
    %1646 = vmatprep.subr.mxu0 0.0
    %1647 = vmatpush1.msra.mxu0 0.0
    %1648 = vmatprep.subr.mxu0 0.0
    %1649 = vmatpush1.msra.mxu0 0.0
    %1650 = vmatprep.subr.mxu0 0.0
    %1651 = vmatpush1.msra.mxu0 0.0
    %1652 = vmatprep.subr.mxu0 0.0
    %1653 = vmatpush1.msra.mxu0 0.0
    %1654 = vmatprep.subr.mxu0 0.0
    %1655 = vmatpush1.msra.mxu0 0.0
    %1656 = vmatprep.subr.mxu0 0.0
    %1657 = vmatpush1.msra.mxu0 0.0
    %1658 = vmatprep.subr.mxu0 0.0
    %1659 = vmatpush1.msra.mxu0 0.0
    %1660 = vmatprep.subr.mxu0 0.0
    %1661 = vmatpush1.msra.mxu0 0.0
    %1662 = vmatprep.mubr.f32.mxu0 0.0
    %1663 = vmatmul.mubr.f32.gmra.mrb[0].mxu0 %v1596
    %v1664 = vpop.f32.mrb[0].mxu0
    %v1665 = vadd.f32 %v1590, %v1664
    %v1666 = vpop.f32.mrb[0].mxu0
    %1667 = vdwg.mxu0
    %v1668 = vadd.f32 %v1665, %v558
    %v1669 = vxor.u32 %v1668, 2147483648
    %v1670 = vmul.f32 %v1669, 1.442695
    %v1671 = vpow.pop %v1670
    %v1672 = vadd.f32 %v1671, 1.0
    %v1673 = vrcp.pop %v1672
    %v1674 = vmul.f32 1.0, %v1673
    %v1675 = vtanh.pop %v1668
    %v1676 = vmul.f32 %v1674, %v1413
    %1678 = vrot.lane.b32.xlu0 %v1675, 64
    %v1679 = vpop.permute.xlu0 %1678
    %v1681 = vmul.f32 %v1674, %v1679
    %1683 = vrot.lane.b32.xlu0 %v1681, 32
    %v1684 = vpop.permute.xlu0 %1683
    %v1686 = vadd.f32 %v1676, %v1684
    %v1687 = vtanh.pop %v1686
    %1689 = vrot.lane.b32.xlu0 %v1687, 64
    %v1690 = vpop.permute.xlu0 %1689
    %v1692 = vmul.f32 %v1674, %v1690
    %1693 = vmatprep.subr.mxu0 0.0
    %1694 = vmatpush1.msra.mxu0 %v285
    %1695 = vmatprep.subr.mxu0 0.0
    %1696 = vmatpush1.msra.mxu0 %v286
    %1697 = vmatprep.subr.mxu0 0.0
    %1698 = vmatpush1.msra.mxu0 %v287
    %1699 = vmatprep.subr.mxu0 0.0
    %1700 = vmatpush1.msra.mxu0 %v288
    %1701 = vmatprep.subr.mxu0 0.0
    %1702 = vmatpush1.msra.mxu0 0.0
    %1703 = vmatprep.subr.mxu0 0.0
    %1704 = vmatpush1.msra.mxu0 0.0
    %1705 = vmatprep.subr.mxu0 0.0
    %1706 = vmatpush1.msra.mxu0 0.0
    %1707 = vmatprep.subr.mxu0 0.0
    %1708 = vmatpush1.msra.mxu0 0.0
    %1709 = vmatprep.subr.mxu0 0.0
    %1710 = vmatpush1.msra.mxu0 0.0
    %1711 = vmatprep.subr.mxu0 0.0
    %1712 = vmatpush1.msra.mxu0 0.0
    %1713 = vmatprep.subr.mxu0 0.0
    %1714 = vmatpush1.msra.mxu0 0.0
    %1715 = vmatprep.subr.mxu0 0.0
    %1716 = vmatpush1.msra.mxu0 0.0
    %1717 = vmatprep.subr.mxu0 0.0
    %1718 = vmatpush1.msra.mxu0 0.0
    %1719 = vmatprep.subr.mxu0 0.0
    %1720 = vmatpush1.msra.mxu0 0.0
    %1721 = vmatprep.subr.mxu0 0.0
    %1722 = vmatpush1.msra.mxu0 0.0
    %1723 = vmatprep.subr.mxu0 0.0
    %1724 = vmatpush1.msra.mxu0 0.0
    %1725 = vmatprep.subr.mxu0 0.0
    %1726 = vmatpush1.msra.mxu0 0.0
    %1727 = vmatprep.subr.mxu0 0.0
    %1728 = vmatpush1.msra.mxu0 0.0
    %1729 = vmatprep.subr.mxu0 0.0
    %1730 = vmatpush1.msra.mxu0 0.0
    %1731 = vmatprep.subr.mxu0 0.0
    %1732 = vmatpush1.msra.mxu0 0.0
    %1733 = vmatprep.subr.mxu0 0.0
    %1734 = vmatpush1.msra.mxu0 0.0
    %1735 = vmatprep.subr.mxu0 0.0
    %1736 = vmatpush1.msra.mxu0 0.0
    %1737 = vmatprep.subr.mxu0 0.0
    %1738 = vmatpush1.msra.mxu0 0.0
    %1739 = vmatprep.subr.mxu0 0.0
    %1740 = vmatpush1.msra.mxu0 0.0
    %1741 = vmatprep.subr.mxu0 0.0
    %1742 = vmatpush1.msra.mxu0 0.0
    %1743 = vmatprep.subr.mxu0 0.0
    %1744 = vmatpush1.msra.mxu0 0.0
    %1745 = vmatprep.subr.mxu0 0.0
    %1746 = vmatpush1.msra.mxu0 0.0
    %1747 = vmatprep.subr.mxu0 0.0
    %1748 = vmatpush1.msra.mxu0 0.0
    %1749 = vmatprep.subr.mxu0 0.0
    %1750 = vmatpush1.msra.mxu0 0.0
    %1751 = vmatprep.subr.mxu0 0.0
    %1752 = vmatpush1.msra.mxu0 0.0
    %1753 = vmatprep.subr.mxu0 0.0
    %1754 = vmatpush1.msra.mxu0 0.0
    %1755 = vmatprep.subr.mxu0 0.0
    %1756 = vmatpush1.msra.mxu0 0.0
    %1757 = vmatprep.mubr.f32.mxu0 0.0
    %1758 = vmatmul.mubr.f32.gmra.mrb[0].mxu0 %v1596
    %v1759 = vpop.f32.mrb[0].mxu0
    %v1760 = vadd.f32 0.0, %v1759
    %v1761 = vpop.f32.mrb[0].mxu0
    %1762 = vdwg.mxu0
    %v1764 = vrot.slane %v1760, 6
    %v1766 = vadd.f32 %v282, %v1764
    %v1767 = vxor.u32 %v1766, 2147483648
    %v1768 = vmul.f32 %v1767, 1.442695
    %v1769 = vpow.pop %v1768
    %v1770 = vadd.f32 %v1769, 1.0
    %v1771 = vrcp.pop %v1770
    %v1772 = vmul.f32 1.0, %v1771
    %v1773 = vtanh.pop %v1766
    %v1775 = vrot.slane %v1511, 6
    %v1777 = vmul.f32 %v1772, %v1775
    %1779 = vrot.lane.b32.xlu0 %v1773, 64
    %v1780 = vpop.permute.xlu0 %1779
    %v1782 = vmul.f32 %v1772, %v1780
    %1784 = vrot.lane.b32.xlu0 %v1782, 32
    %v1785 = vpop.permute.xlu0 %1784
    %v1787 = vadd.f32 %v1777, %v1785
    %v1788 = vtanh.pop %v1787
    %1790 = vrot.lane.b32.xlu0 %v1788, 64
    %v1791 = vpop.permute.xlu0 %1790
    %v1793 = vmul.f32 %v1772, %v1791
    %1795 = vrot.lane.b32.xlu0 %v1692, 32
    %v1796 = vpop.permute.xlu0 %1795
    %v1797 = vsel %vm203, %v1796, 0
    %1799 = vmatprep.subr.mxu0 0.0
    %1800 = vmatpush1.msra.mxu0 %v293
    %1801 = vmatprep.subr.mxu0 0.0
    %1802 = vmatpush1.msra.mxu0 %v294
    %1803 = vmatprep.subr.mxu0 0.0
    %1804 = vmatpush1.msra.mxu0 %v295
    %1805 = vmatprep.subr.mxu0 0.0
    %1806 = vmatpush1.msra.mxu0 %v296
    %1807 = vmatprep.subr.mxu0 0.0
    %1808 = vmatpush1.msra.mxu0 0.0
    %1809 = vmatprep.subr.mxu0 0.0
    %1810 = vmatpush1.msra.mxu0 0.0
    %1811 = vmatprep.subr.mxu0 0.0
    %1812 = vmatpush1.msra.mxu0 0.0
    %1813 = vmatprep.subr.mxu0 0.0
    %1814 = vmatpush1.msra.mxu0 0.0
    %1815 = vmatprep.subr.mxu0 0.0
    %1816 = vmatpush1.msra.mxu0 0.0
    %1817 = vmatprep.subr.mxu0 0.0
    %1818 = vmatpush1.msra.mxu0 0.0
    %1819 = vmatprep.subr.mxu0 0.0
    %1820 = vmatpush1.msra.mxu0 0.0
    %1821 = vmatprep.subr.mxu0 0.0
    %1822 = vmatpush1.msra.mxu0 0.0
    %1823 = vmatprep.subr.mxu0 0.0
    %1824 = vmatpush1.msra.mxu0 0.0
    %1825 = vmatprep.subr.mxu0 0.0
    %1826 = vmatpush1.msra.mxu0 0.0
    %1827 = vmatprep.subr.mxu0 0.0
    %1828 = vmatpush1.msra.mxu0 0.0
    %1829 = vmatprep.subr.mxu0 0.0
    %1830 = vmatpush1.msra.mxu0 0.0
    %1831 = vmatprep.subr.mxu0 0.0
    %1832 = vmatpush1.msra.mxu0 0.0
    %1833 = vmatprep.subr.mxu0 0.0
    %1834 = vmatpush1.msra.mxu0 0.0
    %1835 = vmatprep.subr.mxu0 0.0
    %1836 = vmatpush1.msra.mxu0 0.0
    %1837 = vmatprep.subr.mxu0 0.0
    %1838 = vmatpush1.msra.mxu0 0.0
    %1839 = vmatprep.subr.mxu0 0.0
    %1840 = vmatpush1.msra.mxu0 0.0
    %1841 = vmatprep.subr.mxu0 0.0
    %1842 = vmatpush1.msra.mxu0 0.0
    %1843 = vmatprep.subr.mxu0 0.0
    %1844 = vmatpush1.msra.mxu0 0.0
    %1845 = vmatprep.subr.mxu0 0.0
    %1846 = vmatpush1.msra.mxu0 0.0
    %1847 = vmatprep.subr.mxu0 0.0
    %1848 = vmatpush1.msra.mxu0 0.0
    %1849 = vmatprep.subr.mxu0 0.0
    %1850 = vmatpush1.msra.mxu0 0.0
    %1851 = vmatprep.subr.mxu0 0.0
    %1852 = vmatpush1.msra.mxu0 0.0
    %1853 = vmatprep.subr.mxu0 0.0
    %1854 = vmatpush1.msra.mxu0 0.0
    %1855 = vmatprep.subr.mxu0 0.0
    %1856 = vmatpush1.msra.mxu0 0.0
    %1857 = vmatprep.subr.mxu0 0.0
    %1858 = vmatpush1.msra.mxu0 0.0
    %1859 = vmatprep.subr.mxu0 0.0
    %1860 = vmatpush1.msra.mxu0 0.0
    %1861 = vmatprep.subr.mxu0 0.0
    %1862 = vmatpush1.msra.mxu0 0.0
    %1863 = vmatprep.mubr.f32.mxu0 0.0
    %1864 = vmatmul.mubr.f32.gmra.mrb[0].mxu0 %v1797
    %v1865 = vpop.f32.mrb[0].mxu0
    %v1866 = vadd.f32 0.0, %v1865
    %v1867 = vpop.f32.mrb[0].mxu0
    %1868 = vdwg.mxu0
    %v1870 = vrot.slane %v1793, 2
    %1871 = vrot.lane.b32.xlu0 %v1870, 32
    %v1872 = vpop.permute.xlu0 %1871
    %v1873 = vsel %vm203, %v1872, 0
    %1875 = vmatprep.subr.mxu0 0.0
    %1876 = vmatpush1.msra.mxu0 %v289
    %1877 = vmatprep.subr.mxu0 0.0
    %1878 = vmatpush1.msra.mxu0 %v290
    %1879 = vmatprep.subr.mxu0 0.0
    %1880 = vmatpush1.msra.mxu0 %v291
    %1881 = vmatprep.subr.mxu0 0.0
    %1882 = vmatpush1.msra.mxu0 %v292
    %1883 = vmatprep.subr.mxu0 0.0
    %1884 = vmatpush1.msra.mxu0 0.0
    %1885 = vmatprep.subr.mxu0 0.0
    %1886 = vmatpush1.msra.mxu0 0.0
    %1887 = vmatprep.subr.mxu0 0.0
    %1888 = vmatpush1.msra.mxu0 0.0
    %1889 = vmatprep.subr.mxu0 0.0
    %1890 = vmatpush1.msra.mxu0 0.0
    %1891 = vmatprep.subr.mxu0 0.0
    %1892 = vmatpush1.msra.mxu0 0.0
    %1893 = vmatprep.subr.mxu0 0.0
    %1894 = vmatpush1.msra.mxu0 0.0
    %1895 = vmatprep.subr.mxu0 0.0
    %1896 = vmatpush1.msra.mxu0 0.0
    %1897 = vmatprep.subr.mxu0 0.0
    %1898 = vmatpush1.msra.mxu0 0.0
    %1899 = vmatprep.subr.mxu0 0.0
    %1900 = vmatpush1.msra.mxu0 0.0
    %1901 = vmatprep.subr.mxu0 0.0
    %1902 = vmatpush1.msra.mxu0 0.0
    %1903 = vmatprep.subr.mxu0 0.0
    %1904 = vmatpush1.msra.mxu0 0.0
    %1905 = vmatprep.subr.mxu0 0.0
    %1906 = vmatpush1.msra.mxu0 0.0
    %1907 = vmatprep.subr.mxu0 0.0
    %1908 = vmatpush1.msra.mxu0 0.0
    %1909 = vmatprep.subr.mxu0 0.0
    %1910 = vmatpush1.msra.mxu0 0.0
    %1911 = vmatprep.subr.mxu0 0.0
    %1912 = vmatpush1.msra.mxu0 0.0
    %1913 = vmatprep.subr.mxu0 0.0
    %1914 = vmatpush1.msra.mxu0 0.0
    %1915 = vmatprep.subr.mxu0 0.0
    %1916 = vmatpush1.msra.mxu0 0.0
    %1917 = vmatprep.subr.mxu0 0.0
    %1918 = vmatpush1.msra.mxu0 0.0
    %1919 = vmatprep.subr.mxu0 0.0
    %1920 = vmatpush1.msra.mxu0 0.0
    %1921 = vmatprep.subr.mxu0 0.0
    %1922 = vmatpush1.msra.mxu0 0.0
    %1923 = vmatprep.subr.mxu0 0.0
    %1924 = vmatpush1.msra.mxu0 0.0
    %1925 = vmatprep.subr.mxu0 0.0
    %1926 = vmatpush1.msra.mxu0 0.0
    %1927 = vmatprep.subr.mxu0 0.0
    %1928 = vmatpush1.msra.mxu0 0.0
    %1929 = vmatprep.subr.mxu0 0.0
    %1930 = vmatpush1.msra.mxu0 0.0
    %1931 = vmatprep.subr.mxu0 0.0
    %1932 = vmatpush1.msra.mxu0 0.0
    %1933 = vmatprep.subr.mxu0 0.0
    %1934 = vmatpush1.msra.mxu0 0.0
    %1935 = vmatprep.subr.mxu0 0.0
    %1936 = vmatpush1.msra.mxu0 0.0
    %1937 = vmatprep.subr.mxu0 0.0
    %1938 = vmatpush1.msra.mxu0 0.0
    %1939 = vmatprep.mubr.f32.mxu0 0.0
    %1940 = vmatmul.mubr.f32.gmra.mrb[0].mxu0 %v1873
    %v1941 = vpop.f32.mrb[0].mxu0
    %v1942 = vadd.f32 %v1866, %v1941
    %v1943 = vpop.f32.mrb[0].mxu0
    %1944 = vdwg.mxu0
    %v1945 = vadd.f32 %v1942, %v558
    %v1946 = vxor.u32 %v1945, 2147483648
    %v1947 = vmul.f32 %v1946, 1.442695
    %v1948 = vpow.pop %v1947
    %v1949 = vadd.f32 %v1948, 1.0
    %v1950 = vrcp.pop %v1949
    %v1951 = vmul.f32 1.0, %v1950
    %v1952 = vtanh.pop %v1945
    %v1953 = vmul.f32 %v1951, %v1686
    %1955 = vrot.lane.b32.xlu0 %v1952, 64
    %v1956 = vpop.permute.xlu0 %1955
    %v1958 = vmul.f32 %v1951, %v1956
    %1960 = vrot.lane.b32.xlu0 %v1958, 32
    %v1961 = vpop.permute.xlu0 %1960
    %v1963 = vadd.f32 %v1953, %v1961
    %v1964 = vtanh.pop %v1963
    %1966 = vrot.lane.b32.xlu0 %v1964, 64
    %v1967 = vpop.permute.xlu0 %1966
    %v1969 = vmul.f32 %v1951, %v1967
    %1970 = vmatprep.subr.mxu0 0.0
    %1971 = vmatpush1.msra.mxu0 %v285
    %1972 = vmatprep.subr.mxu0 0.0
    %1973 = vmatpush1.msra.mxu0 %v286
    %1974 = vmatprep.subr.mxu0 0.0
    %1975 = vmatpush1.msra.mxu0 %v287
    %1976 = vmatprep.subr.mxu0 0.0
    %1977 = vmatpush1.msra.mxu0 %v288
    %1978 = vmatprep.subr.mxu0 0.0
    %1979 = vmatpush1.msra.mxu0 0.0
    %1980 = vmatprep.subr.mxu0 0.0
    %1981 = vmatpush1.msra.mxu0 0.0
    %1982 = vmatprep.subr.mxu0 0.0
    %1983 = vmatpush1.msra.mxu0 0.0
    %1984 = vmatprep.subr.mxu0 0.0
    %1985 = vmatpush1.msra.mxu0 0.0
    %1986 = vmatprep.subr.mxu0 0.0
    %1987 = vmatpush1.msra.mxu0 0.0
    %1988 = vmatprep.subr.mxu0 0.0
    %1989 = vmatpush1.msra.mxu0 0.0
    %1990 = vmatprep.subr.mxu0 0.0
    %1991 = vmatpush1.msra.mxu0 0.0
    %1992 = vmatprep.subr.mxu0 0.0
    %1993 = vmatpush1.msra.mxu0 0.0
    %1994 = vmatprep.subr.mxu0 0.0
    %1995 = vmatpush1.msra.mxu0 0.0
    %1996 = vmatprep.subr.mxu0 0.0
    %1997 = vmatpush1.msra.mxu0 0.0
    %1998 = vmatprep.subr.mxu0 0.0
    %1999 = vmatpush1.msra.mxu0 0.0
    %2000 = vmatprep.subr.mxu0 0.0
    %2001 = vmatpush1.msra.mxu0 0.0
    %2002 = vmatprep.subr.mxu0 0.0
    %2003 = vmatpush1.msra.mxu0 0.0
    %2004 = vmatprep.subr.mxu0 0.0
    %2005 = vmatpush1.msra.mxu0 0.0
    %2006 = vmatprep.subr.mxu0 0.0
    %2007 = vmatpush1.msra.mxu0 0.0
    %2008 = vmatprep.subr.mxu0 0.0
    %2009 = vmatpush1.msra.mxu0 0.0
    %2010 = vmatprep.subr.mxu0 0.0
    %2011 = vmatpush1.msra.mxu0 0.0
    %2012 = vmatprep.subr.mxu0 0.0
    %2013 = vmatpush1.msra.mxu0 0.0
    %2014 = vmatprep.subr.mxu0 0.0
    %2015 = vmatpush1.msra.mxu0 0.0
    %2016 = vmatprep.subr.mxu0 0.0
    %2017 = vmatpush1.msra.mxu0 0.0
    %2018 = vmatprep.subr.mxu0 0.0
    %2019 = vmatpush1.msra.mxu0 0.0
    %2020 = vmatprep.subr.mxu0 0.0
    %2021 = vmatpush1.msra.mxu0 0.0
    %2022 = vmatprep.subr.mxu0 0.0
    %2023 = vmatpush1.msra.mxu0 0.0
    %2024 = vmatprep.subr.mxu0 0.0
    %2025 = vmatpush1.msra.mxu0 0.0
    %2026 = vmatprep.subr.mxu0 0.0
    %2027 = vmatpush1.msra.mxu0 0.0
    %2028 = vmatprep.subr.mxu0 0.0
    %2029 = vmatpush1.msra.mxu0 0.0
    %2030 = vmatprep.subr.mxu0 0.0
    %2031 = vmatpush1.msra.mxu0 0.0
    %2032 = vmatprep.subr.mxu0 0.0
    %2033 = vmatpush1.msra.mxu0 0.0
    %2034 = vmatprep.mubr.f32.mxu0 0.0
    %2035 = vmatmul.mubr.f32.gmra.mrb[0].mxu0 %v1873
    %v2036 = vpop.f32.mrb[0].mxu0
    %v2037 = vadd.f32 0.0, %v2036
    %v2038 = vpop.f32.mrb[0].mxu0
    %2039 = vdwg.mxu0
    %v2041 = vrot.slane %v2037, 4
    %v2043 = vadd.f32 %v282, %v2041
    %v2044 = vxor.u32 %v2043, 2147483648
    %v2045 = vmul.f32 %v2044, 1.442695
    %v2046 = vpow.pop %v2045
    %v2047 = vadd.f32 %v2046, 1.0
    %v2048 = vrcp.pop %v2047
    %v2049 = vmul.f32 1.0, %v2048
    %v2050 = vtanh.pop %v2043
    %v2052 = vrot.slane %v1787, 6
    %v2054 = vmul.f32 %v2049, %v2052
    %2056 = vrot.lane.b32.xlu0 %v2050, 64
    %v2057 = vpop.permute.xlu0 %2056
    %v2059 = vmul.f32 %v2049, %v2057
    %2061 = vrot.lane.b32.xlu0 %v2059, 32
    %v2062 = vpop.permute.xlu0 %2061
    %v2064 = vadd.f32 %v2054, %v2062
    %v2065 = vtanh.pop %v2064
    %2067 = vrot.lane.b32.xlu0 %v2065, 64
    %v2068 = vpop.permute.xlu0 %2067
    %v2070 = vmul.f32 %v2049, %v2068
    %2072 = vrot.lane.b32.xlu0 %v1969, 32
    %v2073 = vpop.permute.xlu0 %2072
    %v2074 = vsel %vm203, %v2073, 0
    %2076 = vmatprep.subr.mxu0 0.0
    %2077 = vmatpush1.msra.mxu0 %v293
    %2078 = vmatprep.subr.mxu0 0.0
    %2079 = vmatpush1.msra.mxu0 %v294
    %2080 = vmatprep.subr.mxu0 0.0
    %2081 = vmatpush1.msra.mxu0 %v295
    %2082 = vmatprep.subr.mxu0 0.0
    %2083 = vmatpush1.msra.mxu0 %v296
    %2084 = vmatprep.subr.mxu0 0.0
    %2085 = vmatpush1.msra.mxu0 0.0
    %2086 = vmatprep.subr.mxu0 0.0
    %2087 = vmatpush1.msra.mxu0 0.0
    %2088 = vmatprep.subr.mxu0 0.0
    %2089 = vmatpush1.msra.mxu0 0.0
    %2090 = vmatprep.subr.mxu0 0.0
    %2091 = vmatpush1.msra.mxu0 0.0
    %2092 = vmatprep.subr.mxu0 0.0
    %2093 = vmatpush1.msra.mxu0 0.0
    %2094 = vmatprep.subr.mxu0 0.0
    %2095 = vmatpush1.msra.mxu0 0.0
    %2096 = vmatprep.subr.mxu0 0.0
    %2097 = vmatpush1.msra.mxu0 0.0
    %2098 = vmatprep.subr.mxu0 0.0
    %2099 = vmatpush1.msra.mxu0 0.0
    %2100 = vmatprep.subr.mxu0 0.0
    %2101 = vmatpush1.msra.mxu0 0.0
    %2102 = vmatprep.subr.mxu0 0.0
    %2103 = vmatpush1.msra.mxu0 0.0
    %2104 = vmatprep.subr.mxu0 0.0
    %2105 = vmatpush1.msra.mxu0 0.0
    %2106 = vmatprep.subr.mxu0 0.0
    %2107 = vmatpush1.msra.mxu0 0.0
    %2108 = vmatprep.subr.mxu0 0.0
    %2109 = vmatpush1.msra.mxu0 0.0
    %2110 = vmatprep.subr.mxu0 0.0
    %2111 = vmatpush1.msra.mxu0 0.0
    %2112 = vmatprep.subr.mxu0 0.0
    %2113 = vmatpush1.msra.mxu0 0.0
    %2114 = vmatprep.subr.mxu0 0.0
    %2115 = vmatpush1.msra.mxu0 0.0
    %2116 = vmatprep.subr.mxu0 0.0
    %2117 = vmatpush1.msra.mxu0 0.0
    %2118 = vmatprep.subr.mxu0 0.0
    %2119 = vmatpush1.msra.mxu0 0.0
    %2120 = vmatprep.subr.mxu0 0.0
    %2121 = vmatpush1.msra.mxu0 0.0
    %2122 = vmatprep.subr.mxu0 0.0
    %2123 = vmatpush1.msra.mxu0 0.0
    %2124 = vmatprep.subr.mxu0 0.0
    %2125 = vmatpush1.msra.mxu0 0.0
    %2126 = vmatprep.subr.mxu0 0.0
    %2127 = vmatpush1.msra.mxu0 0.0
    %2128 = vmatprep.subr.mxu0 0.0
    %2129 = vmatpush1.msra.mxu0 0.0
    %2130 = vmatprep.subr.mxu0 0.0
    %2131 = vmatpush1.msra.mxu0 0.0
    %2132 = vmatprep.subr.mxu0 0.0
    %2133 = vmatpush1.msra.mxu0 0.0
    %2134 = vmatprep.subr.mxu0 0.0
    %2135 = vmatpush1.msra.mxu0 0.0
    %2136 = vmatprep.subr.mxu0 0.0
    %2137 = vmatpush1.msra.mxu0 0.0
    %2138 = vmatprep.subr.mxu0 0.0
    %2139 = vmatpush1.msra.mxu0 0.0
    %2140 = vmatprep.mubr.f32.mxu0 0.0
    %2141 = vmatmul.mubr.f32.gmra.mrb[0].mxu0 %v2074
    %v2142 = vpop.f32.mrb[0].mxu0
    %v2143 = vadd.f32 0.0, %v2142
    %v2144 = vpop.f32.mrb[0].mxu0
    %2145 = vdwg.mxu0
    %v2147 = vrot.slane %v2070, 4
    %2148 = vrot.lane.b32.xlu0 %v2147, 32
    %v2149 = vpop.permute.xlu0 %2148
    %v2150 = vsel %vm203, %v2149, 0
    %2152 = vmatprep.subr.mxu0 0.0
    %2153 = vmatpush1.msra.mxu0 %v289
    %2154 = vmatprep.subr.mxu0 0.0
    %2155 = vmatpush1.msra.mxu0 %v290
    %2156 = vmatprep.subr.mxu0 0.0
    %2157 = vmatpush1.msra.mxu0 %v291
    %2158 = vmatprep.subr.mxu0 0.0
    %2159 = vmatpush1.msra.mxu0 %v292
    %2160 = vmatprep.subr.mxu0 0.0
    %2161 = vmatpush1.msra.mxu0 0.0
    %2162 = vmatprep.subr.mxu0 0.0
    %2163 = vmatpush1.msra.mxu0 0.0
    %2164 = vmatprep.subr.mxu0 0.0
    %2165 = vmatpush1.msra.mxu0 0.0
    %2166 = vmatprep.subr.mxu0 0.0
    %2167 = vmatpush1.msra.mxu0 0.0
    %2168 = vmatprep.subr.mxu0 0.0
    %2169 = vmatpush1.msra.mxu0 0.0
    %2170 = vmatprep.subr.mxu0 0.0
    %2171 = vmatpush1.msra.mxu0 0.0
    %2172 = vmatprep.subr.mxu0 0.0
    %2173 = vmatpush1.msra.mxu0 0.0
    %2174 = vmatprep.subr.mxu0 0.0
    %2175 = vmatpush1.msra.mxu0 0.0
    %2176 = vmatprep.subr.mxu0 0.0
    %2177 = vmatpush1.msra.mxu0 0.0
    %2178 = vmatprep.subr.mxu0 0.0
    %2179 = vmatpush1.msra.mxu0 0.0
    %2180 = vmatprep.subr.mxu0 0.0
    %2181 = vmatpush1.msra.mxu0 0.0
    %2182 = vmatprep.subr.mxu0 0.0
    %2183 = vmatpush1.msra.mxu0 0.0
    %2184 = vmatprep.subr.mxu0 0.0
    %2185 = vmatpush1.msra.mxu0 0.0
    %2186 = vmatprep.subr.mxu0 0.0
    %2187 = vmatpush1.msra.mxu0 0.0
    %2188 = vmatprep.subr.mxu0 0.0
    %2189 = vmatpush1.msra.mxu0 0.0
    %2190 = vmatprep.subr.mxu0 0.0
    %2191 = vmatpush1.msra.mxu0 0.0
    %2192 = vmatprep.subr.mxu0 0.0
    %2193 = vmatpush1.msra.mxu0 0.0
    %2194 = vmatprep.subr.mxu0 0.0
    %2195 = vmatpush1.msra.mxu0 0.0
    %2196 = vmatprep.subr.mxu0 0.0
    %2197 = vmatpush1.msra.mxu0 0.0
    %2198 = vmatprep.subr.mxu0 0.0
    %2199 = vmatpush1.msra.mxu0 0.0
    %2200 = vmatprep.subr.mxu0 0.0
    %2201 = vmatpush1.msra.mxu0 0.0
    %2202 = vmatprep.subr.mxu0 0.0
    %2203 = vmatpush1.msra.mxu0 0.0
    %2204 = vmatprep.subr.mxu0 0.0
    %2205 = vmatpush1.msra.mxu0 0.0
    %2206 = vmatprep.subr.mxu0 0.0
    %2207 = vmatpush1.msra.mxu0 0.0
    %2208 = vmatprep.subr.mxu0 0.0
    %2209 = vmatpush1.msra.mxu0 0.0
    %2210 = vmatprep.subr.mxu0 0.0
    %2211 = vmatpush1.msra.mxu0 0.0
    %2212 = vmatprep.subr.mxu0 0.0
    %2213 = vmatpush1.msra.mxu0 0.0
    %2214 = vmatprep.subr.mxu0 0.0
    %2215 = vmatpush1.msra.mxu0 0.0
    %2216 = vmatprep.mubr.f32.mxu0 0.0
    %2217 = vmatmul.mubr.f32.gmra.mrb[0].mxu0 %v2150
    %v2218 = vpop.f32.mrb[0].mxu0
    %v2219 = vadd.f32 %v2143, %v2218
    %v2220 = vpop.f32.mrb[0].mxu0
    %2221 = vdwg.mxu0
    %v2222 = vadd.f32 %v2219, %v558
    %v2223 = vxor.u32 %v2222, 2147483648
    %v2224 = vmul.f32 %v2223, 1.442695
    %v2225 = vpow.pop %v2224
    %v2226 = vadd.f32 %v2225, 1.0
    %v2227 = vrcp.pop %v2226
    %v2228 = vmul.f32 1.0, %v2227
    %v2229 = vtanh.pop %v2222
    %v2230 = vmul.f32 %v2228, %v1963
    %2232 = vrot.lane.b32.xlu0 %v2229, 64
    %v2233 = vpop.permute.xlu0 %2232
    %v2235 = vmul.f32 %v2228, %v2233
    %2237 = vrot.lane.b32.xlu0 %v2235, 32
    %v2238 = vpop.permute.xlu0 %2237
    %v2240 = vadd.f32 %v2230, %v2238
    %v2241 = vtanh.pop %v2240
    %2243 = vrot.lane.b32.xlu0 %v2241, 64
    %v2244 = vpop.permute.xlu0 %2243
    %v2246 = vmul.f32 %v2228, %v2244
    %2247 = vmatprep.subr.mxu0 0.0
    %2248 = vmatpush1.msra.mxu0 %v285
    %2249 = vmatprep.subr.mxu0 0.0
    %2250 = vmatpush1.msra.mxu0 %v286
    %2251 = vmatprep.subr.mxu0 0.0
    %2252 = vmatpush1.msra.mxu0 %v287
    %2253 = vmatprep.subr.mxu0 0.0
    %2254 = vmatpush1.msra.mxu0 %v288
    %2255 = vmatprep.subr.mxu0 0.0
    %2256 = vmatpush1.msra.mxu0 0.0
    %2257 = vmatprep.subr.mxu0 0.0
    %2258 = vmatpush1.msra.mxu0 0.0
    %2259 = vmatprep.subr.mxu0 0.0
    %2260 = vmatpush1.msra.mxu0 0.0
    %2261 = vmatprep.subr.mxu0 0.0
    %2262 = vmatpush1.msra.mxu0 0.0
    %2263 = vmatprep.subr.mxu0 0.0
    %2264 = vmatpush1.msra.mxu0 0.0
    %2265 = vmatprep.subr.mxu0 0.0
    %2266 = vmatpush1.msra.mxu0 0.0
    %2267 = vmatprep.subr.mxu0 0.0
    %2268 = vmatpush1.msra.mxu0 0.0
    %2269 = vmatprep.subr.mxu0 0.0
    %2270 = vmatpush1.msra.mxu0 0.0
    %2271 = vmatprep.subr.mxu0 0.0
    %2272 = vmatpush1.msra.mxu0 0.0
    %2273 = vmatprep.subr.mxu0 0.0
    %2274 = vmatpush1.msra.mxu0 0.0
    %2275 = vmatprep.subr.mxu0 0.0
    %2276 = vmatpush1.msra.mxu0 0.0
    %2277 = vmatprep.subr.mxu0 0.0
    %2278 = vmatpush1.msra.mxu0 0.0
    %2279 = vmatprep.subr.mxu0 0.0
    %2280 = vmatpush1.msra.mxu0 0.0
    %2281 = vmatprep.subr.mxu0 0.0
    %2282 = vmatpush1.msra.mxu0 0.0
    %2283 = vmatprep.subr.mxu0 0.0
    %2284 = vmatpush1.msra.mxu0 0.0
    %2285 = vmatprep.subr.mxu0 0.0
    %2286 = vmatpush1.msra.mxu0 0.0
    %2287 = vmatprep.subr.mxu0 0.0
    %2288 = vmatpush1.msra.mxu0 0.0
    %2289 = vmatprep.subr.mxu0 0.0
    %2290 = vmatpush1.msra.mxu0 0.0
    %2291 = vmatprep.subr.mxu0 0.0
    %2292 = vmatpush1.msra.mxu0 0.0
    %2293 = vmatprep.subr.mxu0 0.0
    %2294 = vmatpush1.msra.mxu0 0.0
    %2295 = vmatprep.subr.mxu0 0.0
    %2296 = vmatpush1.msra.mxu0 0.0
    %2297 = vmatprep.subr.mxu0 0.0
    %2298 = vmatpush1.msra.mxu0 0.0
    %2299 = vmatprep.subr.mxu0 0.0
    %2300 = vmatpush1.msra.mxu0 0.0
    %2301 = vmatprep.subr.mxu0 0.0
    %2302 = vmatpush1.msra.mxu0 0.0
    %2303 = vmatprep.subr.mxu0 0.0
    %2304 = vmatpush1.msra.mxu0 0.0
    %2305 = vmatprep.subr.mxu0 0.0
    %2306 = vmatpush1.msra.mxu0 0.0
    %2307 = vmatprep.subr.mxu0 0.0
    %2308 = vmatpush1.msra.mxu0 0.0
    %2309 = vmatprep.subr.mxu0 0.0
    %2310 = vmatpush1.msra.mxu0 0.0
    %2311 = vmatprep.mubr.f32.mxu0 0.0
    %2312 = vmatmul.mubr.f32.gmra.mrb[0].mxu0 %v2150
    %v2313 = vpop.f32.mrb[0].mxu0
    %v2314 = vadd.f32 0.0, %v2313
    %v2315 = vpop.f32.mrb[0].mxu0
    %2316 = vdwg.mxu0
    %v2318 = vrot.slane %v2314, 2
    %v2320 = vadd.f32 %v282, %v2318
    %v2321 = vxor.u32 %v2320, 2147483648
    %v2322 = vmul.f32 %v2321, 1.442695
    %v2323 = vpow.pop %v2322
    %v2324 = vadd.f32 %v2323, 1.0
    %v2325 = vrcp.pop %v2324
    %v2326 = vmul.f32 1.0, %v2325
    %v2327 = vtanh.pop %v2320
    %v2329 = vrot.slane %v2064, 6
    %v2331 = vmul.f32 %v2326, %v2329
    %2333 = vrot.lane.b32.xlu0 %v2327, 64
    %v2334 = vpop.permute.xlu0 %2333
    %v2336 = vmul.f32 %v2326, %v2334
    %2338 = vrot.lane.b32.xlu0 %v2336, 32
    %v2339 = vpop.permute.xlu0 %2338
    %v2341 = vadd.f32 %v2331, %v2339
    %v2342 = vtanh.pop %v2341
    %2344 = vrot.lane.b32.xlu0 %v2342, 64
    %v2345 = vpop.permute.xlu0 %2344
    %v2347 = vmul.f32 %v2326, %v2345
    %2349 = vrot.lane.b32.xlu0 %v2246, 32
    %v2350 = vpop.permute.xlu0 %2349
    %v2351 = vsel %vm203, %v2350, 0
    %2353 = vmatprep.subr.mxu0 0.0
    %2354 = vmatpush1.msra.mxu0 %v293
    %2355 = vmatprep.subr.mxu0 0.0
    %2356 = vmatpush1.msra.mxu0 %v294
    %2357 = vmatprep.subr.mxu0 0.0
    %2358 = vmatpush1.msra.mxu0 %v295
    %2359 = vmatprep.subr.mxu0 0.0
    %2360 = vmatpush1.msra.mxu0 %v296
    %2361 = vmatprep.subr.mxu0 0.0
    %2362 = vmatpush1.msra.mxu0 0.0
    %2363 = vmatprep.subr.mxu0 0.0
    %2364 = vmatpush1.msra.mxu0 0.0
    %2365 = vmatprep.subr.mxu0 0.0
    %2366 = vmatpush1.msra.mxu0 0.0
    %2367 = vmatprep.subr.mxu0 0.0
    %2368 = vmatpush1.msra.mxu0 0.0
    %2369 = vmatprep.subr.mxu0 0.0
    %2370 = vmatpush1.msra.mxu0 0.0
    %2371 = vmatprep.subr.mxu0 0.0
    %2372 = vmatpush1.msra.mxu0 0.0
    %2373 = vmatprep.subr.mxu0 0.0
    %2374 = vmatpush1.msra.mxu0 0.0
    %2375 = vmatprep.subr.mxu0 0.0
    %2376 = vmatpush1.msra.mxu0 0.0
    %2377 = vmatprep.subr.mxu0 0.0
    %2378 = vmatpush1.msra.mxu0 0.0
    %2379 = vmatprep.subr.mxu0 0.0
    %2380 = vmatpush1.msra.mxu0 0.0
    %2381 = vmatprep.subr.mxu0 0.0
    %2382 = vmatpush1.msra.mxu0 0.0
    %2383 = vmatprep.subr.mxu0 0.0
    %2384 = vmatpush1.msra.mxu0 0.0
    %2385 = vmatprep.subr.mxu0 0.0
    %2386 = vmatpush1.msra.mxu0 0.0
    %2387 = vmatprep.subr.mxu0 0.0
    %2388 = vmatpush1.msra.mxu0 0.0
    %2389 = vmatprep.subr.mxu0 0.0
    %2390 = vmatpush1.msra.mxu0 0.0
    %2391 = vmatprep.subr.mxu0 0.0
    %2392 = vmatpush1.msra.mxu0 0.0
    %2393 = vmatprep.subr.mxu0 0.0
    %2394 = vmatpush1.msra.mxu0 0.0
    %2395 = vmatprep.subr.mxu0 0.0
    %2396 = vmatpush1.msra.mxu0 0.0
    %2397 = vmatprep.subr.mxu0 0.0
    %2398 = vmatpush1.msra.mxu0 0.0
    %2399 = vmatprep.subr.mxu0 0.0
    %2400 = vmatpush1.msra.mxu0 0.0
    %2401 = vmatprep.subr.mxu0 0.0
    %2402 = vmatpush1.msra.mxu0 0.0
    %2403 = vmatprep.subr.mxu0 0.0
    %2404 = vmatpush1.msra.mxu0 0.0
    %2405 = vmatprep.subr.mxu0 0.0
    %2406 = vmatpush1.msra.mxu0 0.0
    %2407 = vmatprep.subr.mxu0 0.0
    %2408 = vmatpush1.msra.mxu0 0.0
    %2409 = vmatprep.subr.mxu0 0.0
    %2410 = vmatpush1.msra.mxu0 0.0
    %2411 = vmatprep.subr.mxu0 0.0
    %2412 = vmatpush1.msra.mxu0 0.0
    %2413 = vmatprep.subr.mxu0 0.0
    %2414 = vmatpush1.msra.mxu0 0.0
    %2415 = vmatprep.subr.mxu0 0.0
    %2416 = vmatpush1.msra.mxu0 0.0
    %2417 = vmatprep.mubr.f32.mxu0 0.0
    %2418 = vmatmul.mubr.f32.gmra.mrb[0].mxu0 %v2351
    %v2419 = vpop.f32.mrb[0].mxu0
    %v2420 = vadd.f32 0.0, %v2419
    %v2421 = vpop.f32.mrb[0].mxu0
    %2422 = vdwg.mxu0
    %v2424 = vrot.slane %v2347, 6
    %2425 = vrot.lane.b32.xlu0 %v2424, 32
    %v2426 = vpop.permute.xlu0 %2425
    %v2427 = vsel %vm203, %v2426, 0
    %2429 = vmatprep.subr.mxu0 0.0
    %2430 = vmatpush1.msra.mxu0 %v289
    %2431 = vmatprep.subr.mxu0 0.0
    %2432 = vmatpush1.msra.mxu0 %v290
    %2433 = vmatprep.subr.mxu0 0.0
    %2434 = vmatpush1.msra.mxu0 %v291
    %2435 = vmatprep.subr.mxu0 0.0
    %2436 = vmatpush1.msra.mxu0 %v292
    %2437 = vmatprep.subr.mxu0 0.0
    %2438 = vmatpush1.msra.mxu0 0.0
    %2439 = vmatprep.subr.mxu0 0.0
    %2440 = vmatpush1.msra.mxu0 0.0
    %2441 = vmatprep.subr.mxu0 0.0
    %2442 = vmatpush1.msra.mxu0 0.0
    %2443 = vmatprep.subr.mxu0 0.0
    %2444 = vmatpush1.msra.mxu0 0.0
    %2445 = vmatprep.subr.mxu0 0.0
    %2446 = vmatpush1.msra.mxu0 0.0
    %2447 = vmatprep.subr.mxu0 0.0
    %2448 = vmatpush1.msra.mxu0 0.0
    %2449 = vmatprep.subr.mxu0 0.0
    %2450 = vmatpush1.msra.mxu0 0.0
    %2451 = vmatprep.subr.mxu0 0.0
    %2452 = vmatpush1.msra.mxu0 0.0
    %2453 = vmatprep.subr.mxu0 0.0
    %2454 = vmatpush1.msra.mxu0 0.0
    %2455 = vmatprep.subr.mxu0 0.0
    %2456 = vmatpush1.msra.mxu0 0.0
    %2457 = vmatprep.subr.mxu0 0.0
    %2458 = vmatpush1.msra.mxu0 0.0
    %2459 = vmatprep.subr.mxu0 0.0
    %2460 = vmatpush1.msra.mxu0 0.0
    %2461 = vmatprep.subr.mxu0 0.0
    %2462 = vmatpush1.msra.mxu0 0.0
    %2463 = vmatprep.subr.mxu0 0.0
    %2464 = vmatpush1.msra.mxu0 0.0
    %2465 = vmatprep.subr.mxu0 0.0
    %2466 = vmatpush1.msra.mxu0 0.0
    %2467 = vmatprep.subr.mxu0 0.0
    %2468 = vmatpush1.msra.mxu0 0.0
    %2469 = vmatprep.subr.mxu0 0.0
    %2470 = vmatpush1.msra.mxu0 0.0
    %2471 = vmatprep.subr.mxu0 0.0
    %2472 = vmatpush1.msra.mxu0 0.0
    %2473 = vmatprep.subr.mxu0 0.0
    %2474 = vmatpush1.msra.mxu0 0.0
    %2475 = vmatprep.subr.mxu0 0.0
    %2476 = vmatpush1.msra.mxu0 0.0
    %2477 = vmatprep.subr.mxu0 0.0
    %2478 = vmatpush1.msra.mxu0 0.0
    %2479 = vmatprep.subr.mxu0 0.0
    %2480 = vmatpush1.msra.mxu0 0.0
    %2481 = vmatprep.subr.mxu0 0.0
    %2482 = vmatpush1.msra.mxu0 0.0
    %2483 = vmatprep.subr.mxu0 0.0
    %2484 = vmatpush1.msra.mxu0 0.0
    %2485 = vmatprep.subr.mxu0 0.0
    %2486 = vmatpush1.msra.mxu0 0.0
    %2487 = vmatprep.subr.mxu0 0.0
    %2488 = vmatpush1.msra.mxu0 0.0
    %2489 = vmatprep.subr.mxu0 0.0
    %2490 = vmatpush1.msra.mxu0 0.0
    %2491 = vmatprep.subr.mxu0 0.0
    %2492 = vmatpush1.msra.mxu0 0.0
    %2493 = vmatprep.mubr.f32.mxu0 0.0
    %2494 = vmatmul.mubr.f32.gmra.mrb[0].mxu0 %v2427
    %v2495 = vpop.f32.mrb[0].mxu0
    %v2496 = vadd.f32 %v2420, %v2495
    %v2497 = vpop.f32.mrb[0].mxu0
    %2498 = vdwg.mxu0
    %v2499 = vadd.f32 %v2496, %v558
    %v2500 = vxor.u32 %v2499, 2147483648
    %v2501 = vmul.f32 %v2500, 1.442695
    %v2502 = vpow.pop %v2501
    %v2503 = vadd.f32 %v2502, 1.0
    %v2504 = vrcp.pop %v2503
    %v2505 = vmul.f32 1.0, %v2504
    %v2506 = vtanh.pop %v2499
    %v2507 = vmul.f32 %v2505, %v2240
    %2509 = vrot.lane.b32.xlu0 %v2506, 64
    %v2510 = vpop.permute.xlu0 %2509
    %v2512 = vmul.f32 %v2505, %v2510
    %2514 = vrot.lane.b32.xlu0 %v2512, 32
    %v2515 = vpop.permute.xlu0 %2514
    %v2517 = vadd.f32 %v2507, %v2515
    %v2518 = vtanh.pop %v2517
    %2520 = vrot.lane.b32.xlu0 %v2518, 64
    %v2521 = vpop.permute.xlu0 %2520
    %v2523 = vmul.f32 %v2505, %v2521
    %v2524 = vld [vmem:[#allocation5] sm:$0xff]
    %v2525 = vld [vmem:[#allocation5 + $0x8] sm:$0xff]
    %v2526 = vld [vmem:[#allocation5 + $0x10] sm:$0xff]
    %v2527 = vld [vmem:[#allocation5 + $0x18] sm:$0xff]
    %v2528 = vld [vmem:[#allocation7] sm:$0x1]
    %v2530 = vlaneseq
    %v2531 = vshrl.u32 %v2530, 7
    %v2532 = vsub.s32 0, %v2531
    %v2533 = vrot.slane %v2528, %v2532
    %2536 = vrot.lane.b32.xlu0 %v2523, 32
    %v2537 = vpop.permute.xlu0 %2536
    %v2538 = vsel %vm203, %v2537, 0
    %2540 = vmatprep.subr.mxu0 0.0
    %2541 = vmatpush1.msra.mxu0 %v2524
    %2542 = vmatprep.subr.mxu0 0.0
    %2543 = vmatpush1.msra.mxu0 %v2525
    %2544 = vmatprep.subr.mxu0 0.0
    %2545 = vmatpush1.msra.mxu0 %v2526
    %2546 = vmatprep.subr.mxu0 0.0
    %2547 = vmatpush1.msra.mxu0 %v2527
    %2548 = vmatprep.subr.mxu0 0.0
    %2549 = vmatpush1.msra.mxu0 0.0
    %2550 = vmatprep.subr.mxu0 0.0
    %2551 = vmatpush1.msra.mxu0 0.0
    %2552 = vmatprep.subr.mxu0 0.0
    %2553 = vmatpush1.msra.mxu0 0.0
    %2554 = vmatprep.subr.mxu0 0.0
    %2555 = vmatpush1.msra.mxu0 0.0
    %2556 = vmatprep.subr.mxu0 0.0
    %2557 = vmatpush1.msra.mxu0 0.0
    %2558 = vmatprep.subr.mxu0 0.0
    %2559 = vmatpush1.msra.mxu0 0.0
    %2560 = vmatprep.subr.mxu0 0.0
    %2561 = vmatpush1.msra.mxu0 0.0
    %2562 = vmatprep.subr.mxu0 0.0
    %2563 = vmatpush1.msra.mxu0 0.0
    %2564 = vmatprep.subr.mxu0 0.0
    %2565 = vmatpush1.msra.mxu0 0.0
    %2566 = vmatprep.subr.mxu0 0.0
    %2567 = vmatpush1.msra.mxu0 0.0
    %2568 = vmatprep.subr.mxu0 0.0
    %2569 = vmatpush1.msra.mxu0 0.0
    %2570 = vmatprep.subr.mxu0 0.0
    %2571 = vmatpush1.msra.mxu0 0.0
    %2572 = vmatprep.subr.mxu0 0.0
    %2573 = vmatpush1.msra.mxu0 0.0
    %2574 = vmatprep.subr.mxu0 0.0
    %2575 = vmatpush1.msra.mxu0 0.0
    %2576 = vmatprep.subr.mxu0 0.0
    %2577 = vmatpush1.msra.mxu0 0.0
    %2578 = vmatprep.subr.mxu0 0.0
    %2579 = vmatpush1.msra.mxu0 0.0
    %2580 = vmatprep.subr.mxu0 0.0
    %2581 = vmatpush1.msra.mxu0 0.0
    %2582 = vmatprep.subr.mxu0 0.0
    %2583 = vmatpush1.msra.mxu0 0.0
    %2584 = vmatprep.subr.mxu0 0.0
    %2585 = vmatpush1.msra.mxu0 0.0
    %2586 = vmatprep.subr.mxu0 0.0
    %2587 = vmatpush1.msra.mxu0 0.0
    %2588 = vmatprep.subr.mxu0 0.0
    %2589 = vmatpush1.msra.mxu0 0.0
    %2590 = vmatprep.subr.mxu0 0.0
    %2591 = vmatpush1.msra.mxu0 0.0
    %2592 = vmatprep.subr.mxu0 0.0
    %2593 = vmatpush1.msra.mxu0 0.0
    %2594 = vmatprep.subr.mxu0 0.0
    %2595 = vmatpush1.msra.mxu0 0.0
    %2596 = vmatprep.subr.mxu0 0.0
    %2597 = vmatpush1.msra.mxu0 0.0
    %2598 = vmatprep.subr.mxu0 0.0
    %2599 = vmatpush1.msra.mxu0 0.0
    %2600 = vmatprep.subr.mxu0 0.0
    %2601 = vmatpush1.msra.mxu0 0.0
    %2602 = vmatprep.subr.mxu0 0.0
    %2603 = vmatpush1.msra.mxu0 0.0
    %2604 = vmatprep.mubr.f32.mxu0 0.0
    %2605 = vmatmul.mubr.f32.gmra.mrb[0].mxu0 %v2538
    %v2606 = vpop.f32.mrb[0].mxu0
    %v2607 = vadd.f32 %v2533, %v2606
    %v2608 = vpop.f32.mrb[0].mxu0
    %2609 = vdwg.mxu0
    %2610 = vst [vmem:[#allocation8] sm:$0x3] %v2607
    %2611 = vrot.lane.b32.xlu0 %v2347, 32
    %v2612 = vpop.permute.xlu0 %2611
    %vm2614 = vcmask 261126
    %2615 = vst.msk [vmem:[#allocation9 - $0x6] sm:$0xc0] %vm2614, %v2612
    %2617 = vrot.lane.b32.xlu0 %v2341, 96
    %v2618 = vpop.permute.xlu0 %2617
    %2620 = vst.msk [vmem:[#allocation11 - $0x6] sm:$0xc0] %vm2614, %v2618
    %s2622 = scalar_lea.vmem [#allocation9], 2
    %vm2623 = vcmask 254976
    %2624 = vst.msk [vmem:[%s2622] sm:$0x3] %vm2623, %v2537
    %2626 = vrot.lane.b32.xlu0 %v2517, 96
    %v2627 = vpop.permute.xlu0 %2626
    %s2629 = scalar_lea.vmem [#allocation11], 2
    %2630 = vst.msk [vmem:[%s2629] sm:$0x3] %vm2623, %v2627
    // Predicated region
    $region62: #{lstm_text_generator_forward.1} parent=1 // pred_check
      _
    $region63: #{lstm_text_generator_forward.1} parent=1 // pred_check_branch
      %2632 = sbr.rel (0) target = $region65
    $region64: #{lstm_text_generator_forward.1} parent=1 // pred_region
      %s2634 = ssub.s32 32, 32
      %2635 = vsyncadd [#allocation4], %s2634
      %s2637 = sshll.u32 [#allocation8], 4
      %s2638 = int_to_ptr.vmem [resolvable:$true] %s2637
      %2640 = dma.vmem_to_hbm [thread:$0]  %s2638, 32, %s12, [#allocation4]
    $region65: #{lstm_text_generator_forward.1} parent=1 // pred_fallthru
      _
    // Predicated region
    $region66: #{lstm_text_generator_forward.1} parent=1 // pred_check
      _
    $region67: #{lstm_text_generator_forward.1} parent=1 // pred_check_branch
      %2642 = sbr.rel (0) target = $region69
    $region68: #{lstm_text_generator_forward.1} parent=1 // pred_region
      %s2644 = ssub.s32 64, 64
      %2645 = vsyncadd [#allocation10], %s2644
      %s2646 = sshll.u32 [#allocation9], 4
      %s2647 = int_to_ptr.vmem [resolvable:$true] %s2646
      %2652 = dma.vmem_to_hbm [thread:$0]  %s2647, 64, %s13, [#allocation10], 32, 32, 2
    $region69: #{lstm_text_generator_forward.1} parent=1 // pred_fallthru
      _
    // Predicated region
    $region70: #{lstm_text_generator_forward.1} parent=1 // pred_check
      _
    $region71: #{lstm_text_generator_forward.1} parent=1 // pred_check_branch
      %2654 = sbr.rel (0) target = $region73
    $region72: #{lstm_text_generator_forward.1} parent=1 // pred_region
      %s2656 = ssub.s32 64, 64
      %2657 = vsyncadd [#allocation10], %s2656
      %s2658 = sshll.u32 [#allocation11], 4
      %s2659 = int_to_ptr.vmem [resolvable:$true] %s2658
      %2664 = dma.vmem_to_hbm [thread:$0]  %s2659, 64, %s14, [#allocation10], 32, 32, 2
    $region73: #{lstm_text_generator_forward.1} parent=1 // pred_fallthru
      _
    // Predicated region
    $region74: #{lstm_text_generator_forward.1} parent=1 // pred_check
      _
    $region75: #{lstm_text_generator_forward.1} parent=1 // pred_check_branch
      %2666 = sbr.rel (0) target = $region77
    $region76: #{lstm_text_generator_forward.1} parent=1 // pred_region
      %2667 = dma.done [#allocation4], 32
    $region77: #{lstm_text_generator_forward.1} parent=1 // pred_fallthru
      _
    // Predicated region
    $region78: #{lstm_text_generator_forward.1} parent=1 // pred_check
      _
    $region79: #{lstm_text_generator_forward.1} parent=1 // pred_check_branch
      %2669 = sbr.rel (0) target = $region81
    $region80: #{lstm_text_generator_forward.1} parent=1 // pred_region
      %2670 = dma.done [#allocation10], 64
    $region81: #{lstm_text_generator_forward.1} parent=1 // pred_fallthru
      _
    // Predicated region
    $region82: #{lstm_text_generator_forward.1} parent=1 // pred_check
      _
    $region83: #{lstm_text_generator_forward.1} parent=1 // pred_check_branch
      %2672 = sbr.rel (0) target = $region85
    $region84: #{lstm_text_generator_forward.1} parent=1 // pred_region
      %2673 = dma.done [#allocation10], 64
    $region85: #{lstm_text_generator_forward.1} parent=1 // pred_fallthru
      _
    %2674 = vsyncpa [#allocation3], 1
    %2675 = vsyncpa [#allocation6], 1
    %2676 = vsyncpa [#allocation4], 1
    %2677 = vsyncpa [#allocation10], 1

</llo_original>
